<compile_context>
chip_gen: v6e
topology: v6e:2x2x1
jax: 0.10.0
libtpu: 0.0.40
codegen_flags: <defaults>
</compile_context>

<pallas_src>
import functools

import jax
import jax.numpy as jnp
from jax import lax
from jax.experimental import pallas as pl
from jax.experimental.pallas import tpu as pltpu


_HIDDEN_PAD = 8    # pad the tiny MLP hidden dim (C // ratio) to a friendly size


def _round_up(v, m):
    return ((v + m - 1) // m) * m


def _vmem_capacity_bytes():
    try:
        return int(pltpu.get_tpu_info().vmem_capacity_bytes)
    except Exception:
        return 64 * 1024 * 1024   # conservative fallback (v7x-sized)


# ----------------------------------------------------------------------------
# Fused CBAM kernel: one grid step = Nb batch elements.
# ----------------------------------------------------------------------------
def _cbam_kernel(x_ref, w1t_ref, w2p_ref, cmask_ref, wcol_ref, o_ref, pad_ref,
                 *, Nb, H, W, zpad):
    # x_ref:     (Nb, C, HW)          input, channels on sublanes, HW on lanes
    # w1t_ref:   (C, Hp)              conv1x1 #1 weight, transposed + zero-padded
    # w2p_ref:   (C, Hp)              conv1x1 #2 weight, zero-padded
    # cmask_ref: (7, HW)              column-validity masks, one per horizontal tap
    # wcol_ref:  (2*Nb, 49)           7x7 conv weights; rows 0..Nb-1 = avg-map
    #                                 weight, rows Nb..2Nb-1 = max-map weight
    # o_ref:     (Nb, C, HW)          output: x * ca * sa
    # pad_ref:   (2*Nb, HW + 2*zpad)  VMEM scratch: zero-padded flat maps
    HW = H * W
    Z = zpad
    f32 = jnp.float32

    w1t = w1t_ref[...]                                            # (C, Hp)
    w2p = w2p_ref[...]                                            # (C, Hp)

    # Zero the left/right pad columns of the conv scratch (all 2*Nb rows).
    pad_ref[:, 0:Z] = jnp.zeros((2 * Nb, Z), f32)
    pad_ref[:, Z + HW:Z + HW + Z] = jnp.zeros((2 * Nb, Z), f32)

    # ---- per-element channel attention + spatial-map construction ----------
    # (These reductions are over C / over HW per element, so batching them
    #  would not increase vector utilization; keep the proven 2-D patterns.)
    ca_list = []
    for b in range(Nb):
        xb = x_ref[b].astype(f32)                                 # (C, HW)
        mb = jnp.mean(xb, axis=1, keepdims=True)                  # (C, 1) lane reduce
        hb = jnp.maximum(jnp.sum(w1t * mb, axis=0, keepdims=True), 0.0)   # (1, Hp)
        lb = jnp.sum(w2p * hb, axis=1, keepdims=True)                     # (C, 1)
        # "avg" branch + "max" branch are identical by construction.
        cab = jax.nn.sigmoid(lb + lb)                             # (C, 1)
        ca_list.append(cab)
        xcab = xb * cab                                           # (C, HW)
        # Pack per-pixel channel mean/max into the dense conv scratch rows.
        pad_ref[b:b + 1, Z:Z + HW] = jnp.mean(xcab, axis=0, keepdims=True)
        pad_ref[Nb + b:Nb + b + 1, Z:Z + HW] = jnp.max(xcab, axis=0, keepdims=True)

    # ---- 7x7 spatial conv (padding=3, no bias) --------------------------------
    # All Nb avg maps + Nb max maps are processed in one (2*Nb, HW) slab per
    # tap: one window load, one column-broadcast multiply-add.  zpad >= 3W+3
    # makes every vertically out-of-range tap read zeros; horizontal cross-row
    # wrap is killed by the per-dx column masks.
    acc = jnp.zeros((2 * Nb, HW), f32)
    for dx in range(7):
        inner = jnp.zeros((2 * Nb, HW), f32)
        for dy in range(7):
            off = Z + (dy - 3) * W + (dx - 3)
            k = dy * 7 + dx
            inner = inner + wcol_ref[:, k:k + 1] * pad_ref[:, off:off + HW]
        acc = acc + cmask_ref[dx:dx + 1, :] * inner
    # Fold the avg-weighted and max-weighted halves -> conv output per element.
    sa = jax.nn.sigmoid(acc[0:Nb, :] + acc[Nb:2 * Nb, :])         # (Nb, HW)

    # ---- final scaling, full-lane stores ----
    for b in range(Nb):
        o_ref[b] = (x_ref[b].astype(f32) * ca_list[b] * sa[b:b + 1, :]).astype(o_ref.dtype)


# ----------------------------------------------------------------------------
# Wrapper
# ----------------------------------------------------------------------------
@jax.jit
def cbam_pallas(x, w1, w2, wsa):
    """CBAM forward. x: (N, C, H, W); w1: (Ch, C); w2: (C, Ch); wsa: (1, 2, 7, 7)."""
    N, C, H, W = x.shape
    Ch = w1.shape[0]
    HW = H * W
    Hp = max(_HIDDEN_PAD, Ch)
    zp = max(128, _round_up(3 * W + 3, 128))      # flat pad on each side of the maps
    assert zp >= 3 * W + 3
    x_bytes = jnp.dtype(x.dtype).itemsize

    # --- generation-aware VMEM budgeting (v5e/v6e: 128 MiB, v7x: 64 MiB) ---
    vmem_cap = _vmem_capacity_bytes()
    block_budget = vmem_cap // 2      # in+out double-buffered blocks get ~half

    nb = 8                            # fill the 8 vreg sublanes of the conv slab
    while nb > 1 and 2 * 2 * nb * C * HW * x_bytes > block_budget:
        nb //= 2
    if 2 * 2 * nb * C * HW * x_bytes > block_budget:
        # TODO(synk): HW-tiled variant for feature maps too large even at nb=1.
        raise ValueError("feature map too large for the single-block CBAM kernel")
    # Prefer >= 2 grid steps (megacore load balance on v7x) while still
    # batching at least 2 elements per step.
    while nb > 2 and _round_up(N, nb) // nb < 2:
        nb //= 2

    Npad = _round_up(N, nb)
    grid = Npad // nb

    # Estimate total VMEM and set an explicit compiler limit (with headroom).
    block_bytes = 2 * 2 * nb * C * HW * x_bytes                    # in+out, dbl-buffered
    invariant_bytes = 2 * 4 * (2 * C * Hp + 7 * HW + 2 * nb * 49)  # weights/masks, dbl-buffered
    scratch_bytes = 4 * 2 * nb * (HW + 2 * zp)
    need = block_bytes + invariant_bytes + scratch_bytes
    vmem_limit = int(min(vmem_cap, max(2 * need, 32 * 1024 * 1024)))

    # Layout plumbing: free reshapes only (no transposes), plus zero-padding of
    # the tiny MLP weights (exact math; padded columns contribute 0) and
    # zero-padding of the batch to a multiple of nb (padded elements are
    # independent and sliced off afterwards).
    x_flat = x.reshape(N, C, HW)
    if Npad != N:
        x_flat = jnp.pad(x_flat, ((0, Npad - N), (0, 0), (0, 0)))

    w1t = jnp.zeros((C, Hp), jnp.float32).at[:, :Ch].set(w1.T.astype(jnp.float32))
    w2p = jnp.zeros((C, Hp), jnp.float32).at[:, :Ch].set(w2.astype(jnp.float32))

    # 7x7 conv weights as per-scratch-row weight columns: rows 0..nb-1 get the
    # avg-channel weights, rows nb..2nb-1 the max-channel weights.
    wsa2 = wsa.reshape(2, 49).astype(jnp.float32)
    wcol = jnp.concatenate([jnp.tile(wsa2[0:1], (nb, 1)),
                            jnp.tile(wsa2[1:2], (nb, 1))], axis=0)   # (2*nb, 49)

    # Column-validity masks for the 7 horizontal tap offsets (dx-3 in [-3, 3]).
    xcoord = jnp.arange(HW, dtype=jnp.int32) % W
    cmask = jnp.stack(
        [((xcoord + (dx - 3) >= 0) & (xcoord + (dx - 3) < W)) for dx in range(7)]
    ).astype(jnp.float32)                                            # (7, HW)

    kernel = functools.partial(_cbam_kernel, Nb=nb, H=H, W=W, zpad=zp)
    out_flat = pl.pallas_call(
        kernel,
        out_shape=jax.ShapeDtypeStruct((Npad, C, HW), x.dtype),
        grid_spec=pltpu.PrefetchScalarGridSpec(
            num_scalar_prefetch=0,
            grid=(grid,),
            in_specs=[
                pl.BlockSpec((nb, C, HW), lambda n: (n, 0, 0)),
                pl.BlockSpec((C, Hp), lambda n: (0, 0)),
                pl.BlockSpec((C, Hp), lambda n: (0, 0)),
                pl.BlockSpec((7, HW), lambda n: (0, 0)),
                pl.BlockSpec((2 * nb, 49), lambda n: (0, 0)),
            ],
            out_specs=pl.BlockSpec((nb, C, HW), lambda n: (n, 0, 0)),
            scratch_shapes=[pltpu.VMEM((2 * nb, HW + 2 * zp), jnp.float32)],
        ),
        compiler_params=pltpu.CompilerParams(
            dimension_semantics=("parallel",),
            vmem_limit_bytes=vmem_limit),
    )(x_flat, w1t, w2p, cmask, wcol)
    return out_flat[:N].reshape(N, C, H, W)


# ----------------------------------------------------------------------------
# Pure-JAX reference (same semantics as the PyTorch module)
# ----------------------------------------------------------------------------
def cbam_reference(x, w1, w2, wsa):
    m = jnp.mean(x, axis=(2, 3))                        # both "pools" are avg-pool
    h = jnp.maximum(m @ w1.T, 0.0)
    logits = h @ w2.T
    ca = jax.nn.sigmoid(logits + logits)
    xca = x * ca[:, :, None, None]
    avg = jnp.mean(xca, axis=1, keepdims=True)
    mx = jnp.max(xca, axis=1, keepdims=True)
    maps = jnp.concatenate([avg, mx], axis=1)
    sa = jax.nn.sigmoid(
        lax.conv_general_dilated(maps, wsa, (1, 1), [(3, 3), (3, 3)],
                                 dimension_numbers=("NCHW", "OIHW", "NCHW")))
    return xca * sa


if __name__ == "__main__":
    key = jax.random.PRNGKey(0)
    kx, k1, k2, k3 = jax.random.split(key, 4)

    N, C, H, W = 10, 32, 16, 16         # in_planes=32, ratio=16 -> hidden = 2
    ratio = 16
    Ch = C // ratio

    x = jax.random.normal(kx, (N, C, H, W), jnp.float32)
    w1 = 0.25 * jax.random.normal(k1, (Ch, C), jnp.float32)        # Conv2d(C, C//16, 1)
    w2 = 0.25 * jax.random.normal(k2, (C, Ch), jnp.float32)        # Conv2d(C//16, C, 1)
    wsa = 0.25 * jax.random.normal(k3, (1, 2, 7, 7), jnp.float32)  # Conv2d(2, 1, 7, pad=3)

    out = jax.block_until_ready(cbam_pallas(x, w1, w2, wsa))

    ref = cbam_reference(x, w1, w2, wsa)
    assert out.shape == ref.shape == (N, C, H, W)
    err = float(jnp.max(jnp.abs(out - ref)))
    if err > 1e-3:
        raise AssertionError(f"mismatch vs reference, max abs err = {err}")
    print("KERNEL_OK")
</pallas_src>

<mosaic_0001>
module attributes {stable_mosaic.version = 11 : i64} {
  func.func @_cbam_kernel(%arg0: i32, %arg1: memref<8x32x256xf32, #tpu.memory_space<vmem>>, %arg2: memref<32x8xf32, #tpu.memory_space<vmem>>, %arg3: memref<32x8xf32, #tpu.memory_space<vmem>>, %arg4: memref<7x256xf32, #tpu.memory_space<vmem>>, %arg5: memref<16x49xf32, #tpu.memory_space<vmem>>, %arg6: memref<8x32x256xf32, #tpu.memory_space<vmem>>, %arg7: memref<16x512xf32, #tpu.memory_space<vmem>>) attributes {dimension_semantics = [#tpu.dimension_semantics<parallel>], iteration_bounds = array<i64: 2>, scalar_prefetch = 0 : i64, scratch_operands = 1 : i64, tpu.core_type = #tpu.core_type<tc>, window_params = [{transform_indices = @transform_0, window_bounds = array<i64: 8, 32, 256>}, {pipeline_mode = #tpu.pipeline_mode<synchronous>, transform_indices = @transform_1, window_bounds = array<i64: 32, 8>}, {pipeline_mode = #tpu.pipeline_mode<synchronous>, transform_indices = @transform_2, window_bounds = array<i64: 32, 8>}, {pipeline_mode = #tpu.pipeline_mode<synchronous>, transform_indices = @transform_3, window_bounds = array<i64: 7, 256>}, {pipeline_mode = #tpu.pipeline_mode<synchronous>, transform_indices = @transform_4, window_bounds = array<i64: 16, 49>}, {transform_indices = @transform_5, window_bounds = array<i64: 8, 32, 256>}]} {
    %c0 = arith.constant 0 : index
    %c0_0 = arith.constant 0 : index
    %0 = vector.load %arg2[%c0, %c0_0] : memref<32x8xf32, #tpu.memory_space<vmem>>, vector<32x8xf32>
    %c0_1 = arith.constant 0 : index
    %c0_2 = arith.constant 0 : index
    %1 = vector.load %arg3[%c0_1, %c0_2] : memref<32x8xf32, #tpu.memory_space<vmem>>, vector<32x8xf32>
    %cst = arith.constant 0.000000e+00 : f32
    %2 = vector.broadcast %cst : f32 to vector<16x128xf32>
    %c0_3 = arith.constant 0 : index
    %c0_4 = arith.constant 0 : index
    %3 = vector.load %arg7[%c0_3, %c0_4] : memref<16x512xf32, #tpu.memory_space<vmem>>, vector<16x128xf32>
    tpu.vector_store %arg7[%c0_3, %c0_4], %2 {strides = array<i32>} : memref<16x512xf32, #tpu.memory_space<vmem>>, vector<16x128xf32>,
    %cst_5 = arith.constant 0.000000e+00 : f32
    %4 = vector.broadcast %cst_5 : f32 to vector<16x128xf32>
    %c0_6 = arith.constant 0 : index
    %c384 = arith.constant 384 : index
    %5 = vector.load %arg7[%c0_6, %c384] : memref<16x512xf32, #tpu.memory_space<vmem>>, vector<16x128xf32>
    tpu.vector_store %arg7[%c0_6, %c384], %4 {strides = array<i32>} : memref<16x512xf32, #tpu.memory_space<vmem>>, vector<16x128xf32>,
    %c0_7 = arith.constant 0 : index
    %c0_8 = arith.constant 0 : index
    %c0_9 = arith.constant 0 : index
    %6 = vector.load %arg1[%c0_7, %c0_8, %c0_9] : memref<8x32x256xf32, #tpu.memory_space<vmem>>, vector<1x32x256xf32>
    %7 = vector.shape_cast %6 : vector<1x32x256xf32> to vector<32x256xf32>
    %cst_10 = arith.constant dense<0.000000e+00> : vector<32xf32>
    %8 = vector.multi_reduction <add>, %7, %cst_10 [1] : vector<32x256xf32> to vector<32xf32>
    %9 = vector.shape_cast %8 : vector<32xf32> to vector<32x1xf32>
    %cst_11 = arith.constant 2.560000e+02 : f32
    %10 = vector.broadcast %cst_11 : f32 to vector<32x1xf32>
    %11 = arith.divf %9, %10 : vector<32x1xf32>
    %12 = vector.broadcast %11 : vector<32x1xf32> to vector<32x8xf32>
    %13 = arith.mulf %0, %12 : vector<32x8xf32>
    %cst_12 = arith.constant dense<0.000000e+00> : vector<8xf32>
    %14 = vector.multi_reduction <add>, %13, %cst_12 [0] : vector<32x8xf32> to vector<8xf32>
    %15 = vector.shape_cast %14 : vector<8xf32> to vector<1x8xf32>
    %cst_13 = arith.constant 0.000000e+00 : f32
    %16 = vector.broadcast %cst_13 : f32 to vector<1x8xf32>
    %17 = arith.maximumf %15, %16 : vector<1x8xf32>
    %18 = vector.broadcast %17 : vector<1x8xf32> to vector<32x8xf32>
    %19 = arith.mulf %1, %18 : vector<32x8xf32>
    %cst_14 = arith.constant dense<0.000000e+00> : vector<32xf32>
    %20 = vector.multi_reduction <add>, %19, %cst_14 [1] : vector<32x8xf32> to vector<32xf32>
    %21 = vector.shape_cast %20 : vector<32xf32> to vector<32x1xf32>
    %22 = arith.addf %21, %21 : vector<32x1xf32>
    %23 = arith.negf %22 : vector<32x1xf32>
    %24 = math.exp %23 : vector<32x1xf32>
    %cst_15 = arith.constant 1.000000e+00 : f32
    %25 = vector.broadcast %cst_15 : f32 to vector<32x1xf32>
    %26 = arith.addf %25, %24 : vector<32x1xf32>
    %27 = arith.divf %25, %26 : vector<32x1xf32>
    %28 = vector.broadcast %27 : vector<32x1xf32> to vector<32x256xf32>
    %29 = arith.mulf %7, %28 : vector<32x256xf32>
    %cst_16 = arith.constant dense<0.000000e+00> : vector<256xf32>
    %30 = vector.multi_reduction <add>, %29, %cst_16 [0] : vector<32x256xf32> to vector<256xf32>
    %31 = vector.shape_cast %30 : vector<256xf32> to vector<1x256xf32>
    %cst_17 = arith.constant 3.200000e+01 : f32
    %32 = vector.broadcast %cst_17 : f32 to vector<1x256xf32>
    %33 = arith.divf %31, %32 : vector<1x256xf32>
    %c0_18 = arith.constant 0 : index
    %c128 = arith.constant 128 : index
    %34 = vector.load %arg7[%c0_18, %c128] : memref<16x512xf32, #tpu.memory_space<vmem>>, vector<1x256xf32>
    tpu.vector_store %arg7[%c0_18, %c128], %33 {strides = array<i32>} : memref<16x512xf32, #tpu.memory_space<vmem>>, vector<1x256xf32>,
    %cst_19 = arith.constant dense<0xFF800000> : vector<256xf32>
    %35 = vector.multi_reduction <maximumf>, %29, %cst_19 [0] : vector<32x256xf32> to vector<256xf32>
    %36 = vector.shape_cast %35 : vector<256xf32> to vector<1x256xf32>
    %c8 = arith.constant 8 : index
    %c128_20 = arith.constant 128 : index
    %37 = vector.load %arg7[%c8, %c128_20] : memref<16x512xf32, #tpu.memory_space<vmem>>, vector<1x256xf32>
    tpu.vector_store %arg7[%c8, %c128_20], %36 {strides = array<i32>} : memref<16x512xf32, #tpu.memory_space<vmem>>, vector<1x256xf32>,
    %c1 = arith.constant 1 : index
    %c0_21 = arith.constant 0 : index
    %c0_22 = arith.constant 0 : index
    %38 = vector.load %arg1[%c1, %c0_21, %c0_22] : memref<8x32x256xf32, #tpu.memory_space<vmem>>, vector<1x32x256xf32>
    %39 = vector.shape_cast %38 : vector<1x32x256xf32> to vector<32x256xf32>
    %cst_23 = arith.constant dense<0.000000e+00> : vector<32xf32>
    %40 = vector.multi_reduction <add>, %39, %cst_23 [1] : vector<32x256xf32> to vector<32xf32>
    %41 = vector.shape_cast %40 : vector<32xf32> to vector<32x1xf32>
    %cst_24 = arith.constant 2.560000e+02 : f32
    %42 = vector.broadcast %cst_24 : f32 to vector<32x1xf32>
    %43 = arith.divf %41, %42 : vector<32x1xf32>
    %44 = vector.broadcast %43 : vector<32x1xf32> to vector<32x8xf32>
    %45 = arith.mulf %0, %44 : vector<32x8xf32>
    %cst_25 = arith.constant dense<0.000000e+00> : vector<8xf32>
    %46 = vector.multi_reduction <add>, %45, %cst_25 [0] : vector<32x8xf32> to vector<8xf32>
    %47 = vector.shape_cast %46 : vector<8xf32> to vector<1x8xf32>
    %cst_26 = arith.constant 0.000000e+00 : f32
    %48 = vector.broadcast %cst_26 : f32 to vector<1x8xf32>
    %49 = arith.maximumf %47, %48 : vector<1x8xf32>
    %50 = vector.broadcast %49 : vector<1x8xf32> to vector<32x8xf32>
    %51 = arith.mulf %1, %50 : vector<32x8xf32>
    %cst_27 = arith.constant dense<0.000000e+00> : vector<32xf32>
    %52 = vector.multi_reduction <add>, %51, %cst_27 [1] : vector<32x8xf32> to vector<32xf32>
    %53 = vector.shape_cast %52 : vector<32xf32> to vector<32x1xf32>
    %54 = arith.addf %53, %53 : vector<32x1xf32>
    %55 = arith.negf %54 : vector<32x1xf32>
    %56 = math.exp %55 : vector<32x1xf32>
    %cst_28 = arith.constant 1.000000e+00 : f32
    %57 = vector.broadcast %cst_28 : f32 to vector<32x1xf32>
    %58 = arith.addf %57, %56 : vector<32x1xf32>
    %59 = arith.divf %57, %58 : vector<32x1xf32>
    %60 = vector.broadcast %59 : vector<32x1xf32> to vector<32x256xf32>
    %61 = arith.mulf %39, %60 : vector<32x256xf32>
    %cst_29 = arith.constant dense<0.000000e+00> : vector<256xf32>
    %62 = vector.multi_reduction <add>, %61, %cst_29 [0] : vector<32x256xf32> to vector<256xf32>
    %63 = vector.shape_cast %62 : vector<256xf32> to vector<1x256xf32>
    %cst_30 = arith.constant 3.200000e+01 : f32
    %64 = vector.broadcast %cst_30 : f32 to vector<1x256xf32>
    %65 = arith.divf %63, %64 : vector<1x256xf32>
    %c1_31 = arith.constant 1 : index
    %c128_32 = arith.constant 128 : index
    %66 = vector.load %arg7[%c1_31, %c128_32] : memref<16x512xf32, #tpu.memory_space<vmem>>, vector<1x256xf32>
    tpu.vector_store %arg7[%c1_31, %c128_32], %65 {strides = array<i32>} : memref<16x512xf32, #tpu.memory_space<vmem>>, vector<1x256xf32>,
    %cst_33 = arith.constant dense<0xFF800000> : vector<256xf32>
    %67 = vector.multi_reduction <maximumf>, %61, %cst_33 [0] : vector<32x256xf32> to vector<256xf32>
    %68 = vector.shape_cast %67 : vector<256xf32> to vector<1x256xf32>
    %c9 = arith.constant 9 : index
    %c128_34 = arith.constant 128 : index
    %69 = vector.load %arg7[%c9, %c128_34] : memref<16x512xf32, #tpu.memory_space<vmem>>, vector<1x256xf32>
    tpu.vector_store %arg7[%c9, %c128_34], %68 {strides = array<i32>} : memref<16x512xf32, #tpu.memory_space<vmem>>, vector<1x256xf32>,
    %c2 = arith.constant 2 : index
    %c0_35 = arith.constant 0 : index
    %c0_36 = arith.constant 0 : index
    %70 = vector.load %arg1[%c2, %c0_35, %c0_36] : memref<8x32x256xf32, #tpu.memory_space<vmem>>, vector<1x32x256xf32>
    %71 = vector.shape_cast %70 : vector<1x32x256xf32> to vector<32x256xf32>
    %cst_37 = arith.constant dense<0.000000e+00> : vector<32xf32>
    %72 = vector.multi_reduction <add>, %71, %cst_37 [1] : vector<32x256xf32> to vector<32xf32>
    %73 = vector.shape_cast %72 : vector<32xf32> to vector<32x1xf32>
    %cst_38 = arith.constant 2.560000e+02 : f32
    %74 = vector.broadcast %cst_38 : f32 to vector<32x1xf32>
    %75 = arith.divf %73, %74 : vector<32x1xf32>
    %76 = vector.broadcast %75 : vector<32x1xf32> to vector<32x8xf32>
    %77 = arith.mulf %0, %76 : vector<32x8xf32>
    %cst_39 = arith.constant dense<0.000000e+00> : vector<8xf32>
    %78 = vector.multi_reduction <add>, %77, %cst_39 [0] : vector<32x8xf32> to vector<8xf32>
    %79 = vector.shape_cast %78 : vector<8xf32> to vector<1x8xf32>
    %cst_40 = arith.constant 0.000000e+00 : f32
    %80 = vector.broadcast %cst_40 : f32 to vector<1x8xf32>
    %81 = arith.maximumf %79, %80 : vector<1x8xf32>
    %82 = vector.broadcast %81 : vector<1x8xf32> to vector<32x8xf32>
    %83 = arith.mulf %1, %82 : vector<32x8xf32>
    %cst_41 = arith.constant dense<0.000000e+00> : vector<32xf32>
    %84 = vector.multi_reduction <add>, %83, %cst_41 [1] : vector<32x8xf32> to vector<32xf32>
    %85 = vector.shape_cast %84 : vector<32xf32> to vector<32x1xf32>
    %86 = arith.addf %85, %85 : vector<32x1xf32>
    %87 = arith.negf %86 : vector<32x1xf32>
    %88 = math.exp %87 : vector<32x1xf32>
    %cst_42 = arith.constant 1.000000e+00 : f32
    %89 = vector.broadcast %cst_42 : f32 to vector<32x1xf32>
    %90 = arith.addf %89, %88 : vector<32x1xf32>
    %91 = arith.divf %89, %90 : vector<32x1xf32>
    %92 = vector.broadcast %91 : vector<32x1xf32> to vector<32x256xf32>
    %93 = arith.mulf %71, %92 : vector<32x256xf32>
    %cst_43 = arith.constant dense<0.000000e+00> : vector<256xf32>
    %94 = vector.multi_reduction <add>, %93, %cst_43 [0] : vector<32x256xf32> to vector<256xf32>
    %95 = vector.shape_cast %94 : vector<256xf32> to vector<1x256xf32>
    %cst_44 = arith.constant 3.200000e+01 : f32
    %96 = vector.broadcast %cst_44 : f32 to vector<1x256xf32>
    %97 = arith.divf %95, %96 : vector<1x256xf32>
    %c2_45 = arith.constant 2 : index
    %c128_46 = arith.constant 128 : index
    %98 = vector.load %arg7[%c2_45, %c128_46] : memref<16x512xf32, #tpu.memory_space<vmem>>, vector<1x256xf32>
    tpu.vector_store %arg7[%c2_45, %c128_46], %97 {strides = array<i32>} : memref<16x512xf32, #tpu.memory_space<vmem>>, vector<1x256xf32>,
    %cst_47 = arith.constant dense<0xFF800000> : vector<256xf32>
    %99 = vector.multi_reduction <maximumf>, %93, %cst_47 [0] : vector<32x256xf32> to vector<256xf32>
    %100 = vector.shape_cast %99 : vector<256xf32> to vector<1x256xf32>
    %c10 = arith.constant 10 : index
    %c128_48 = arith.constant 128 : index
    %101 = vector.load %arg7[%c10, %c128_48] : memref<16x512xf32, #tpu.memory_space<vmem>>, vector<1x256xf32>
    tpu.vector_store %arg7[%c10, %c128_48], %100 {strides = array<i32>} : memref<16x512xf32, #tpu.memory_space<vmem>>, vector<1x256xf32>,
    %c3 = arith.constant 3 : index
    %c0_49 = arith.constant 0 : index
    %c0_50 = arith.constant 0 : index
    %102 = vector.load %arg1[%c3, %c0_49, %c0_50] : memref<8x32x256xf32, #tpu.memory_space<vmem>>, vector<1x32x256xf32>
    %103 = vector.shape_cast %102 : vector<1x32x256xf32> to vector<32x256xf32>
    %cst_51 = arith.constant dense<0.000000e+00> : vector<32xf32>
    %104 = vector.multi_reduction <add>, %103, %cst_51 [1] : vector<32x256xf32> to vector<32xf32>
    %105 = vector.shape_cast %104 : vector<32xf32> to vector<32x1xf32>
    %cst_52 = arith.constant 2.560000e+02 : f32
    %106 = vector.broadcast %cst_52 : f32 to vector<32x1xf32>
    %107 = arith.divf %105, %106 : vector<32x1xf32>
    %108 = vector.broadcast %107 : vector<32x1xf32> to vector<32x8xf32>
    %109 = arith.mulf %0, %108 : vector<32x8xf32>
    %cst_53 = arith.constant dense<0.000000e+00> : vector<8xf32>
    %110 = vector.multi_reduction <add>, %109, %cst_53 [0] : vector<32x8xf32> to vector<8xf32>
    %111 = vector.shape_cast %110 : vector<8xf32> to vector<1x8xf32>
    %cst_54 = arith.constant 0.000000e+00 : f32
    %112 = vector.broadcast %cst_54 : f32 to vector<1x8xf32>
    %113 = arith.maximumf %111, %112 : vector<1x8xf32>
    %114 = vector.broadcast %113 : vector<1x8xf32> to vector<32x8xf32>
    %115 = arith.mulf %1, %114 : vector<32x8xf32>
    %cst_55 = arith.constant dense<0.000000e+00> : vector<32xf32>
    %116 = vector.multi_reduction <add>, %115, %cst_55 [1] : vector<32x8xf32> to vector<32xf32>
    %117 = vector.shape_cast %116 : vector<32xf32> to vector<32x1xf32>
    %118 = arith.addf %117, %117 : vector<32x1xf32>
    %119 = arith.negf %118 : vector<32x1xf32>
    %120 = math.exp %119 : vector<32x1xf32>
    %cst_56 = arith.constant 1.000000e+00 : f32
    %121 = vector.broadcast %cst_56 : f32 to vector<32x1xf32>
    %122 = arith.addf %121, %120 : vector<32x1xf32>
    %123 = arith.divf %121, %122 : vector<32x1xf32>
    %124 = vector.broadcast %123 : vector<32x1xf32> to vector<32x256xf32>
    %125 = arith.mulf %103, %124 : vector<32x256xf32>
    %cst_57 = arith.constant dense<0.000000e+00> : vector<256xf32>
    %126 = vector.multi_reduction <add>, %125, %cst_57 [0] : vector<32x256xf32> to vector<256xf32>
    %127 = vector.shape_cast %126 : vector<256xf32> to vector<1x256xf32>
    %cst_58 = arith.constant 3.200000e+01 : f32
    %128 = vector.broadcast %cst_58 : f32 to vector<1x256xf32>
    %129 = arith.divf %127, %128 : vector<1x256xf32>
    %c3_59 = arith.constant 3 : index
    %c128_60 = arith.constant 128 : index
    %130 = vector.load %arg7[%c3_59, %c128_60] : memref<16x512xf32, #tpu.memory_space<vmem>>, vector<1x256xf32>
    tpu.vector_store %arg7[%c3_59, %c128_60], %129 {strides = array<i32>} : memref<16x512xf32, #tpu.memory_space<vmem>>, vector<1x256xf32>,
    %cst_61 = arith.constant dense<0xFF800000> : vector<256xf32>
    %131 = vector.multi_reduction <maximumf>, %125, %cst_61 [0] : vector<32x256xf32> to vector<256xf32>
    %132 = vector.shape_cast %131 : vector<256xf32> to vector<1x256xf32>
    %c11 = arith.constant 11 : index
    %c128_62 = arith.constant 128 : index
    %133 = vector.load %arg7[%c11, %c128_62] : memref<16x512xf32, #tpu.memory_space<vmem>>, vector<1x256xf32>
    tpu.vector_store %arg7[%c11, %c128_62], %132 {strides = array<i32>} : memref<16x512xf32, #tpu.memory_space<vmem>>, vector<1x256xf32>,
    %c4 = arith.constant 4 : index
    %c0_63 = arith.constant 0 : index
    %c0_64 = arith.constant 0 : index
    %134 = vector.load %arg1[%c4, %c0_63, %c0_64] : memref<8x32x256xf32, #tpu.memory_space<vmem>>, vector<1x32x256xf32>
    %135 = vector.shape_cast %134 : vector<1x32x256xf32> to vector<32x256xf32>
    %cst_65 = arith.constant dense<0.000000e+00> : vector<32xf32>
    %136 = vector.multi_reduction <add>, %135, %cst_65 [1] : vector<32x256xf32> to vector<32xf32>
    %137 = vector.shape_cast %136 : vector<32xf32> to vector<32x1xf32>
    %cst_66 = arith.constant 2.560000e+02 : f32
    %138 = vector.broadcast %cst_66 : f32 to vector<32x1xf32>
    %139 = arith.divf %137, %138 : vector<32x1xf32>
    %140 = vector.broadcast %139 : vector<32x1xf32> to vector<32x8xf32>
    %141 = arith.mulf %0, %140 : vector<32x8xf32>
    %cst_67 = arith.constant dense<0.000000e+00> : vector<8xf32>
    %142 = vector.multi_reduction <add>, %141, %cst_67 [0] : vector<32x8xf32> to vector<8xf32>
    %143 = vector.shape_cast %142 : vector<8xf32> to vector<1x8xf32>
    %cst_68 = arith.constant 0.000000e+00 : f32
    %144 = vector.broadcast %cst_68 : f32 to vector<1x8xf32>
    %145 = arith.maximumf %143, %144 : vector<1x8xf32>
    %146 = vector.broadcast %145 : vector<1x8xf32> to vector<32x8xf32>
    %147 = arith.mulf %1, %146 : vector<32x8xf32>
    %cst_69 = arith.constant dense<0.000000e+00> : vector<32xf32>
    %148 = vector.multi_reduction <add>, %147, %cst_69 [1] : vector<32x8xf32> to vector<32xf32>
    %149 = vector.shape_cast %148 : vector<32xf32> to vector<32x1xf32>
    %150 = arith.addf %149, %149 : vector<32x1xf32>
    %151 = arith.negf %150 : vector<32x1xf32>
    %152 = math.exp %151 : vector<32x1xf32>
    %cst_70 = arith.constant 1.000000e+00 : f32
    %153 = vector.broadcast %cst_70 : f32 to vector<32x1xf32>
    %154 = arith.addf %153, %152 : vector<32x1xf32>
    %155 = arith.divf %153, %154 : vector<32x1xf32>
    %156 = vector.broadcast %155 : vector<32x1xf32> to vector<32x256xf32>
    %157 = arith.mulf %135, %156 : vector<32x256xf32>
    %cst_71 = arith.constant dense<0.000000e+00> : vector<256xf32>
    %158 = vector.multi_reduction <add>, %157, %cst_71 [0] : vector<32x256xf32> to vector<256xf32>
    %159 = vector.shape_cast %158 : vector<256xf32> to vector<1x256xf32>
    %cst_72 = arith.constant 3.200000e+01 : f32
    %160 = vector.broadcast %cst_72 : f32 to vector<1x256xf32>
    %161 = arith.divf %159, %160 : vector<1x256xf32>
    %c4_73 = arith.constant 4 : index
    %c128_74 = arith.constant 128 : index
    %162 = vector.load %arg7[%c4_73, %c128_74] : memref<16x512xf32, #tpu.memory_space<vmem>>, vector<1x256xf32>
    tpu.vector_store %arg7[%c4_73, %c128_74], %161 {strides = array<i32>} : memref<16x512xf32, #tpu.memory_space<vmem>>, vector<1x256xf32>,
    %cst_75 = arith.constant dense<0xFF800000> : vector<256xf32>
    %163 = vector.multi_reduction <maximumf>, %157, %cst_75 [0] : vector<32x256xf32> to vector<256xf32>
    %164 = vector.shape_cast %163 : vector<256xf32> to vector<1x256xf32>
    %c12 = arith.constant 12 : index
    %c128_76 = arith.constant 128 : index
    %165 = vector.load %arg7[%c12, %c128_76] : memref<16x512xf32, #tpu.memory_space<vmem>>, vector<1x256xf32>
    tpu.vector_store %arg7[%c12, %c128_76], %164 {strides = array<i32>} : memref<16x512xf32, #tpu.memory_space<vmem>>, vector<1x256xf32>,
    %c5 = arith.constant 5 : index
    %c0_77 = arith.constant 0 : index
    %c0_78 = arith.constant 0 : index
    %166 = vector.load %arg1[%c5, %c0_77, %c0_78] : memref<8x32x256xf32, #tpu.memory_space<vmem>>, vector<1x32x256xf32>
    %167 = vector.shape_cast %166 : vector<1x32x256xf32> to vector<32x256xf32>
    %cst_79 = arith.constant dense<0.000000e+00> : vector<32xf32>
    %168 = vector.multi_reduction <add>, %167, %cst_79 [1] : vector<32x256xf32> to vector<32xf32>
    %169 = vector.shape_cast %168 : vector<32xf32> to vector<32x1xf32>
    %cst_80 = arith.constant 2.560000e+02 : f32
    %170 = vector.broadcast %cst_80 : f32 to vector<32x1xf32>
    %171 = arith.divf %169, %170 : vector<32x1xf32>
    %172 = vector.broadcast %171 : vector<32x1xf32> to vector<32x8xf32>
    %173 = arith.mulf %0, %172 : vector<32x8xf32>
    %cst_81 = arith.constant dense<0.000000e+00> : vector<8xf32>
    %174 = vector.multi_reduction <add>, %173, %cst_81 [0] : vector<32x8xf32> to vector<8xf32>
    %175 = vector.shape_cast %174 : vector<8xf32> to vector<1x8xf32>
    %cst_82 = arith.constant 0.000000e+00 : f32
    %176 = vector.broadcast %cst_82 : f32 to vector<1x8xf32>
    %177 = arith.maximumf %175, %176 : vector<1x8xf32>
    %178 = vector.broadcast %177 : vector<1x8xf32> to vector<32x8xf32>
    %179 = arith.mulf %1, %178 : vector<32x8xf32>
    %cst_83 = arith.constant dense<0.000000e+00> : vector<32xf32>
    %180 = vector.multi_reduction <add>, %179, %cst_83 [1] : vector<32x8xf32> to vector<32xf32>
    %181 = vector.shape_cast %180 : vector<32xf32> to vector<32x1xf32>
    %182 = arith.addf %181, %181 : vector<32x1xf32>
    %183 = arith.negf %182 : vector<32x1xf32>
    %184 = math.exp %183 : vector<32x1xf32>
    %cst_84 = arith.constant 1.000000e+00 : f32
    %185 = vector.broadcast %cst_84 : f32 to vector<32x1xf32>
    %186 = arith.addf %185, %184 : vector<32x1xf32>
    %187 = arith.divf %185, %186 : vector<32x1xf32>
    %188 = vector.broadcast %187 : vector<32x1xf32> to vector<32x256xf32>
    %189 = arith.mulf %167, %188 : vector<32x256xf32>
    %cst_85 = arith.constant dense<0.000000e+00> : vector<256xf32>
    %190 = vector.multi_reduction <add>, %189, %cst_85 [0] : vector<32x256xf32> to vector<256xf32>
    %191 = vector.shape_cast %190 : vector<256xf32> to vector<1x256xf32>
    %cst_86 = arith.constant 3.200000e+01 : f32
    %192 = vector.broadcast %cst_86 : f32 to vector<1x256xf32>
    %193 = arith.divf %191, %192 : vector<1x256xf32>
    %c5_87 = arith.constant 5 : index
    %c128_88 = arith.constant 128 : index
    %194 = vector.load %arg7[%c5_87, %c128_88] : memref<16x512xf32, #tpu.memory_space<vmem>>, vector<1x256xf32>
    tpu.vector_store %arg7[%c5_87, %c128_88], %193 {strides = array<i32>} : memref<16x512xf32, #tpu.memory_space<vmem>>, vector<1x256xf32>,
    %cst_89 = arith.constant dense<0xFF800000> : vector<256xf32>
    %195 = vector.multi_reduction <maximumf>, %189, %cst_89 [0] : vector<32x256xf32> to vector<256xf32>
    %196 = vector.shape_cast %195 : vector<256xf32> to vector<1x256xf32>
    %c13 = arith.constant 13 : index
    %c128_90 = arith.constant 128 : index
    %197 = vector.load %arg7[%c13, %c128_90] : memref<16x512xf32, #tpu.memory_space<vmem>>, vector<1x256xf32>
    tpu.vector_store %arg7[%c13, %c128_90], %196 {strides = array<i32>} : memref<16x512xf32, #tpu.memory_space<vmem>>, vector<1x256xf32>,
    %c6 = arith.constant 6 : index
    %c0_91 = arith.constant 0 : index
    %c0_92 = arith.constant 0 : index
    %198 = vector.load %arg1[%c6, %c0_91, %c0_92] : memref<8x32x256xf32, #tpu.memory_space<vmem>>, vector<1x32x256xf32>
    %199 = vector.shape_cast %198 : vector<1x32x256xf32> to vector<32x256xf32>
    %cst_93 = arith.constant dense<0.000000e+00> : vector<32xf32>
    %200 = vector.multi_reduction <add>, %199, %cst_93 [1] : vector<32x256xf32> to vector<32xf32>
    %201 = vector.shape_cast %200 : vector<32xf32> to vector<32x1xf32>
    %cst_94 = arith.constant 2.560000e+02 : f32
    %202 = vector.broadcast %cst_94 : f32 to vector<32x1xf32>
    %203 = arith.divf %201, %202 : vector<32x1xf32>
    %204 = vector.broadcast %203 : vector<32x1xf32> to vector<32x8xf32>
    %205 = arith.mulf %0, %204 : vector<32x8xf32>
    %cst_95 = arith.constant dense<0.000000e+00> : vector<8xf32>
    %206 = vector.multi_reduction <add>, %205, %cst_95 [0] : vector<32x8xf32> to vector<8xf32>
    %207 = vector.shape_cast %206 : vector<8xf32> to vector<1x8xf32>
    %cst_96 = arith.constant 0.000000e+00 : f32
    %208 = vector.broadcast %cst_96 : f32 to vector<1x8xf32>
    %209 = arith.maximumf %207, %208 : vector<1x8xf32>
    %210 = vector.broadcast %209 : vector<1x8xf32> to vector<32x8xf32>
    %211 = arith.mulf %1, %210 : vector<32x8xf32>
    %cst_97 = arith.constant dense<0.000000e+00> : vector<32xf32>
    %212 = vector.multi_reduction <add>, %211, %cst_97 [1] : vector<32x8xf32> to vector<32xf32>
    %213 = vector.shape_cast %212 : vector<32xf32> to vector<32x1xf32>
    %214 = arith.addf %213, %213 : vector<32x1xf32>
    %215 = arith.negf %214 : vector<32x1xf32>
    %216 = math.exp %215 : vector<32x1xf32>
    %cst_98 = arith.constant 1.000000e+00 : f32
    %217 = vector.broadcast %cst_98 : f32 to vector<32x1xf32>
    %218 = arith.addf %217, %216 : vector<32x1xf32>
    %219 = arith.divf %217, %218 : vector<32x1xf32>
    %220 = vector.broadcast %219 : vector<32x1xf32> to vector<32x256xf32>
    %221 = arith.mulf %199, %220 : vector<32x256xf32>
    %cst_99 = arith.constant dense<0.000000e+00> : vector<256xf32>
    %222 = vector.multi_reduction <add>, %221, %cst_99 [0] : vector<32x256xf32> to vector<256xf32>
    %223 = vector.shape_cast %222 : vector<256xf32> to vector<1x256xf32>
    %cst_100 = arith.constant 3.200000e+01 : f32
    %224 = vector.broadcast %cst_100 : f32 to vector<1x256xf32>
    %225 = arith.divf %223, %224 : vector<1x256xf32>
    %c6_101 = arith.constant 6 : index
    %c128_102 = arith.constant 128 : index
    %226 = vector.load %arg7[%c6_101, %c128_102] : memref<16x512xf32, #tpu.memory_space<vmem>>, vector<1x256xf32>
    tpu.vector_store %arg7[%c6_101, %c128_102], %225 {strides = array<i32>} : memref<16x512xf32, #tpu.memory_space<vmem>>, vector<1x256xf32>,
    %cst_103 = arith.constant dense<0xFF800000> : vector<256xf32>
    %227 = vector.multi_reduction <maximumf>, %221, %cst_103 [0] : vector<32x256xf32> to vector<256xf32>
    %228 = vector.shape_cast %227 : vector<256xf32> to vector<1x256xf32>
    %c14 = arith.constant 14 : index
    %c128_104 = arith.constant 128 : index
    %229 = vector.load %arg7[%c14, %c128_104] : memref<16x512xf32, #tpu.memory_space<vmem>>, vector<1x256xf32>
    tpu.vector_store %arg7[%c14, %c128_104], %228 {strides = array<i32>} : memref<16x512xf32, #tpu.memory_space<vmem>>, vector<1x256xf32>,
    %c7 = arith.constant 7 : index
    %c0_105 = arith.constant 0 : index
    %c0_106 = arith.constant 0 : index
    %230 = vector.load %arg1[%c7, %c0_105, %c0_106] : memref<8x32x256xf32, #tpu.memory_space<vmem>>, vector<1x32x256xf32>
    %231 = vector.shape_cast %230 : vector<1x32x256xf32> to vector<32x256xf32>
    %cst_107 = arith.constant dense<0.000000e+00> : vector<32xf32>
    %232 = vector.multi_reduction <add>, %231, %cst_107 [1] : vector<32x256xf32> to vector<32xf32>
    %233 = vector.shape_cast %232 : vector<32xf32> to vector<32x1xf32>
    %cst_108 = arith.constant 2.560000e+02 : f32
    %234 = vector.broadcast %cst_108 : f32 to vector<32x1xf32>
    %235 = arith.divf %233, %234 : vector<32x1xf32>
    %236 = vector.broadcast %235 : vector<32x1xf32> to vector<32x8xf32>
    %237 = arith.mulf %0, %236 : vector<32x8xf32>
    %cst_109 = arith.constant dense<0.000000e+00> : vector<8xf32>
    %238 = vector.multi_reduction <add>, %237, %cst_109 [0] : vector<32x8xf32> to vector<8xf32>
    %239 = vector.shape_cast %238 : vector<8xf32> to vector<1x8xf32>
    %cst_110 = arith.constant 0.000000e+00 : f32
    %240 = vector.broadcast %cst_110 : f32 to vector<1x8xf32>
    %241 = arith.maximumf %239, %240 : vector<1x8xf32>
    %242 = vector.broadcast %241 : vector<1x8xf32> to vector<32x8xf32>
    %243 = arith.mulf %1, %242 : vector<32x8xf32>
    %cst_111 = arith.constant dense<0.000000e+00> : vector<32xf32>
    %244 = vector.multi_reduction <add>, %243, %cst_111 [1] : vector<32x8xf32> to vector<32xf32>
    %245 = vector.shape_cast %244 : vector<32xf32> to vector<32x1xf32>
    %246 = arith.addf %245, %245 : vector<32x1xf32>
    %247 = arith.negf %246 : vector<32x1xf32>
    %248 = math.exp %247 : vector<32x1xf32>
    %cst_112 = arith.constant 1.000000e+00 : f32
    %249 = vector.broadcast %cst_112 : f32 to vector<32x1xf32>
    %250 = arith.addf %249, %248 : vector<32x1xf32>
    %251 = arith.divf %249, %250 : vector<32x1xf32>
    %252 = vector.broadcast %251 : vector<32x1xf32> to vector<32x256xf32>
    %253 = arith.mulf %231, %252 : vector<32x256xf32>
    %cst_113 = arith.constant dense<0.000000e+00> : vector<256xf32>
    %254 = vector.multi_reduction <add>, %253, %cst_113 [0] : vector<32x256xf32> to vector<256xf32>
    %255 = vector.shape_cast %254 : vector<256xf32> to vector<1x256xf32>
    %cst_114 = arith.constant 3.200000e+01 : f32
    %256 = vector.broadcast %cst_114 : f32 to vector<1x256xf32>
    %257 = arith.divf %255, %256 : vector<1x256xf32>
    %c7_115 = arith.constant 7 : index
    %c128_116 = arith.constant 128 : index
    %258 = vector.load %arg7[%c7_115, %c128_116] : memref<16x512xf32, #tpu.memory_space<vmem>>, vector<1x256xf32>
    tpu.vector_store %arg7[%c7_115, %c128_116], %257 {strides = array<i32>} : memref<16x512xf32, #tpu.memory_space<vmem>>, vector<1x256xf32>,
    %cst_117 = arith.constant dense<0xFF800000> : vector<256xf32>
    %259 = vector.multi_reduction <maximumf>, %253, %cst_117 [0] : vector<32x256xf32> to vector<256xf32>
    %260 = vector.shape_cast %259 : vector<256xf32> to vector<1x256xf32>
    %c15 = arith.constant 15 : index
    %c128_118 = arith.constant 128 : index
    %261 = vector.load %arg7[%c15, %c128_118] : memref<16x512xf32, #tpu.memory_space<vmem>>, vector<1x256xf32>
    tpu.vector_store %arg7[%c15, %c128_118], %260 {strides = array<i32>} : memref<16x512xf32, #tpu.memory_space<vmem>>, vector<1x256xf32>,
    %cst_119 = arith.constant 0.000000e+00 : f32
    %262 = vector.broadcast %cst_119 : f32 to vector<16x256xf32>
    %cst_120 = arith.constant 0.000000e+00 : f32
    %263 = vector.broadcast %cst_120 : f32 to vector<16x256xf32>
    %c0_121 = arith.constant 0 : index
    %c0_122 = arith.constant 0 : index
    %264 = vector.load %arg5[%c0_121, %c0_122] : memref<16x49xf32, #tpu.memory_space<vmem>>, vector<16x1xf32>
    %c0_123 = arith.constant 0 : index
    %c77 = arith.constant 77 : index
    %265 = vector.load %arg7[%c0_123, %c77] : memref<16x512xf32, #tpu.memory_space<vmem>>, vector<16x256xf32>
    %266 = vector.broadcast %264 : vector<16x1xf32> to vector<16x256xf32>
    %267 = arith.mulf %266, %265 : vector<16x256xf32>
    %268 = arith.addf %263, %267 : vector<16x256xf32>
    %c0_124 = arith.constant 0 : index
    %c7_125 = arith.constant 7 : index
    %269 = vector.load %arg5[%c0_124, %c7_125] : memref<16x49xf32, #tpu.memory_space<vmem>>, vector<16x1xf32>
    %c0_126 = arith.constant 0 : index
    %c93 = arith.constant 93 : index
    %270 = vector.load %arg7[%c0_126, %c93] : memref<16x512xf32, #tpu.memory_space<vmem>>, vector<16x256xf32>
    %271 = vector.broadcast %269 : vector<16x1xf32> to vector<16x256xf32>
    %272 = arith.mulf %271, %270 : vector<16x256xf32>
    %273 = arith.addf %268, %272 : vector<16x256xf32>
    %c0_127 = arith.constant 0 : index
    %c14_128 = arith.constant 14 : index
    %274 = vector.load %arg5[%c0_127, %c14_128] : memref<16x49xf32, #tpu.memory_space<vmem>>, vector<16x1xf32>
    %c0_129 = arith.constant 0 : index
    %c109 = arith.constant 109 : index
    %275 = vector.load %arg7[%c0_129, %c109] : memref<16x512xf32, #tpu.memory_space<vmem>>, vector<16x256xf32>
    %276 = vector.broadcast %274 : vector<16x1xf32> to vector<16x256xf32>
    %277 = arith.mulf %276, %275 : vector<16x256xf32>
    %278 = arith.addf %273, %277 : vector<16x256xf32>
    %c0_130 = arith.constant 0 : index
    %c21 = arith.constant 21 : index
    %279 = vector.load %arg5[%c0_130, %c21] : memref<16x49xf32, #tpu.memory_space<vmem>>, vector<16x1xf32>
    %c0_131 = arith.constant 0 : index
    %c125 = arith.constant 125 : index
    %280 = vector.load %arg7[%c0_131, %c125] : memref<16x512xf32, #tpu.memory_space<vmem>>, vector<16x256xf32>
    %281 = vector.broadcast %279 : vector<16x1xf32> to vector<16x256xf32>
    %282 = arith.mulf %281, %280 : vector<16x256xf32>
    %283 = arith.addf %278, %282 : vector<16x256xf32>
    %c0_132 = arith.constant 0 : index
    %c28 = arith.constant 28 : index
    %284 = vector.load %arg5[%c0_132, %c28] : memref<16x49xf32, #tpu.memory_space<vmem>>, vector<16x1xf32>
    %c0_133 = arith.constant 0 : index
    %c141 = arith.constant 141 : index
    %285 = vector.load %arg7[%c0_133, %c141] : memref<16x512xf32, #tpu.memory_space<vmem>>, vector<16x256xf32>
    %286 = vector.broadcast %284 : vector<16x1xf32> to vector<16x256xf32>
    %287 = arith.mulf %286, %285 : vector<16x256xf32>
    %288 = arith.addf %283, %287 : vector<16x256xf32>
    %c0_134 = arith.constant 0 : index
    %c35 = arith.constant 35 : index
    %289 = vector.load %arg5[%c0_134, %c35] : memref<16x49xf32, #tpu.memory_space<vmem>>, vector<16x1xf32>
    %c0_135 = arith.constant 0 : index
    %c157 = arith.constant 157 : index
    %290 = vector.load %arg7[%c0_135, %c157] : memref<16x512xf32, #tpu.memory_space<vmem>>, vector<16x256xf32>
    %291 = vector.broadcast %289 : vector<16x1xf32> to vector<16x256xf32>
    %292 = arith.mulf %291, %290 : vector<16x256xf32>
    %293 = arith.addf %288, %292 : vector<16x256xf32>
    %c0_136 = arith.constant 0 : index
    %c42 = arith.constant 42 : index
    %294 = vector.load %arg5[%c0_136, %c42] : memref<16x49xf32, #tpu.memory_space<vmem>>, vector<16x1xf32>
    %c0_137 = arith.constant 0 : index
    %c173 = arith.constant 173 : index
    %295 = vector.load %arg7[%c0_137, %c173] : memref<16x512xf32, #tpu.memory_space<vmem>>, vector<16x256xf32>
    %296 = vector.broadcast %294 : vector<16x1xf32> to vector<16x256xf32>
    %297 = arith.mulf %296, %295 : vector<16x256xf32>
    %298 = arith.addf %293, %297 : vector<16x256xf32>
    %c0_138 = arith.constant 0 : index
    %c0_139 = arith.constant 0 : index
    %299 = vector.load %arg4[%c0_138, %c0_139] : memref<7x256xf32, #tpu.memory_space<vmem>>, vector<1x256xf32>
    %300 = vector.broadcast %299 : vector<1x256xf32> to vector<16x256xf32>
    %301 = arith.mulf %300, %298 : vector<16x256xf32>
    %302 = arith.addf %262, %301 : vector<16x256xf32>
    %cst_140 = arith.constant 0.000000e+00 : f32
    %303 = vector.broadcast %cst_140 : f32 to vector<16x256xf32>
    %c0_141 = arith.constant 0 : index
    %c1_142 = arith.constant 1 : index
    %304 = vector.load %arg5[%c0_141, %c1_142] : memref<16x49xf32, #tpu.memory_space<vmem>>, vector<16x1xf32>
    %c0_143 = arith.constant 0 : index
    %c78 = arith.constant 78 : index
    %305 = vector.load %arg7[%c0_143, %c78] : memref<16x512xf32, #tpu.memory_space<vmem>>, vector<16x256xf32>
    %306 = vector.broadcast %304 : vector<16x1xf32> to vector<16x256xf32>
    %307 = arith.mulf %306, %305 : vector<16x256xf32>
    %308 = arith.addf %303, %307 : vector<16x256xf32>
    %c0_144 = arith.constant 0 : index
    %c8_145 = arith.constant 8 : index
    %309 = vector.load %arg5[%c0_144, %c8_145] : memref<16x49xf32, #tpu.memory_space<vmem>>, vector<16x1xf32>
    %c0_146 = arith.constant 0 : index
    %c94 = arith.constant 94 : index
    %310 = vector.load %arg7[%c0_146, %c94] : memref<16x512xf32, #tpu.memory_space<vmem>>, vector<16x256xf32>
    %311 = vector.broadcast %309 : vector<16x1xf32> to vector<16x256xf32>
    %312 = arith.mulf %311, %310 : vector<16x256xf32>
    %313 = arith.addf %308, %312 : vector<16x256xf32>
    %c0_147 = arith.constant 0 : index
    %c15_148 = arith.constant 15 : index
    %314 = vector.load %arg5[%c0_147, %c15_148] : memref<16x49xf32, #tpu.memory_space<vmem>>, vector<16x1xf32>
    %c0_149 = arith.constant 0 : index
    %c110 = arith.constant 110 : index
    %315 = vector.load %arg7[%c0_149, %c110] : memref<16x512xf32, #tpu.memory_space<vmem>>, vector<16x256xf32>
    %316 = vector.broadcast %314 : vector<16x1xf32> to vector<16x256xf32>
    %317 = arith.mulf %316, %315 : vector<16x256xf32>
    %318 = arith.addf %313, %317 : vector<16x256xf32>
    %c0_150 = arith.constant 0 : index
    %c22 = arith.constant 22 : index
    %319 = vector.load %arg5[%c0_150, %c22] : memref<16x49xf32, #tpu.memory_space<vmem>>, vector<16x1xf32>
    %c0_151 = arith.constant 0 : index
    %c126 = arith.constant 126 : index
    %320 = vector.load %arg7[%c0_151, %c126] : memref<16x512xf32, #tpu.memory_space<vmem>>, vector<16x256xf32>
    %321 = vector.broadcast %319 : vector<16x1xf32> to vector<16x256xf32>
    %322 = arith.mulf %321, %320 : vector<16x256xf32>
    %323 = arith.addf %318, %322 : vector<16x256xf32>
    %c0_152 = arith.constant 0 : index
    %c29 = arith.constant 29 : index
    %324 = vector.load %arg5[%c0_152, %c29] : memref<16x49xf32, #tpu.memory_space<vmem>>, vector<16x1xf32>
    %c0_153 = arith.constant 0 : index
    %c142 = arith.constant 142 : index
    %325 = vector.load %arg7[%c0_153, %c142] : memref<16x512xf32, #tpu.memory_space<vmem>>, vector<16x256xf32>
    %326 = vector.broadcast %324 : vector<16x1xf32> to vector<16x256xf32>
    %327 = arith.mulf %326, %325 : vector<16x256xf32>
    %328 = arith.addf %323, %327 : vector<16x256xf32>
    %c0_154 = arith.constant 0 : index
    %c36 = arith.constant 36 : index
    %329 = vector.load %arg5[%c0_154, %c36] : memref<16x49xf32, #tpu.memory_space<vmem>>, vector<16x1xf32>
    %c0_155 = arith.constant 0 : index
    %c158 = arith.constant 158 : index
    %330 = vector.load %arg7[%c0_155, %c158] : memref<16x512xf32, #tpu.memory_space<vmem>>, vector<16x256xf32>
    %331 = vector.broadcast %329 : vector<16x1xf32> to vector<16x256xf32>
    %332 = arith.mulf %331, %330 : vector<16x256xf32>
    %333 = arith.addf %328, %332 : vector<16x256xf32>
    %c0_156 = arith.constant 0 : index
    %c43 = arith.constant 43 : index
    %334 = vector.load %arg5[%c0_156, %c43] : memref<16x49xf32, #tpu.memory_space<vmem>>, vector<16x1xf32>
    %c0_157 = arith.constant 0 : index
    %c174 = arith.constant 174 : index
    %335 = vector.load %arg7[%c0_157, %c174] : memref<16x512xf32, #tpu.memory_space<vmem>>, vector<16x256xf32>
    %336 = vector.broadcast %334 : vector<16x1xf32> to vector<16x256xf32>
    %337 = arith.mulf %336, %335 : vector<16x256xf32>
    %338 = arith.addf %333, %337 : vector<16x256xf32>
    %c1_158 = arith.constant 1 : index
    %c0_159 = arith.constant 0 : index
    %339 = vector.load %arg4[%c1_158, %c0_159] : memref<7x256xf32, #tpu.memory_space<vmem>>, vector<1x256xf32>
    %340 = vector.broadcast %339 : vector<1x256xf32> to vector<16x256xf32>
    %341 = arith.mulf %340, %338 : vector<16x256xf32>
    %342 = arith.addf %302, %341 : vector<16x256xf32>
    %cst_160 = arith.constant 0.000000e+00 : f32
    %343 = vector.broadcast %cst_160 : f32 to vector<16x256xf32>
    %c0_161 = arith.constant 0 : index
    %c2_162 = arith.constant 2 : index
    %344 = vector.load %arg5[%c0_161, %c2_162] : memref<16x49xf32, #tpu.memory_space<vmem>>, vector<16x1xf32>
    %c0_163 = arith.constant 0 : index
    %c79 = arith.constant 79 : index
    %345 = vector.load %arg7[%c0_163, %c79] : memref<16x512xf32, #tpu.memory_space<vmem>>, vector<16x256xf32>
    %346 = vector.broadcast %344 : vector<16x1xf32> to vector<16x256xf32>
    %347 = arith.mulf %346, %345 : vector<16x256xf32>
    %348 = arith.addf %343, %347 : vector<16x256xf32>
    %c0_164 = arith.constant 0 : index
    %c9_165 = arith.constant 9 : index
    %349 = vector.load %arg5[%c0_164, %c9_165] : memref<16x49xf32, #tpu.memory_space<vmem>>, vector<16x1xf32>
    %c0_166 = arith.constant 0 : index
    %c95 = arith.constant 95 : index
    %350 = vector.load %arg7[%c0_166, %c95] : memref<16x512xf32, #tpu.memory_space<vmem>>, vector<16x256xf32>
    %351 = vector.broadcast %349 : vector<16x1xf32> to vector<16x256xf32>
    %352 = arith.mulf %351, %350 : vector<16x256xf32>
    %353 = arith.addf %348, %352 : vector<16x256xf32>
    %c0_167 = arith.constant 0 : index
    %c16 = arith.constant 16 : index
    %354 = vector.load %arg5[%c0_167, %c16] : memref<16x49xf32, #tpu.memory_space<vmem>>, vector<16x1xf32>
    %c0_168 = arith.constant 0 : index
    %c111 = arith.constant 111 : index
    %355 = vector.load %arg7[%c0_168, %c111] : memref<16x512xf32, #tpu.memory_space<vmem>>, vector<16x256xf32>
    %356 = vector.broadcast %354 : vector<16x1xf32> to vector<16x256xf32>
    %357 = arith.mulf %356, %355 : vector<16x256xf32>
    %358 = arith.addf %353, %357 : vector<16x256xf32>
    %c0_169 = arith.constant 0 : index
    %c23 = arith.constant 23 : index
    %359 = vector.load %arg5[%c0_169, %c23] : memref<16x49xf32, #tpu.memory_space<vmem>>, vector<16x1xf32>
    %c0_170 = arith.constant 0 : index
    %c127 = arith.constant 127 : index
    %360 = vector.load %arg7[%c0_170, %c127] : memref<16x512xf32, #tpu.memory_space<vmem>>, vector<16x256xf32>
    %361 = vector.broadcast %359 : vector<16x1xf32> to vector<16x256xf32>
    %362 = arith.mulf %361, %360 : vector<16x256xf32>
    %363 = arith.addf %358, %362 : vector<16x256xf32>
    %c0_171 = arith.constant 0 : index
    %c30 = arith.constant 30 : index
    %364 = vector.load %arg5[%c0_171, %c30] : memref<16x49xf32, #tpu.memory_space<vmem>>, vector<16x1xf32>
    %c0_172 = arith.constant 0 : index
    %c143 = arith.constant 143 : index
    %365 = vector.load %arg7[%c0_172, %c143] : memref<16x512xf32, #tpu.memory_space<vmem>>, vector<16x256xf32>
    %366 = vector.broadcast %364 : vector<16x1xf32> to vector<16x256xf32>
    %367 = arith.mulf %366, %365 : vector<16x256xf32>
    %368 = arith.addf %363, %367 : vector<16x256xf32>
    %c0_173 = arith.constant 0 : index
    %c37 = arith.constant 37 : index
    %369 = vector.load %arg5[%c0_173, %c37] : memref<16x49xf32, #tpu.memory_space<vmem>>, vector<16x1xf32>
    %c0_174 = arith.constant 0 : index
    %c159 = arith.constant 159 : index
    %370 = vector.load %arg7[%c0_174, %c159] : memref<16x512xf32, #tpu.memory_space<vmem>>, vector<16x256xf32>
    %371 = vector.broadcast %369 : vector<16x1xf32> to vector<16x256xf32>
    %372 = arith.mulf %371, %370 : vector<16x256xf32>
    %373 = arith.addf %368, %372 : vector<16x256xf32>
    %c0_175 = arith.constant 0 : index
    %c44 = arith.constant 44 : index
    %374 = vector.load %arg5[%c0_175, %c44] : memref<16x49xf32, #tpu.memory_space<vmem>>, vector<16x1xf32>
    %c0_176 = arith.constant 0 : index
    %c175 = arith.constant 175 : index
    %375 = vector.load %arg7[%c0_176, %c175] : memref<16x512xf32, #tpu.memory_space<vmem>>, vector<16x256xf32>
    %376 = vector.broadcast %374 : vector<16x1xf32> to vector<16x256xf32>
    %377 = arith.mulf %376, %375 : vector<16x256xf32>
    %378 = arith.addf %373, %377 : vector<16x256xf32>
    %c2_177 = arith.constant 2 : index
    %c0_178 = arith.constant 0 : index
    %379 = vector.load %arg4[%c2_177, %c0_178] : memref<7x256xf32, #tpu.memory_space<vmem>>, vector<1x256xf32>
    %380 = vector.broadcast %379 : vector<1x256xf32> to vector<16x256xf32>
    %381 = arith.mulf %380, %378 : vector<16x256xf32>
    %382 = arith.addf %342, %381 : vector<16x256xf32>
    %cst_179 = arith.constant 0.000000e+00 : f32
    %383 = vector.broadcast %cst_179 : f32 to vector<16x256xf32>
    %c0_180 = arith.constant 0 : index
    %c3_181 = arith.constant 3 : index
    %384 = vector.load %arg5[%c0_180, %c3_181] : memref<16x49xf32, #tpu.memory_space<vmem>>, vector<16x1xf32>
    %c0_182 = arith.constant 0 : index
    %c80 = arith.constant 80 : index
    %385 = vector.load %arg7[%c0_182, %c80] : memref<16x512xf32, #tpu.memory_space<vmem>>, vector<16x256xf32>
    %386 = vector.broadcast %384 : vector<16x1xf32> to vector<16x256xf32>
    %387 = arith.mulf %386, %385 : vector<16x256xf32>
    %388 = arith.addf %383, %387 : vector<16x256xf32>
    %c0_183 = arith.constant 0 : index
    %c10_184 = arith.constant 10 : index
    %389 = vector.load %arg5[%c0_183, %c10_184] : memref<16x49xf32, #tpu.memory_space<vmem>>, vector<16x1xf32>
    %c0_185 = arith.constant 0 : index
    %c96 = arith.constant 96 : index
    %390 = vector.load %arg7[%c0_185, %c96] : memref<16x512xf32, #tpu.memory_space<vmem>>, vector<16x256xf32>
    %391 = vector.broadcast %389 : vector<16x1xf32> to vector<16x256xf32>
    %392 = arith.mulf %391, %390 : vector<16x256xf32>
    %393 = arith.addf %388, %392 : vector<16x256xf32>
    %c0_186 = arith.constant 0 : index
    %c17 = arith.constant 17 : index
    %394 = vector.load %arg5[%c0_186, %c17] : memref<16x49xf32, #tpu.memory_space<vmem>>, vector<16x1xf32>
    %c0_187 = arith.constant 0 : index
    %c112 = arith.constant 112 : index
    %395 = vector.load %arg7[%c0_187, %c112] : memref<16x512xf32, #tpu.memory_space<vmem>>, vector<16x256xf32>
    %396 = vector.broadcast %394 : vector<16x1xf32> to vector<16x256xf32>
    %397 = arith.mulf %396, %395 : vector<16x256xf32>
    %398 = arith.addf %393, %397 : vector<16x256xf32>
    %c0_188 = arith.constant 0 : index
    %c24 = arith.constant 24 : index
    %399 = vector.load %arg5[%c0_188, %c24] : memref<16x49xf32, #tpu.memory_space<vmem>>, vector<16x1xf32>
    %c0_189 = arith.constant 0 : index
    %c128_190 = arith.constant 128 : index
    %400 = vector.load %arg7[%c0_189, %c128_190] : memref<16x512xf32, #tpu.memory_space<vmem>>, vector<16x256xf32>
    %401 = vector.broadcast %399 : vector<16x1xf32> to vector<16x256xf32>
    %402 = arith.mulf %401, %400 : vector<16x256xf32>
    %403 = arith.addf %398, %402 : vector<16x256xf32>
    %c0_191 = arith.constant 0 : index
    %c31 = arith.constant 31 : index
    %404 = vector.load %arg5[%c0_191, %c31] : memref<16x49xf32, #tpu.memory_space<vmem>>, vector<16x1xf32>
    %c0_192 = arith.constant 0 : index
    %c144 = arith.constant 144 : index
    %405 = vector.load %arg7[%c0_192, %c144] : memref<16x512xf32, #tpu.memory_space<vmem>>, vector<16x256xf32>
    %406 = vector.broadcast %404 : vector<16x1xf32> to vector<16x256xf32>
    %407 = arith.mulf %406, %405 : vector<16x256xf32>
    %408 = arith.addf %403, %407 : vector<16x256xf32>
    %c0_193 = arith.constant 0 : index
    %c38 = arith.constant 38 : index
    %409 = vector.load %arg5[%c0_193, %c38] : memref<16x49xf32, #tpu.memory_space<vmem>>, vector<16x1xf32>
    %c0_194 = arith.constant 0 : index
    %c160 = arith.constant 160 : index
    %410 = vector.load %arg7[%c0_194, %c160] : memref<16x512xf32, #tpu.memory_space<vmem>>, vector<16x256xf32>
    %411 = vector.broadcast %409 : vector<16x1xf32> to vector<16x256xf32>
    %412 = arith.mulf %411, %410 : vector<16x256xf32>
    %413 = arith.addf %408, %412 : vector<16x256xf32>
    %c0_195 = arith.constant 0 : index
    %c45 = arith.constant 45 : index
    %414 = vector.load %arg5[%c0_195, %c45] : memref<16x49xf32, #tpu.memory_space<vmem>>, vector<16x1xf32>
    %c0_196 = arith.constant 0 : index
    %c176 = arith.constant 176 : index
    %415 = vector.load %arg7[%c0_196, %c176] : memref<16x512xf32, #tpu.memory_space<vmem>>, vector<16x256xf32>
    %416 = vector.broadcast %414 : vector<16x1xf32> to vector<16x256xf32>
    %417 = arith.mulf %416, %415 : vector<16x256xf32>
    %418 = arith.addf %413, %417 : vector<16x256xf32>
    %c3_197 = arith.constant 3 : index
    %c0_198 = arith.constant 0 : index
    %419 = vector.load %arg4[%c3_197, %c0_198] : memref<7x256xf32, #tpu.memory_space<vmem>>, vector<1x256xf32>
    %420 = vector.broadcast %419 : vector<1x256xf32> to vector<16x256xf32>
    %421 = arith.mulf %420, %418 : vector<16x256xf32>
    %422 = arith.addf %382, %421 : vector<16x256xf32>
    %cst_199 = arith.constant 0.000000e+00 : f32
    %423 = vector.broadcast %cst_199 : f32 to vector<16x256xf32>
    %c0_200 = arith.constant 0 : index
    %c4_201 = arith.constant 4 : index
    %424 = vector.load %arg5[%c0_200, %c4_201] : memref<16x49xf32, #tpu.memory_space<vmem>>, vector<16x1xf32>
    %c0_202 = arith.constant 0 : index
    %c81 = arith.constant 81 : index
    %425 = vector.load %arg7[%c0_202, %c81] : memref<16x512xf32, #tpu.memory_space<vmem>>, vector<16x256xf32>
    %426 = vector.broadcast %424 : vector<16x1xf32> to vector<16x256xf32>
    %427 = arith.mulf %426, %425 : vector<16x256xf32>
    %428 = arith.addf %423, %427 : vector<16x256xf32>
    %c0_203 = arith.constant 0 : index
    %c11_204 = arith.constant 11 : index
    %429 = vector.load %arg5[%c0_203, %c11_204] : memref<16x49xf32, #tpu.memory_space<vmem>>, vector<16x1xf32>
    %c0_205 = arith.constant 0 : index
    %c97 = arith.constant 97 : index
    %430 = vector.load %arg7[%c0_205, %c97] : memref<16x512xf32, #tpu.memory_space<vmem>>, vector<16x256xf32>
    %431 = vector.broadcast %429 : vector<16x1xf32> to vector<16x256xf32>
    %432 = arith.mulf %431, %430 : vector<16x256xf32>
    %433 = arith.addf %428, %432 : vector<16x256xf32>
    %c0_206 = arith.constant 0 : index
    %c18 = arith.constant 18 : index
    %434 = vector.load %arg5[%c0_206, %c18] : memref<16x49xf32, #tpu.memory_space<vmem>>, vector<16x1xf32>
    %c0_207 = arith.constant 0 : index
    %c113 = arith.constant 113 : index
    %435 = vector.load %arg7[%c0_207, %c113] : memref<16x512xf32, #tpu.memory_space<vmem>>, vector<16x256xf32>
    %436 = vector.broadcast %434 : vector<16x1xf32> to vector<16x256xf32>
    %437 = arith.mulf %436, %435 : vector<16x256xf32>
    %438 = arith.addf %433, %437 : vector<16x256xf32>
    %c0_208 = arith.constant 0 : index
    %c25 = arith.constant 25 : index
    %439 = vector.load %arg5[%c0_208, %c25] : memref<16x49xf32, #tpu.memory_space<vmem>>, vector<16x1xf32>
    %c0_209 = arith.constant 0 : index
    %c129 = arith.constant 129 : index
    %440 = vector.load %arg7[%c0_209, %c129] : memref<16x512xf32, #tpu.memory_space<vmem>>, vector<16x256xf32>
    %441 = vector.broadcast %439 : vector<16x1xf32> to vector<16x256xf32>
    %442 = arith.mulf %441, %440 : vector<16x256xf32>
    %443 = arith.addf %438, %442 : vector<16x256xf32>
    %c0_210 = arith.constant 0 : index
    %c32 = arith.constant 32 : index
    %444 = vector.load %arg5[%c0_210, %c32] : memref<16x49xf32, #tpu.memory_space<vmem>>, vector<16x1xf32>
    %c0_211 = arith.constant 0 : index
    %c145 = arith.constant 145 : index
    %445 = vector.load %arg7[%c0_211, %c145] : memref<16x512xf32, #tpu.memory_space<vmem>>, vector<16x256xf32>
    %446 = vector.broadcast %444 : vector<16x1xf32> to vector<16x256xf32>
    %447 = arith.mulf %446, %445 : vector<16x256xf32>
    %448 = arith.addf %443, %447 : vector<16x256xf32>
    %c0_212 = arith.constant 0 : index
    %c39 = arith.constant 39 : index
    %449 = vector.load %arg5[%c0_212, %c39] : memref<16x49xf32, #tpu.memory_space<vmem>>, vector<16x1xf32>
    %c0_213 = arith.constant 0 : index
    %c161 = arith.constant 161 : index
    %450 = vector.load %arg7[%c0_213, %c161] : memref<16x512xf32, #tpu.memory_space<vmem>>, vector<16x256xf32>
    %451 = vector.broadcast %449 : vector<16x1xf32> to vector<16x256xf32>
    %452 = arith.mulf %451, %450 : vector<16x256xf32>
    %453 = arith.addf %448, %452 : vector<16x256xf32>
    %c0_214 = arith.constant 0 : index
    %c46 = arith.constant 46 : index
    %454 = vector.load %arg5[%c0_214, %c46] : memref<16x49xf32, #tpu.memory_space<vmem>>, vector<16x1xf32>
    %c0_215 = arith.constant 0 : index
    %c177 = arith.constant 177 : index
    %455 = vector.load %arg7[%c0_215, %c177] : memref<16x512xf32, #tpu.memory_space<vmem>>, vector<16x256xf32>
    %456 = vector.broadcast %454 : vector<16x1xf32> to vector<16x256xf32>
    %457 = arith.mulf %456, %455 : vector<16x256xf32>
    %458 = arith.addf %453, %457 : vector<16x256xf32>
    %c4_216 = arith.constant 4 : index
    %c0_217 = arith.constant 0 : index
    %459 = vector.load %arg4[%c4_216, %c0_217] : memref<7x256xf32, #tpu.memory_space<vmem>>, vector<1x256xf32>
    %460 = vector.broadcast %459 : vector<1x256xf32> to vector<16x256xf32>
    %461 = arith.mulf %460, %458 : vector<16x256xf32>
    %462 = arith.addf %422, %461 : vector<16x256xf32>
    %cst_218 = arith.constant 0.000000e+00 : f32
    %463 = vector.broadcast %cst_218 : f32 to vector<16x256xf32>
    %c0_219 = arith.constant 0 : index
    %c5_220 = arith.constant 5 : index
    %464 = vector.load %arg5[%c0_219, %c5_220] : memref<16x49xf32, #tpu.memory_space<vmem>>, vector<16x1xf32>
    %c0_221 = arith.constant 0 : index
    %c82 = arith.constant 82 : index
    %465 = vector.load %arg7[%c0_221, %c82] : memref<16x512xf32, #tpu.memory_space<vmem>>, vector<16x256xf32>
    %466 = vector.broadcast %464 : vector<16x1xf32> to vector<16x256xf32>
    %467 = arith.mulf %466, %465 : vector<16x256xf32>
    %468 = arith.addf %463, %467 : vector<16x256xf32>
    %c0_222 = arith.constant 0 : index
    %c12_223 = arith.constant 12 : index
    %469 = vector.load %arg5[%c0_222, %c12_223] : memref<16x49xf32, #tpu.memory_space<vmem>>, vector<16x1xf32>
    %c0_224 = arith.constant 0 : index
    %c98 = arith.constant 98 : index
    %470 = vector.load %arg7[%c0_224, %c98] : memref<16x512xf32, #tpu.memory_space<vmem>>, vector<16x256xf32>
    %471 = vector.broadcast %469 : vector<16x1xf32> to vector<16x256xf32>
    %472 = arith.mulf %471, %470 : vector<16x256xf32>
    %473 = arith.addf %468, %472 : vector<16x256xf32>
    %c0_225 = arith.constant 0 : index
    %c19 = arith.constant 19 : index
    %474 = vector.load %arg5[%c0_225, %c19] : memref<16x49xf32, #tpu.memory_space<vmem>>, vector<16x1xf32>
    %c0_226 = arith.constant 0 : index
    %c114 = arith.constant 114 : index
    %475 = vector.load %arg7[%c0_226, %c114] : memref<16x512xf32, #tpu.memory_space<vmem>>, vector<16x256xf32>
    %476 = vector.broadcast %474 : vector<16x1xf32> to vector<16x256xf32>
    %477 = arith.mulf %476, %475 : vector<16x256xf32>
    %478 = arith.addf %473, %477 : vector<16x256xf32>
    %c0_227 = arith.constant 0 : index
    %c26 = arith.constant 26 : index
    %479 = vector.load %arg5[%c0_227, %c26] : memref<16x49xf32, #tpu.memory_space<vmem>>, vector<16x1xf32>
    %c0_228 = arith.constant 0 : index
    %c130 = arith.constant 130 : index
    %480 = vector.load %arg7[%c0_228, %c130] : memref<16x512xf32, #tpu.memory_space<vmem>>, vector<16x256xf32>
    %481 = vector.broadcast %479 : vector<16x1xf32> to vector<16x256xf32>
    %482 = arith.mulf %481, %480 : vector<16x256xf32>
    %483 = arith.addf %478, %482 : vector<16x256xf32>
    %c0_229 = arith.constant 0 : index
    %c33 = arith.constant 33 : index
    %484 = vector.load %arg5[%c0_229, %c33] : memref<16x49xf32, #tpu.memory_space<vmem>>, vector<16x1xf32>
    %c0_230 = arith.constant 0 : index
    %c146 = arith.constant 146 : index
    %485 = vector.load %arg7[%c0_230, %c146] : memref<16x512xf32, #tpu.memory_space<vmem>>, vector<16x256xf32>
    %486 = vector.broadcast %484 : vector<16x1xf32> to vector<16x256xf32>
    %487 = arith.mulf %486, %485 : vector<16x256xf32>
    %488 = arith.addf %483, %487 : vector<16x256xf32>
    %c0_231 = arith.constant 0 : index
    %c40 = arith.constant 40 : index
    %489 = vector.load %arg5[%c0_231, %c40] : memref<16x49xf32, #tpu.memory_space<vmem>>, vector<16x1xf32>
    %c0_232 = arith.constant 0 : index
    %c162 = arith.constant 162 : index
    %490 = vector.load %arg7[%c0_232, %c162] : memref<16x512xf32, #tpu.memory_space<vmem>>, vector<16x256xf32>
    %491 = vector.broadcast %489 : vector<16x1xf32> to vector<16x256xf32>
    %492 = arith.mulf %491, %490 : vector<16x256xf32>
    %493 = arith.addf %488, %492 : vector<16x256xf32>
    %c0_233 = arith.constant 0 : index
    %c47 = arith.constant 47 : index
    %494 = vector.load %arg5[%c0_233, %c47] : memref<16x49xf32, #tpu.memory_space<vmem>>, vector<16x1xf32>
    %c0_234 = arith.constant 0 : index
    %c178 = arith.constant 178 : index
    %495 = vector.load %arg7[%c0_234, %c178] : memref<16x512xf32, #tpu.memory_space<vmem>>, vector<16x256xf32>
    %496 = vector.broadcast %494 : vector<16x1xf32> to vector<16x256xf32>
    %497 = arith.mulf %496, %495 : vector<16x256xf32>
    %498 = arith.addf %493, %497 : vector<16x256xf32>
    %c5_235 = arith.constant 5 : index
    %c0_236 = arith.constant 0 : index
    %499 = vector.load %arg4[%c5_235, %c0_236] : memref<7x256xf32, #tpu.memory_space<vmem>>, vector<1x256xf32>
    %500 = vector.broadcast %499 : vector<1x256xf32> to vector<16x256xf32>
    %501 = arith.mulf %500, %498 : vector<16x256xf32>
    %502 = arith.addf %462, %501 : vector<16x256xf32>
    %cst_237 = arith.constant 0.000000e+00 : f32
    %503 = vector.broadcast %cst_237 : f32 to vector<16x256xf32>
    %c0_238 = arith.constant 0 : index
    %c6_239 = arith.constant 6 : index
    %504 = vector.load %arg5[%c0_238, %c6_239] : memref<16x49xf32, #tpu.memory_space<vmem>>, vector<16x1xf32>
    %c0_240 = arith.constant 0 : index
    %c83 = arith.constant 83 : index
    %505 = vector.load %arg7[%c0_240, %c83] : memref<16x512xf32, #tpu.memory_space<vmem>>, vector<16x256xf32>
    %506 = vector.broadcast %504 : vector<16x1xf32> to vector<16x256xf32>
    %507 = arith.mulf %506, %505 : vector<16x256xf32>
    %508 = arith.addf %503, %507 : vector<16x256xf32>
    %c0_241 = arith.constant 0 : index
    %c13_242 = arith.constant 13 : index
    %509 = vector.load %arg5[%c0_241, %c13_242] : memref<16x49xf32, #tpu.memory_space<vmem>>, vector<16x1xf32>
    %c0_243 = arith.constant 0 : index
    %c99 = arith.constant 99 : index
    %510 = vector.load %arg7[%c0_243, %c99] : memref<16x512xf32, #tpu.memory_space<vmem>>, vector<16x256xf32>
    %511 = vector.broadcast %509 : vector<16x1xf32> to vector<16x256xf32>
    %512 = arith.mulf %511, %510 : vector<16x256xf32>
    %513 = arith.addf %508, %512 : vector<16x256xf32>
    %c0_244 = arith.constant 0 : index
    %c20 = arith.constant 20 : index
    %514 = vector.load %arg5[%c0_244, %c20] : memref<16x49xf32, #tpu.memory_space<vmem>>, vector<16x1xf32>
    %c0_245 = arith.constant 0 : index
    %c115 = arith.constant 115 : index
    %515 = vector.load %arg7[%c0_245, %c115] : memref<16x512xf32, #tpu.memory_space<vmem>>, vector<16x256xf32>
    %516 = vector.broadcast %514 : vector<16x1xf32> to vector<16x256xf32>
    %517 = arith.mulf %516, %515 : vector<16x256xf32>
    %518 = arith.addf %513, %517 : vector<16x256xf32>
    %c0_246 = arith.constant 0 : index
    %c27 = arith.constant 27 : index
    %519 = vector.load %arg5[%c0_246, %c27] : memref<16x49xf32, #tpu.memory_space<vmem>>, vector<16x1xf32>
    %c0_247 = arith.constant 0 : index
    %c131 = arith.constant 131 : index
    %520 = vector.load %arg7[%c0_247, %c131] : memref<16x512xf32, #tpu.memory_space<vmem>>, vector<16x256xf32>
    %521 = vector.broadcast %519 : vector<16x1xf32> to vector<16x256xf32>
    %522 = arith.mulf %521, %520 : vector<16x256xf32>
    %523 = arith.addf %518, %522 : vector<16x256xf32>
    %c0_248 = arith.constant 0 : index
    %c34 = arith.constant 34 : index
    %524 = vector.load %arg5[%c0_248, %c34] : memref<16x49xf32, #tpu.memory_space<vmem>>, vector<16x1xf32>
    %c0_249 = arith.constant 0 : index
    %c147 = arith.constant 147 : index
    %525 = vector.load %arg7[%c0_249, %c147] : memref<16x512xf32, #tpu.memory_space<vmem>>, vector<16x256xf32>
    %526 = vector.broadcast %524 : vector<16x1xf32> to vector<16x256xf32>
    %527 = arith.mulf %526, %525 : vector<16x256xf32>
    %528 = arith.addf %523, %527 : vector<16x256xf32>
    %c0_250 = arith.constant 0 : index
    %c41 = arith.constant 41 : index
    %529 = vector.load %arg5[%c0_250, %c41] : memref<16x49xf32, #tpu.memory_space<vmem>>, vector<16x1xf32>
    %c0_251 = arith.constant 0 : index
    %c163 = arith.constant 163 : index
    %530 = vector.load %arg7[%c0_251, %c163] : memref<16x512xf32, #tpu.memory_space<vmem>>, vector<16x256xf32>
    %531 = vector.broadcast %529 : vector<16x1xf32> to vector<16x256xf32>
    %532 = arith.mulf %531, %530 : vector<16x256xf32>
    %533 = arith.addf %528, %532 : vector<16x256xf32>
    %c0_252 = arith.constant 0 : index
    %c48 = arith.constant 48 : index
    %534 = vector.load %arg5[%c0_252, %c48] : memref<16x49xf32, #tpu.memory_space<vmem>>, vector<16x1xf32>
    %c0_253 = arith.constant 0 : index
    %c179 = arith.constant 179 : index
    %535 = vector.load %arg7[%c0_253, %c179] : memref<16x512xf32, #tpu.memory_space<vmem>>, vector<16x256xf32>
    %536 = vector.broadcast %534 : vector<16x1xf32> to vector<16x256xf32>
    %537 = arith.mulf %536, %535 : vector<16x256xf32>
    %538 = arith.addf %533, %537 : vector<16x256xf32>
    %c6_254 = arith.constant 6 : index
    %c0_255 = arith.constant 0 : index
    %539 = vector.load %arg4[%c6_254, %c0_255] : memref<7x256xf32, #tpu.memory_space<vmem>>, vector<1x256xf32>
    %540 = vector.broadcast %539 : vector<1x256xf32> to vector<16x256xf32>
    %541 = arith.mulf %540, %538 : vector<16x256xf32>
    %542 = arith.addf %502, %541 : vector<16x256xf32>
    %543 = vector.extract_strided_slice %542 {offsets = [0, 0], sizes = [8, 256], strides = [1, 1]} : vector<16x256xf32> to vector<8x256xf32>
    %544 = vector.extract_strided_slice %542 {offsets = [8, 0], sizes = [8, 256], strides = [1, 1]} : vector<16x256xf32> to vector<8x256xf32>
    %545 = arith.addf %543, %544 : vector<8x256xf32>
    %546 = arith.negf %545 : vector<8x256xf32>
    %547 = math.exp %546 : vector<8x256xf32>
    %cst_256 = arith.constant 1.000000e+00 : f32
    %548 = vector.broadcast %cst_256 : f32 to vector<8x256xf32>
    %549 = arith.addf %548, %547 : vector<8x256xf32>
    %550 = arith.divf %548, %549 : vector<8x256xf32>
    %c0_257 = arith.constant 0 : index
    %c0_258 = arith.constant 0 : index
    %c0_259 = arith.constant 0 : index
    %551 = vector.load %arg1[%c0_257, %c0_258, %c0_259] : memref<8x32x256xf32, #tpu.memory_space<vmem>>, vector<1x32x256xf32>
    %552 = vector.shape_cast %551 : vector<1x32x256xf32> to vector<32x256xf32>
    %553 = vector.broadcast %27 : vector<32x1xf32> to vector<32x256xf32>
    %554 = arith.mulf %552, %553 : vector<32x256xf32>
    %555 = vector.extract_strided_slice %550 {offsets = [0, 0], sizes = [1, 256], strides = [1, 1]} : vector<8x256xf32> to vector<1x256xf32>
    %556 = vector.broadcast %555 : vector<1x256xf32> to vector<32x256xf32>
    %557 = arith.mulf %554, %556 : vector<32x256xf32>
    %c0_260 = arith.constant 0 : index
    %c0_261 = arith.constant 0 : index
    %c0_262 = arith.constant 0 : index
    %558 = vector.load %arg6[%c0_260, %c0_261, %c0_262] : memref<8x32x256xf32, #tpu.memory_space<vmem>>, vector<1x32x256xf32>
    %559 = vector.shape_cast %558 : vector<1x32x256xf32> to vector<32x256xf32>
    %560 = vector.shape_cast %557 : vector<32x256xf32> to vector<1x32x256xf32>
    tpu.vector_store %arg6[%c0_260, %c0_261, %c0_262], %560 {strides = array<i32>} : memref<8x32x256xf32, #tpu.memory_space<vmem>>, vector<1x32x256xf32>,
    %c1_263 = arith.constant 1 : index
    %c0_264 = arith.constant 0 : index
    %c0_265 = arith.constant 0 : index
    %561 = vector.load %arg1[%c1_263, %c0_264, %c0_265] : memref<8x32x256xf32, #tpu.memory_space<vmem>>, vector<1x32x256xf32>
    %562 = vector.shape_cast %561 : vector<1x32x256xf32> to vector<32x256xf32>
    %563 = vector.broadcast %59 : vector<32x1xf32> to vector<32x256xf32>
    %564 = arith.mulf %562, %563 : vector<32x256xf32>
    %565 = vector.extract_strided_slice %550 {offsets = [1, 0], sizes = [1, 256], strides = [1, 1]} : vector<8x256xf32> to vector<1x256xf32>
    %566 = vector.broadcast %565 : vector<1x256xf32> to vector<32x256xf32>
    %567 = arith.mulf %564, %566 : vector<32x256xf32>
    %c1_266 = arith.constant 1 : index
    %c0_267 = arith.constant 0 : index
    %c0_268 = arith.constant 0 : index
    %568 = vector.load %arg6[%c1_266, %c0_267, %c0_268] : memref<8x32x256xf32, #tpu.memory_space<vmem>>, vector<1x32x256xf32>
    %569 = vector.shape_cast %568 : vector<1x32x256xf32> to vector<32x256xf32>
    %570 = vector.shape_cast %567 : vector<32x256xf32> to vector<1x32x256xf32>
    tpu.vector_store %arg6[%c1_266, %c0_267, %c0_268], %570 {strides = array<i32>} : memref<8x32x256xf32, #tpu.memory_space<vmem>>, vector<1x32x256xf32>,
    %c2_269 = arith.constant 2 : index
    %c0_270 = arith.constant 0 : index
    %c0_271 = arith.constant 0 : index
    %571 = vector.load %arg1[%c2_269, %c0_270, %c0_271] : memref<8x32x256xf32, #tpu.memory_space<vmem>>, vector<1x32x256xf32>
    %572 = vector.shape_cast %571 : vector<1x32x256xf32> to vector<32x256xf32>
    %573 = vector.broadcast %91 : vector<32x1xf32> to vector<32x256xf32>
    %574 = arith.mulf %572, %573 : vector<32x256xf32>
    %575 = vector.extract_strided_slice %550 {offsets = [2, 0], sizes = [1, 256], strides = [1, 1]} : vector<8x256xf32> to vector<1x256xf32>
    %576 = vector.broadcast %575 : vector<1x256xf32> to vector<32x256xf32>
    %577 = arith.mulf %574, %576 : vector<32x256xf32>
    %c2_272 = arith.constant 2 : index
    %c0_273 = arith.constant 0 : index
    %c0_274 = arith.constant 0 : index
    %578 = vector.load %arg6[%c2_272, %c0_273, %c0_274] : memref<8x32x256xf32, #tpu.memory_space<vmem>>, vector<1x32x256xf32>
    %579 = vector.shape_cast %578 : vector<1x32x256xf32> to vector<32x256xf32>
    %580 = vector.shape_cast %577 : vector<32x256xf32> to vector<1x32x256xf32>
    tpu.vector_store %arg6[%c2_272, %c0_273, %c0_274], %580 {strides = array<i32>} : memref<8x32x256xf32, #tpu.memory_space<vmem>>, vector<1x32x256xf32>,
    %c3_275 = arith.constant 3 : index
    %c0_276 = arith.constant 0 : index
    %c0_277 = arith.constant 0 : index
    %581 = vector.load %arg1[%c3_275, %c0_276, %c0_277] : memref<8x32x256xf32, #tpu.memory_space<vmem>>, vector<1x32x256xf32>
    %582 = vector.shape_cast %581 : vector<1x32x256xf32> to vector<32x256xf32>
    %583 = vector.broadcast %123 : vector<32x1xf32> to vector<32x256xf32>
    %584 = arith.mulf %582, %583 : vector<32x256xf32>
    %585 = vector.extract_strided_slice %550 {offsets = [3, 0], sizes = [1, 256], strides = [1, 1]} : vector<8x256xf32> to vector<1x256xf32>
    %586 = vector.broadcast %585 : vector<1x256xf32> to vector<32x256xf32>
    %587 = arith.mulf %584, %586 : vector<32x256xf32>
    %c3_278 = arith.constant 3 : index
    %c0_279 = arith.constant 0 : index
    %c0_280 = arith.constant 0 : index
    %588 = vector.load %arg6[%c3_278, %c0_279, %c0_280] : memref<8x32x256xf32, #tpu.memory_space<vmem>>, vector<1x32x256xf32>
    %589 = vector.shape_cast %588 : vector<1x32x256xf32> to vector<32x256xf32>
    %590 = vector.shape_cast %587 : vector<32x256xf32> to vector<1x32x256xf32>
    tpu.vector_store %arg6[%c3_278, %c0_279, %c0_280], %590 {strides = array<i32>} : memref<8x32x256xf32, #tpu.memory_space<vmem>>, vector<1x32x256xf32>,
    %c4_281 = arith.constant 4 : index
    %c0_282 = arith.constant 0 : index
    %c0_283 = arith.constant 0 : index
    %591 = vector.load %arg1[%c4_281, %c0_282, %c0_283] : memref<8x32x256xf32, #tpu.memory_space<vmem>>, vector<1x32x256xf32>
    %592 = vector.shape_cast %591 : vector<1x32x256xf32> to vector<32x256xf32>
    %593 = vector.broadcast %155 : vector<32x1xf32> to vector<32x256xf32>
    %594 = arith.mulf %592, %593 : vector<32x256xf32>
    %595 = vector.extract_strided_slice %550 {offsets = [4, 0], sizes = [1, 256], strides = [1, 1]} : vector<8x256xf32> to vector<1x256xf32>
    %596 = vector.broadcast %595 : vector<1x256xf32> to vector<32x256xf32>
    %597 = arith.mulf %594, %596 : vector<32x256xf32>
    %c4_284 = arith.constant 4 : index
    %c0_285 = arith.constant 0 : index
    %c0_286 = arith.constant 0 : index
    %598 = vector.load %arg6[%c4_284, %c0_285, %c0_286] : memref<8x32x256xf32, #tpu.memory_space<vmem>>, vector<1x32x256xf32>
    %599 = vector.shape_cast %598 : vector<1x32x256xf32> to vector<32x256xf32>
    %600 = vector.shape_cast %597 : vector<32x256xf32> to vector<1x32x256xf32>
    tpu.vector_store %arg6[%c4_284, %c0_285, %c0_286], %600 {strides = array<i32>} : memref<8x32x256xf32, #tpu.memory_space<vmem>>, vector<1x32x256xf32>,
    %c5_287 = arith.constant 5 : index
    %c0_288 = arith.constant 0 : index
    %c0_289 = arith.constant 0 : index
    %601 = vector.load %arg1[%c5_287, %c0_288, %c0_289] : memref<8x32x256xf32, #tpu.memory_space<vmem>>, vector<1x32x256xf32>
    %602 = vector.shape_cast %601 : vector<1x32x256xf32> to vector<32x256xf32>
    %603 = vector.broadcast %187 : vector<32x1xf32> to vector<32x256xf32>
    %604 = arith.mulf %602, %603 : vector<32x256xf32>
    %605 = vector.extract_strided_slice %550 {offsets = [5, 0], sizes = [1, 256], strides = [1, 1]} : vector<8x256xf32> to vector<1x256xf32>
    %606 = vector.broadcast %605 : vector<1x256xf32> to vector<32x256xf32>
    %607 = arith.mulf %604, %606 : vector<32x256xf32>
    %c5_290 = arith.constant 5 : index
    %c0_291 = arith.constant 0 : index
    %c0_292 = arith.constant 0 : index
    %608 = vector.load %arg6[%c5_290, %c0_291, %c0_292] : memref<8x32x256xf32, #tpu.memory_space<vmem>>, vector<1x32x256xf32>
    %609 = vector.shape_cast %608 : vector<1x32x256xf32> to vector<32x256xf32>
    %610 = vector.shape_cast %607 : vector<32x256xf32> to vector<1x32x256xf32>
    tpu.vector_store %arg6[%c5_290, %c0_291, %c0_292], %610 {strides = array<i32>} : memref<8x32x256xf32, #tpu.memory_space<vmem>>, vector<1x32x256xf32>,
    %c6_293 = arith.constant 6 : index
    %c0_294 = arith.constant 0 : index
    %c0_295 = arith.constant 0 : index
    %611 = vector.load %arg1[%c6_293, %c0_294, %c0_295] : memref<8x32x256xf32, #tpu.memory_space<vmem>>, vector<1x32x256xf32>
    %612 = vector.shape_cast %611 : vector<1x32x256xf32> to vector<32x256xf32>
    %613 = vector.broadcast %219 : vector<32x1xf32> to vector<32x256xf32>
    %614 = arith.mulf %612, %613 : vector<32x256xf32>
    %615 = vector.extract_strided_slice %550 {offsets = [6, 0], sizes = [1, 256], strides = [1, 1]} : vector<8x256xf32> to vector<1x256xf32>
    %616 = vector.broadcast %615 : vector<1x256xf32> to vector<32x256xf32>
    %617 = arith.mulf %614, %616 : vector<32x256xf32>
    %c6_296 = arith.constant 6 : index
    %c0_297 = arith.constant 0 : index
    %c0_298 = arith.constant 0 : index
    %618 = vector.load %arg6[%c6_296, %c0_297, %c0_298] : memref<8x32x256xf32, #tpu.memory_space<vmem>>, vector<1x32x256xf32>
    %619 = vector.shape_cast %618 : vector<1x32x256xf32> to vector<32x256xf32>
    %620 = vector.shape_cast %617 : vector<32x256xf32> to vector<1x32x256xf32>
    tpu.vector_store %arg6[%c6_296, %c0_297, %c0_298], %620 {strides = array<i32>} : memref<8x32x256xf32, #tpu.memory_space<vmem>>, vector<1x32x256xf32>,
    %c7_299 = arith.constant 7 : index
    %c0_300 = arith.constant 0 : index
    %c0_301 = arith.constant 0 : index
    %621 = vector.load %arg1[%c7_299, %c0_300, %c0_301] : memref<8x32x256xf32, #tpu.memory_space<vmem>>, vector<1x32x256xf32>
    %622 = vector.shape_cast %621 : vector<1x32x256xf32> to vector<32x256xf32>
    %623 = vector.broadcast %251 : vector<32x1xf32> to vector<32x256xf32>
    %624 = arith.mulf %622, %623 : vector<32x256xf32>
    %625 = vector.extract_strided_slice %550 {offsets = [7, 0], sizes = [1, 256], strides = [1, 1]} : vector<8x256xf32> to vector<1x256xf32>
    %626 = vector.broadcast %625 : vector<1x256xf32> to vector<32x256xf32>
    %627 = arith.mulf %624, %626 : vector<32x256xf32>
    %c7_302 = arith.constant 7 : index
    %c0_303 = arith.constant 0 : index
    %c0_304 = arith.constant 0 : index
    %628 = vector.load %arg6[%c7_302, %c0_303, %c0_304] : memref<8x32x256xf32, #tpu.memory_space<vmem>>, vector<1x32x256xf32>
    %629 = vector.shape_cast %628 : vector<1x32x256xf32> to vector<32x256xf32>
    %630 = vector.shape_cast %627 : vector<32x256xf32> to vector<1x32x256xf32>
    tpu.vector_store %arg6[%c7_302, %c0_303, %c0_304], %630 {strides = array<i32>} : memref<8x32x256xf32, #tpu.memory_space<vmem>>, vector<1x32x256xf32>,
    return
  }
  func.func @transform_0(%arg0: i32) -> (i32, i32, i32) {
    %c0_i32 = arith.constant 0 : i32
    %c0_i32_0 = arith.constant 0 : i32
    %c0_i32_1 = arith.constant 0 : i32
    return %arg0, %c0_i32, %c0_i32_0 : i32, i32, i32
  }
  func.func @transform_1(%arg0: i32) -> (i32, i32) {
    %c0_i32 = arith.constant 0 : i32
    %c0_i32_0 = arith.constant 0 : i32
    %c0_i32_1 = arith.constant 0 : i32
    return %c0_i32, %c0_i32_0 : i32, i32
  }
  func.func @transform_2(%arg0: i32) -> (i32, i32) {
    %c0_i32 = arith.constant 0 : i32
    %c0_i32_0 = arith.constant 0 : i32
    %c0_i32_1 = arith.constant 0 : i32
    return %c0_i32, %c0_i32_0 : i32, i32
  }
  func.func @transform_3(%arg0: i32) -> (i32, i32) {
    %c0_i32 = arith.constant 0 : i32
    %c0_i32_0 = arith.constant 0 : i32
    %c0_i32_1 = arith.constant 0 : i32
    return %c0_i32, %c0_i32_0 : i32, i32
  }
  func.func @transform_4(%arg0: i32) -> (i32, i32) {
    %c0_i32 = arith.constant 0 : i32
    %c0_i32_0 = arith.constant 0 : i32
    %c0_i32_1 = arith.constant 0 : i32
    return %c0_i32, %c0_i32_0 : i32, i32
  }
  func.func @transform_5(%arg0: i32) -> (i32, i32, i32) {
    %c0_i32 = arith.constant 0 : i32
    %c0_i32_0 = arith.constant 0 : i32
    %c0_i32_1 = arith.constant 0 : i32
    return %arg0, %c0_i32, %c0_i32_0 : i32, i32, i32
  }
}

</mosaic_0001>

<llo_original>
// kernel: cbam_pallas.1
$region0: #{cbam_pallas.1}
  #allocation0 [shape = 'u32[]', space=smem, size = 0x4, offset = 0x4, fixed_abs, tag = 'smem constant byte address 0x4 - core index']
  #allocation1 [shape = 'u32[144,128]{1,0:T(1,128)}', space=vmem, size = 0x12000, scoped, tag = 'internal scratch']
  #allocation2 [shape = 'f32[16,512]{1,0:T(8,128)}', space=vmem, size = 0x8000, scoped, tag = 'scratch operand']
  %s0 = inlined_call_operand.vmem [shape: f32[16,32,256], index: 0, kind: input, shape index: {}]
  %s1 = inlined_call_operand.vmem [shape: f32[32,8], index: 1, kind: input, shape index: {}]
  %s2 = inlined_call_operand.vmem [shape: f32[32,8], index: 2, kind: input, shape index: {}]
  %s3 = inlined_call_operand.vmem [shape: f32[7,256], index: 3, kind: input, shape index: {}]
  %s4 = inlined_call_operand.vmem [shape: f32[16,49], index: 4, kind: input, shape index: {}]
  %s5 = inlined_call_operand.vmem [shape: f32[16,32,256], index: 5, kind: output, shape index: {}]
  %s6 = sld [smem:[#allocation0]]
  $region53: #{cbam_pallas.1} parent=0
    _
  %s8 = ssub.s32 1, %s6
  %s9 = scalar_select 0, %s8, %s6
  loop: start=0, step=1, limit=4
  $region2: #{cbam_pallas.1} parent=0 // loop_pre_header
    _
  $region3: #{cbam_pallas.1} parent=0 // loop_header
    %s11 = sphi 0, %s15
    %p12 = scmp.ge.s32.totalorder %s11, 4
    %s21 = sphi 0, %s23
    %s24 = sphi 0, %s21
    %s25 = sphi 0, %s24
    %s41 = sphi 0, %s25
    %s45 = sphi 0, %s45
    %s47 = sphi 0, %s45
    %s48 = sphi 0, %s47
    %s62 = sphi 0, %s48
    %s66 = sphi 0, %s66
    %s68 = sphi 0, %s66
    %s69 = sphi 0, %s68
    %s83 = sphi 0, %s69
    %s87 = sphi 0, %s87
    %s89 = sphi 0, %s87
    %s90 = sphi 0, %s89
    %s104 = sphi 0, %s90
    %s108 = sphi 0, %s108
    %s110 = sphi 0, %s108
    %s111 = sphi 0, %s110
    %s125 = sphi 0, %s111
    %s131 = sphi 0, %s133
    %s134 = sphi 0, %s131
    %s135 = sphi 0, %s134
    %s151 = sphi 0, %s135
  $region4: #{cbam_pallas.1} parent=0 // loop_header_branch
    %14 = sbr.rel (%p12) target = $region8
  $region5: #{cbam_pallas.1} parent=0 // loop_body
    %s16 = ssub.s32 %s11, 1
    %s17 = ssub.s32 %s11, 2
    %s18 = sadd.s32 %s11, 1
    %s19 = ssub.s32 %s11, %s18
    %p20 = scmp.eq.s32.totalorder %s19, 0
    %s22 = sadd.s32 %s21, 1
    %s23 = scalar_select %p20, %s21, %s22
    %p26 = pneg %p20
    %p27 = scmp.eq.s32.totalorder %s11, 1
    %p28 = por %p26, %p27
    %p29 = scmp.ne.s32.totalorder %s21, %s24
    %p30 = scmp.eq.s32.totalorder %s11, 0
    %p31 = por %p29, %p30
    %p32 = scmp.ne.s32.totalorder %s21, %s24
    %p33 = scmp.eq.s32.totalorder %s16, 1
    %p34 = por %p32, %p33
    %p35 = scmp.ne.s32.totalorder %s24, %s25
    %p36 = scmp.eq.s32.totalorder %s16, 0
    %p37 = por %p35, %p36
    %p38 = scmp.ne.s32.totalorder %s24, %s25
    %p39 = scmp.eq.s32.totalorder %s17, 1
    %p40 = por %p38, %p39
    %p42 = scmp.ne.s32.totalorder %s25, %s41
    %p43 = scmp.eq.s32.totalorder %s17, 0
    %p44 = por %p42, %p43
    %s46 = sadd.s32 %s45, 1
    %p49 = scmp.eq.s32.totalorder %s11, 1
    %p50 = scmp.ne.s32.totalorder %s45, %s47
    %p51 = scmp.eq.s32.totalorder %s11, 0
    %p52 = por %p50, %p51
    %p53 = scmp.ne.s32.totalorder %s45, %s47
    %p54 = scmp.eq.s32.totalorder %s16, 1
    %p55 = por %p53, %p54
    %p56 = scmp.ne.s32.totalorder %s47, %s48
    %p57 = scmp.eq.s32.totalorder %s16, 0
    %p58 = por %p56, %p57
    %p59 = scmp.ne.s32.totalorder %s47, %s48
    %p60 = scmp.eq.s32.totalorder %s17, 1
    %p61 = por %p59, %p60
    %p63 = scmp.ne.s32.totalorder %s48, %s62
    %p64 = scmp.eq.s32.totalorder %s17, 0
    %p65 = por %p63, %p64
    %s67 = sadd.s32 %s66, 1
    %p70 = scmp.eq.s32.totalorder %s11, 1
    %p71 = scmp.ne.s32.totalorder %s66, %s68
    %p72 = scmp.eq.s32.totalorder %s11, 0
    %p73 = por %p71, %p72
    %p74 = scmp.ne.s32.totalorder %s66, %s68
    %p75 = scmp.eq.s32.totalorder %s16, 1
    %p76 = por %p74, %p75
    %p77 = scmp.ne.s32.totalorder %s68, %s69
    %p78 = scmp.eq.s32.totalorder %s16, 0
    %p79 = por %p77, %p78
    %p80 = scmp.ne.s32.totalorder %s68, %s69
    %p81 = scmp.eq.s32.totalorder %s17, 1
    %p82 = por %p80, %p81
    %p84 = scmp.ne.s32.totalorder %s69, %s83
    %p85 = scmp.eq.s32.totalorder %s17, 0
    %p86 = por %p84, %p85
    %s88 = sadd.s32 %s87, 1
    %p91 = scmp.eq.s32.totalorder %s11, 1
    %p92 = scmp.ne.s32.totalorder %s87, %s89
    %p93 = scmp.eq.s32.totalorder %s11, 0
    %p94 = por %p92, %p93
    %p95 = scmp.ne.s32.totalorder %s87, %s89
    %p96 = scmp.eq.s32.totalorder %s16, 1
    %p97 = por %p95, %p96
    %p98 = scmp.ne.s32.totalorder %s89, %s90
    %p99 = scmp.eq.s32.totalorder %s16, 0
    %p100 = por %p98, %p99
    %p101 = scmp.ne.s32.totalorder %s89, %s90
    %p102 = scmp.eq.s32.totalorder %s17, 1
    %p103 = por %p101, %p102
    %p105 = scmp.ne.s32.totalorder %s90, %s104
    %p106 = scmp.eq.s32.totalorder %s17, 0
    %p107 = por %p105, %p106
    %s109 = sadd.s32 %s108, 1
    %p112 = scmp.eq.s32.totalorder %s11, 1
    %p113 = scmp.ne.s32.totalorder %s108, %s110
    %p114 = scmp.eq.s32.totalorder %s11, 0
    %p115 = por %p113, %p114
    %p116 = scmp.ne.s32.totalorder %s108, %s110
    %p117 = scmp.eq.s32.totalorder %s16, 1
    %p118 = por %p116, %p117
    %p119 = scmp.ne.s32.totalorder %s110, %s111
    %p120 = scmp.eq.s32.totalorder %s16, 0
    %p121 = por %p119, %p120
    %p122 = scmp.ne.s32.totalorder %s110, %s111
    %p123 = scmp.eq.s32.totalorder %s17, 1
    %p124 = por %p122, %p123
    %p126 = scmp.ne.s32.totalorder %s111, %s125
    %p127 = scmp.eq.s32.totalorder %s17, 0
    %p128 = por %p126, %p127
    %s129 = ssub.s32 %s11, %s18
    %p130 = scmp.eq.s32.totalorder %s129, 0
    %s132 = sadd.s32 %s131, 1
    %s133 = scalar_select %p130, %s131, %s132
    %p136 = pneg %p130
    %p137 = scmp.eq.s32.totalorder %s11, 1
    %p138 = por %p136, %p137
    %p139 = scmp.ne.s32.totalorder %s131, %s134
    %p140 = scmp.eq.s32.totalorder %s11, 0
    %p141 = por %p139, %p140
    %p142 = scmp.ne.s32.totalorder %s131, %s134
    %p143 = scmp.eq.s32.totalorder %s16, 1
    %p144 = por %p142, %p143
    %p145 = scmp.ne.s32.totalorder %s134, %s135
    %p146 = scmp.eq.s32.totalorder %s16, 0
    %p147 = por %p145, %p146
    %p148 = scmp.ne.s32.totalorder %s134, %s135
    %p149 = scmp.eq.s32.totalorder %s17, 1
    %p150 = por %p148, %p149
    %p152 = scmp.ne.s32.totalorder %s135, %s151
    %p153 = scmp.eq.s32.totalorder %s17, 0
    %p154 = por %p152, %p153
    %p155 = scmp.le.s32.totalorder 1, %s11
    %p156 = scmp.lt.s32.totalorder %s11, 3
    %p157 = pnand %p155, %p156
    %p158 = pneg %p157
    // Predicated region
    $region9: #{cbam_pallas.1} parent=5 // pred_check
      _
    $region10: #{cbam_pallas.1} parent=5 // pred_check_branch
      %160 = sbr.rel (%p157) target = $region12
    $region11: #{cbam_pallas.1} parent=5 // pred_region
      %s161 = ssub.s32 %s11, 1
      // Predicated region
      $region13: #{cbam_pallas.1} parent=11 // pred_check
        %p162 = pneg %p58
      $region14: #{cbam_pallas.1} parent=11 // pred_check_branch
        %164 = sbr.rel (%p162) target = $region16
      $region15: #{cbam_pallas.1} parent=11 // pred_region
        _
      $region16: #{cbam_pallas.1} parent=11 // pred_fallthru
        _
      // Predicated region
      $region17: #{cbam_pallas.1} parent=11 // pred_check
        %p165 = pneg %p79
      $region18: #{cbam_pallas.1} parent=11 // pred_check_branch
        %167 = sbr.rel (%p165) target = $region20
      $region19: #{cbam_pallas.1} parent=11 // pred_region
        _
      $region20: #{cbam_pallas.1} parent=11 // pred_fallthru
        _
      // Predicated region
      $region21: #{cbam_pallas.1} parent=11 // pred_check
        %p168 = pneg %p100
      $region22: #{cbam_pallas.1} parent=11 // pred_check_branch
        %170 = sbr.rel (%p168) target = $region24
      $region23: #{cbam_pallas.1} parent=11 // pred_region
        _
      $region24: #{cbam_pallas.1} parent=11 // pred_fallthru
        _
      // Predicated region
      $region25: #{cbam_pallas.1} parent=11 // pred_check
        %p171 = pneg %p121
      $region26: #{cbam_pallas.1} parent=11 // pred_check_branch
        %173 = sbr.rel (%p171) target = $region28
      $region27: #{cbam_pallas.1} parent=11 // pred_region
        _
      $region28: #{cbam_pallas.1} parent=11 // pred_fallthru
        _
    $region12: #{cbam_pallas.1} parent=5 // pred_fallthru
      _
    %p174 = scmp.lt.s32.totalorder %s11, 2
    // Predicated region
    $region29: #{cbam_pallas.1} parent=5 // pred_check
      %p175 = pneg %p174
    $region30: #{cbam_pallas.1} parent=5 // pred_check_branch
      %177 = sbr.rel (%p175) target = $region32
    $region31: #{cbam_pallas.1} parent=5 // pred_region
      // Predicated region
      $region33: #{cbam_pallas.1} parent=31 // pred_check
        %p178 = pneg %p31
      $region34: #{cbam_pallas.1} parent=31 // pred_check_branch
        %180 = sbr.rel (%p178) target = $region36
      $region35: #{cbam_pallas.1} parent=31 // pred_region
        %s181 = smul.u32 8, %s11
        %p182 = scmp.lt.s32.totalorder %s181, 15
        %s183 = scalar_select %p182, %s181, 15
        %s184 = smul.addr %s183, 8
        %s185 = smul.addr %s184, 8
        %s186 = scalar_lea.vmem %s0, %s185
        %s187 = smul.u32 8, %s11
      $region36: #{cbam_pallas.1} parent=31 // pred_fallthru
        _
    $region32: #{cbam_pallas.1} parent=5 // pred_fallthru
      _
    %p188 = scmp.le.s32.totalorder 1, %s11
    %p189 = scmp.lt.s32.totalorder %s11, 3
    %p190 = pnand %p188, %p189
    %p191 = pneg %p190
    // Predicated region
    $region37: #{cbam_pallas.1} parent=5 // pred_check
      _
    $region38: #{cbam_pallas.1} parent=5 // pred_check_branch
      %193 = sbr.rel (%p190) target = $region40
    $region39: #{cbam_pallas.1} parent=5 // pred_region
      %s194 = ssub.s32 %s11, 1
      %s195 = smul.u32 8, %s16
      %p196 = scmp.lt.s32.totalorder %s195, 15
      %s197 = scalar_select %p196, %s195, 15
      %s198 = smul.addr %s197, 8
      %s199 = smul.addr %s198, 8
      %s200 = scalar_lea.vmem %s0, %s199
      %p201 = pneg %p37
      %p202 = pneg %p34
      %p203 = pneg %p58
      %p204 = pneg %p55
      %p205 = pneg %p79
      %p206 = pneg %p76
      %p207 = pneg %p100
      %p208 = pneg %p97
      %p209 = pneg %p121
      %p210 = pneg %p118
      %p211 = pneg %p147
      %p212 = pneg %p144
      %s213 = smul.u32 8, %s16
      %p214 = scmp.lt.s32.totalorder %s213, 15
      %s215 = scalar_select %p214, %s213, 15
      %s216 = smul.addr %s215, 8
      %s217 = smul.addr %s216, 8
      %s218 = scalar_lea.vmem %s5, %s217
      %s219 = smul.u32 8, %s16
      %p220 = scmp.lt.s32.totalorder %s219, 15
      %s221 = scalar_select %p220, %s219, 15
      %s222 = smul.addr %s221, 8
      %s223 = smul.addr %s222, 8
      %s224 = scalar_lea.vmem %s0, %s223
      %s225 = smul.u32 8, %s16
      %s226 = smul.u32 8, %s16
      %p227 = scmp.lt.s32.totalorder %s226, 15
      %s228 = scalar_select %p227, %s226, 15
      %s229 = smul.addr %s228, 8
      %s230 = smul.addr %s229, 8
      %s231 = scalar_lea.vmem %s5, %s230
      %s232 = smul.u32 8, %s16
      %v233 = vld [vmem:[%s1] sm:$0xff]
      %v234 = vld [vmem:[%s1 + $0x8] sm:$0xff]
      %v235 = vld [vmem:[%s1 + $0x10] sm:$0xff]
      %v236 = vld [vmem:[%s1 + $0x18] sm:$0xff]
      %v237 = vld [vmem:[%s2] sm:$0xff]
      %v238 = vld [vmem:[%s2 + $0x8] sm:$0xff]
      %v239 = vld [vmem:[%s2 + $0x10] sm:$0xff]
      %v240 = vld [vmem:[%s2 + $0x18] sm:$0xff]
      %241 = vst [vmem:[#allocation2] sm:$0xff] 0.0
      %242 = vst [vmem:[#allocation2 + $0x20] sm:$0xff] 0.0
      %243 = vst [vmem:[#allocation2 + $0x18] sm:$0xff] 0.0
      %244 = vst [vmem:[#allocation2 + $0x38] sm:$0xff] 0.0
      %v245 = vld [vmem:[%s224] sm:$0xff]
      %v246 = vld [vmem:[%s224 + $0x8] sm:$0xff]
      %v247 = vld [vmem:[%s224 + $0x10] sm:$0xff]
      %v248 = vld [vmem:[%s224 + $0x18] sm:$0xff]
      %v249 = vld [vmem:[%s224 + $0x20] sm:$0xff]
      %v250 = vld [vmem:[%s224 + $0x28] sm:$0xff]
      %v251 = vld [vmem:[%s224 + $0x30] sm:$0xff]
      %v252 = vld [vmem:[%s224 + $0x38] sm:$0xff]
      %v253 = vadd.f32 %v245, %v246
      %254 = vadd.xlane.f32.xlu0 %v253
      %v255 = vpop.xlane.xlu0 %254
      %v256 = vadd.f32 %v247, %v248
      %257 = vadd.xlane.f32.xlu0 %v256
      %v258 = vpop.xlane.xlu0 %257
      %v259 = vadd.f32 %v249, %v250
      %260 = vadd.xlane.f32.xlu0 %v259
      %v261 = vpop.xlane.xlu0 %260
      %v262 = vadd.f32 %v251, %v252
      %263 = vadd.xlane.f32.xlu0 %v262
      %v264 = vpop.xlane.xlu0 %263
      %v265 = vrcp.pop 256.0
      %v266 = vmul.f32 %v255, %v265
      %v267 = vmul.f32 %v258, %v265
      %v268 = vmul.f32 %v261, %v265
      %v269 = vmul.f32 %v264, %v265
      %v270 = vmul.f32 %v233, %v266
      %v271 = vmul.f32 %v234, %v267
      %v272 = vmul.f32 %v235, %v268
      %v273 = vmul.f32 %v236, %v269
      %vm274 = vcmask 64512
      %v275 = vsel %vm274, %v270, 0.0
      %v276 = vsel %vm274, %v271, 0.0
      %v277 = vadd.f32 %v275, %v276
      %v278 = vsel %vm274, %v272, 0.0
      %v279 = vadd.f32 %v277, %v278
      %v280 = vsel %vm274, %v273, 0.0
      %v281 = vadd.f32 %v279, %v280
      %v282 = vrot.slane %v281, 4
      %v283 = vadd.f32 %v281, %v282
      %v284 = vrot.slane %v283, 2
      %v285 = vadd.f32 %v283, %v284
      %v286 = vrot.slane %v285, 1
      %v287 = vadd.f32 %v285, %v286
      %v288 = vmax.f32 %v287, 0.0
      %v289 = vmul.f32 %v237, %v288
      %v290 = vmul.f32 %v238, %v288
      %v291 = vmul.f32 %v239, %v288
      %v292 = vmul.f32 %v240, %v288
      %v293 = vsel %vm274, %v289, 0.0
      %294 = vadd.xlane.f32.xlu0 %v293
      %v295 = vpop.xlane.xlu0 %294
      %v296 = vsel %vm274, %v290, 0.0
      %297 = vadd.xlane.f32.xlu0 %v296
      %v298 = vpop.xlane.xlu0 %297
      %v299 = vsel %vm274, %v291, 0.0
      %300 = vadd.xlane.f32.xlu0 %v299
      %v301 = vpop.xlane.xlu0 %300
      %v302 = vsel %vm274, %v292, 0.0
      %303 = vadd.xlane.f32.xlu0 %v302
      %v304 = vpop.xlane.xlu0 %303
      %v305 = vadd.f32 %v295, %v295
      %v306 = vadd.f32 %v298, %v298
      %v307 = vadd.f32 %v301, %v301
      %v308 = vadd.f32 %v304, %v304
      %v309 = vxor.u32 %v305, 2147483648
      %v310 = vxor.u32 %v306, 2147483648
      %v311 = vxor.u32 %v307, 2147483648
      %v312 = vxor.u32 %v308, 2147483648
      %v313 = vmul.f32 %v309, 1.442695
      %v314 = vpow.pop %v313
      %v315 = vmul.f32 %v310, 1.442695
      %v316 = vpow.pop %v315
      %v317 = vmul.f32 %v311, 1.442695
      %v318 = vpow.pop %v317
      %v319 = vmul.f32 %v312, 1.442695
      %v320 = vpow.pop %v319
      %v321 = vadd.f32 %v314, 1.0
      %v322 = vadd.f32 %v316, 1.0
      %v323 = vadd.f32 %v318, 1.0
      %v324 = vadd.f32 %v320, 1.0
      %v325 = vrcp.pop %v321
      %v326 = vmul.f32 1.0, %v325
      %v327 = vrcp.pop %v322
      %v328 = vmul.f32 1.0, %v327
      %v329 = vrcp.pop %v323
      %v330 = vmul.f32 1.0, %v329
      %v331 = vrcp.pop %v324
      %v332 = vmul.f32 1.0, %v331
      %v333 = vmul.f32 %v245, %v326
      %v334 = vmul.f32 %v246, %v326
      %v335 = vmul.f32 %v247, %v328
      %v336 = vmul.f32 %v248, %v328
      %v337 = vmul.f32 %v249, %v330
      %v338 = vmul.f32 %v250, %v330
      %v339 = vmul.f32 %v251, %v332
      %v340 = vmul.f32 %v252, %v332
      %v341 = vadd.f32 %v333, %v335
      %v342 = vadd.f32 %v341, %v337
      %v343 = vadd.f32 %v342, %v339
      %v344 = vrot.slane %v343, 4
      %v345 = vadd.f32 %v343, %v344
      %v346 = vrot.slane %v345, 2
      %v347 = vadd.f32 %v345, %v346
      %v348 = vrot.slane %v347, 1
      %v349 = vadd.f32 %v347, %v348
      %v350 = vadd.f32 %v334, %v336
      %v351 = vadd.f32 %v350, %v338
      %v352 = vadd.f32 %v351, %v340
      %v353 = vrot.slane %v352, 4
      %v354 = vadd.f32 %v352, %v353
      %v355 = vrot.slane %v354, 2
      %v356 = vadd.f32 %v354, %v355
      %v357 = vrot.slane %v356, 1
      %v358 = vadd.f32 %v356, %v357
      %v359 = vrcp.pop 32.0
      %v360 = vmul.f32 %v349, %v359
      %v361 = vmul.f32 %v358, %v359
      %v364 = vcombine.low %v360, %v361
      %v366 = vunpack.c.l.s4 1966171168
      %v367 = vunpack.c.0.s8 %v366
      %v368 = vlaneseq
      %v369 = vshrl.u32 %v368, 7
      %v370 = vsub.s32 %v367, %v369
      %v371 = vrot.slane %v364, %v370
      %v373 = vunpack.c.l.s4 1966171168
      %v374 = vunpack.c.0.s8 %v373
      %v375 = vlaneseq
      %v376 = vshrl.u32 %v375, 7
      %v377 = vsub.s32 %v374, %v376
      %v378 = vrot.slane %v371, %v377
      %v380 = vlaneseq
      %vm381 = vcmp.ge.s32.totalorder %v380, 0
      %vm382 = vcmp.lt.s32.totalorder %v380, 256
      %vm383 = vmand %vm381, %vm382
      %s384 = scalar_lea.vmem [#allocation2], 8
      %385 = vst.msk [vmem:[%s384] ss:$8 sm:$0x3] %vm383, %v378
      %386 = vst.msk [vmem:[%s384] ss:$8 sm:$0x0] %vm383, %v378
      %v387 = vmax.f32 %v333, %v337
      %v388 = vmax.f32 %v335, %v339
      %v389 = vmax.f32 %v387, %v388
      %v390 = vrot.slane %v389, 4
      %v391 = vmax.f32 %v389, %v390
      %v392 = vrot.slane %v391, 2
      %v393 = vmax.f32 %v391, %v392
      %v394 = vrot.slane %v393, 1
      %v395 = vmax.f32 %v393, %v394
      %v396 = vmax.f32 %v334, %v338
      %v397 = vmax.f32 %v336, %v340
      %v398 = vmax.f32 %v396, %v397
      %v399 = vrot.slane %v398, 4
      %v400 = vmax.f32 %v398, %v399
      %v401 = vrot.slane %v400, 2
      %v402 = vmax.f32 %v400, %v401
      %v403 = vrot.slane %v402, 1
      %v404 = vmax.f32 %v402, %v403
      %v407 = vcombine.low %v395, %v404
      %v409 = vunpack.c.l.s4 1966171168
      %v410 = vunpack.c.0.s8 %v409
      %v411 = vlaneseq
      %v412 = vshrl.u32 %v411, 7
      %v413 = vsub.s32 %v410, %v412
      %v414 = vrot.slane %v407, %v413
      %v416 = vunpack.c.l.s4 1966171168
      %v417 = vunpack.c.0.s8 %v416
      %v418 = vlaneseq
      %v419 = vshrl.u32 %v418, 7
      %v420 = vsub.s32 %v417, %v419
      %v421 = vrot.slane %v414, %v420
      %s423 = scalar_lea.vmem [#allocation2], 40
      %424 = vst.msk [vmem:[%s423] ss:$8 sm:$0x3] %vm383, %v421
      %425 = vst.msk [vmem:[%s423] ss:$8 sm:$0x0] %vm383, %v421
      %s426 = scalar_lea.vmem %s224, 64
      %v427 = vld [vmem:[%s426] sm:$0xff]
      %v428 = vld [vmem:[%s426 + $0x8] sm:$0xff]
      %v429 = vld [vmem:[%s426 + $0x10] sm:$0xff]
      %v430 = vld [vmem:[%s426 + $0x18] sm:$0xff]
      %v431 = vld [vmem:[%s426 + $0x20] sm:$0xff]
      %v432 = vld [vmem:[%s426 + $0x28] sm:$0xff]
      %v433 = vld [vmem:[%s426 + $0x30] sm:$0xff]
      %v434 = vld [vmem:[%s426 + $0x38] sm:$0xff]
      %v435 = vadd.f32 %v427, %v428
      %436 = vadd.xlane.f32.xlu0 %v435
      %v437 = vpop.xlane.xlu0 %436
      %v438 = vadd.f32 %v429, %v430
      %439 = vadd.xlane.f32.xlu0 %v438
      %v440 = vpop.xlane.xlu0 %439
      %v441 = vadd.f32 %v431, %v432
      %442 = vadd.xlane.f32.xlu0 %v441
      %v443 = vpop.xlane.xlu0 %442
      %v444 = vadd.f32 %v433, %v434
      %445 = vadd.xlane.f32.xlu0 %v444
      %v446 = vpop.xlane.xlu0 %445
      %v447 = vmul.f32 %v437, %v265
      %v448 = vmul.f32 %v440, %v265
      %v449 = vmul.f32 %v443, %v265
      %v450 = vmul.f32 %v446, %v265
      %v451 = vmul.f32 %v233, %v447
      %v452 = vmul.f32 %v234, %v448
      %v453 = vmul.f32 %v235, %v449
      %v454 = vmul.f32 %v236, %v450
      %v455 = vsel %vm274, %v451, 0.0
      %v456 = vsel %vm274, %v452, 0.0
      %v457 = vadd.f32 %v455, %v456
      %v458 = vsel %vm274, %v453, 0.0
      %v459 = vadd.f32 %v457, %v458
      %v460 = vsel %vm274, %v454, 0.0
      %v461 = vadd.f32 %v459, %v460
      %v462 = vrot.slane %v461, 4
      %v463 = vadd.f32 %v461, %v462
      %v464 = vrot.slane %v463, 2
      %v465 = vadd.f32 %v463, %v464
      %v466 = vrot.slane %v465, 1
      %v467 = vadd.f32 %v465, %v466
      %v468 = vmax.f32 %v467, 0.0
      %v469 = vmul.f32 %v237, %v468
      %v470 = vmul.f32 %v238, %v468
      %v471 = vmul.f32 %v239, %v468
      %v472 = vmul.f32 %v240, %v468
      %v473 = vsel %vm274, %v469, 0.0
      %474 = vadd.xlane.f32.xlu0 %v473
      %v475 = vpop.xlane.xlu0 %474
      %v476 = vsel %vm274, %v470, 0.0
      %477 = vadd.xlane.f32.xlu0 %v476
      %v478 = vpop.xlane.xlu0 %477
      %v479 = vsel %vm274, %v471, 0.0
      %480 = vadd.xlane.f32.xlu0 %v479
      %v481 = vpop.xlane.xlu0 %480
      %v482 = vsel %vm274, %v472, 0.0
      %483 = vadd.xlane.f32.xlu0 %v482
      %v484 = vpop.xlane.xlu0 %483
      %v485 = vadd.f32 %v475, %v475
      %v486 = vadd.f32 %v478, %v478
      %v487 = vadd.f32 %v481, %v481
      %v488 = vadd.f32 %v484, %v484
      %v489 = vxor.u32 %v485, 2147483648
      %v490 = vxor.u32 %v486, 2147483648
      %v491 = vxor.u32 %v487, 2147483648
      %v492 = vxor.u32 %v488, 2147483648
      %v493 = vmul.f32 %v489, 1.442695
      %v494 = vpow.pop %v493
      %v495 = vmul.f32 %v490, 1.442695
      %v496 = vpow.pop %v495
      %v497 = vmul.f32 %v491, 1.442695
      %v498 = vpow.pop %v497
      %v499 = vmul.f32 %v492, 1.442695
      %v500 = vpow.pop %v499
      %v501 = vadd.f32 %v494, 1.0
      %v502 = vadd.f32 %v496, 1.0
      %v503 = vadd.f32 %v498, 1.0
      %v504 = vadd.f32 %v500, 1.0
      %v505 = vrcp.pop %v501
      %v506 = vmul.f32 1.0, %v505
      %v507 = vrcp.pop %v502
      %v508 = vmul.f32 1.0, %v507
      %v509 = vrcp.pop %v503
      %v510 = vmul.f32 1.0, %v509
      %v511 = vrcp.pop %v504
      %v512 = vmul.f32 1.0, %v511
      %v513 = vmul.f32 %v427, %v506
      %v514 = vmul.f32 %v428, %v506
      %v515 = vmul.f32 %v429, %v508
      %v516 = vmul.f32 %v430, %v508
      %v517 = vmul.f32 %v431, %v510
      %v518 = vmul.f32 %v432, %v510
      %v519 = vmul.f32 %v433, %v512
      %v520 = vmul.f32 %v434, %v512
      %v521 = vadd.f32 %v513, %v515
      %v522 = vadd.f32 %v521, %v517
      %v523 = vadd.f32 %v522, %v519
      %v524 = vrot.slane %v523, 4
      %v525 = vadd.f32 %v523, %v524
      %v526 = vrot.slane %v525, 2
      %v527 = vadd.f32 %v525, %v526
      %v528 = vrot.slane %v527, 1
      %v529 = vadd.f32 %v527, %v528
      %v530 = vadd.f32 %v514, %v516
      %v531 = vadd.f32 %v530, %v518
      %v532 = vadd.f32 %v531, %v520
      %v533 = vrot.slane %v532, 4
      %v534 = vadd.f32 %v532, %v533
      %v535 = vrot.slane %v534, 2
      %v536 = vadd.f32 %v534, %v535
      %v537 = vrot.slane %v536, 1
      %v538 = vadd.f32 %v536, %v537
      %v539 = vmul.f32 %v529, %v359
      %v540 = vmul.f32 %v538, %v359
      %v543 = vcombine.low %v539, %v540
      %v545 = vunpack.c.l.s4 1966171168
      %v546 = vunpack.c.0.s8 %v545
      %v547 = vlaneseq
      %v548 = vshrl.u32 %v547, 7
      %v549 = vsub.s32 %v546, %v548
      %v550 = vrot.slane %v543, %v549
      %v552 = vunpack.c.l.s4 1966171168
      %v553 = vunpack.c.0.s8 %v552
      %v554 = vlaneseq
      %v555 = vshrl.u32 %v554, 7
      %v556 = vsub.s32 %v553, %v555
      %v557 = vrot.slane %v550, %v556
      %s559 = scalar_lea.vmem [#allocation2], 9
      %560 = vst.msk [vmem:[%s559] ss:$8 sm:$0x3] %vm383, %v557
      %561 = vst.msk [vmem:[%s559] ss:$8 sm:$0x0] %vm383, %v557
      %v562 = vmax.f32 %v513, %v517
      %v563 = vmax.f32 %v515, %v519
      %v564 = vmax.f32 %v562, %v563
      %v565 = vrot.slane %v564, 4
      %v566 = vmax.f32 %v564, %v565
      %v567 = vrot.slane %v566, 2
      %v568 = vmax.f32 %v566, %v567
      %v569 = vrot.slane %v568, 1
      %v570 = vmax.f32 %v568, %v569
      %v571 = vmax.f32 %v514, %v518
      %v572 = vmax.f32 %v516, %v520
      %v573 = vmax.f32 %v571, %v572
      %v574 = vrot.slane %v573, 4
      %v575 = vmax.f32 %v573, %v574
      %v576 = vrot.slane %v575, 2
      %v577 = vmax.f32 %v575, %v576
      %v578 = vrot.slane %v577, 1
      %v579 = vmax.f32 %v577, %v578
      %v582 = vcombine.low %v570, %v579
      %v584 = vunpack.c.l.s4 1966171168
      %v585 = vunpack.c.0.s8 %v584
      %v586 = vlaneseq
      %v587 = vshrl.u32 %v586, 7
      %v588 = vsub.s32 %v585, %v587
      %v589 = vrot.slane %v582, %v588
      %v591 = vunpack.c.l.s4 1966171168
      %v592 = vunpack.c.0.s8 %v591
      %v593 = vlaneseq
      %v594 = vshrl.u32 %v593, 7
      %v595 = vsub.s32 %v592, %v594
      %v596 = vrot.slane %v589, %v595
      %s598 = scalar_lea.vmem [#allocation2], 41
      %599 = vst.msk [vmem:[%s598] ss:$8 sm:$0x3] %vm383, %v596
      %600 = vst.msk [vmem:[%s598] ss:$8 sm:$0x0] %vm383, %v596
      %s601 = scalar_lea.vmem %s224, 128
      %v602 = vld [vmem:[%s601] sm:$0xff]
      %v603 = vld [vmem:[%s601 + $0x8] sm:$0xff]
      %v604 = vld [vmem:[%s601 + $0x10] sm:$0xff]
      %v605 = vld [vmem:[%s601 + $0x18] sm:$0xff]
      %v606 = vld [vmem:[%s601 + $0x20] sm:$0xff]
      %v607 = vld [vmem:[%s601 + $0x28] sm:$0xff]
      %v608 = vld [vmem:[%s601 + $0x30] sm:$0xff]
      %v609 = vld [vmem:[%s601 + $0x38] sm:$0xff]
      %v610 = vadd.f32 %v602, %v603
      %611 = vadd.xlane.f32.xlu0 %v610
      %v612 = vpop.xlane.xlu0 %611
      %v613 = vadd.f32 %v604, %v605
      %614 = vadd.xlane.f32.xlu0 %v613
      %v615 = vpop.xlane.xlu0 %614
      %v616 = vadd.f32 %v606, %v607
      %617 = vadd.xlane.f32.xlu0 %v616
      %v618 = vpop.xlane.xlu0 %617
      %v619 = vadd.f32 %v608, %v609
      %620 = vadd.xlane.f32.xlu0 %v619
      %v621 = vpop.xlane.xlu0 %620
      %v622 = vmul.f32 %v612, %v265
      %v623 = vmul.f32 %v615, %v265
      %v624 = vmul.f32 %v618, %v265
      %v625 = vmul.f32 %v621, %v265
      %v626 = vmul.f32 %v233, %v622
      %v627 = vmul.f32 %v234, %v623
      %v628 = vmul.f32 %v235, %v624
      %v629 = vmul.f32 %v236, %v625
      %v630 = vsel %vm274, %v626, 0.0
      %v631 = vsel %vm274, %v627, 0.0
      %v632 = vadd.f32 %v630, %v631
      %v633 = vsel %vm274, %v628, 0.0
      %v634 = vadd.f32 %v632, %v633
      %v635 = vsel %vm274, %v629, 0.0
      %v636 = vadd.f32 %v634, %v635
      %v637 = vrot.slane %v636, 4
      %v638 = vadd.f32 %v636, %v637
      %v639 = vrot.slane %v638, 2
      %v640 = vadd.f32 %v638, %v639
      %v641 = vrot.slane %v640, 1
      %v642 = vadd.f32 %v640, %v641
      %v643 = vmax.f32 %v642, 0.0
      %v644 = vmul.f32 %v237, %v643
      %v645 = vmul.f32 %v238, %v643
      %v646 = vmul.f32 %v239, %v643
      %v647 = vmul.f32 %v240, %v643
      %v648 = vsel %vm274, %v644, 0.0
      %649 = vadd.xlane.f32.xlu0 %v648
      %v650 = vpop.xlane.xlu0 %649
      %v651 = vsel %vm274, %v645, 0.0
      %652 = vadd.xlane.f32.xlu0 %v651
      %v653 = vpop.xlane.xlu0 %652
      %v654 = vsel %vm274, %v646, 0.0
      %655 = vadd.xlane.f32.xlu0 %v654
      %v656 = vpop.xlane.xlu0 %655
      %v657 = vsel %vm274, %v647, 0.0
      %658 = vadd.xlane.f32.xlu0 %v657
      %v659 = vpop.xlane.xlu0 %658
      %v660 = vadd.f32 %v650, %v650
      %v661 = vadd.f32 %v653, %v653
      %v662 = vadd.f32 %v656, %v656
      %v663 = vadd.f32 %v659, %v659
      %v664 = vxor.u32 %v660, 2147483648
      %v665 = vxor.u32 %v661, 2147483648
      %v666 = vxor.u32 %v662, 2147483648
      %v667 = vxor.u32 %v663, 2147483648
      %v668 = vmul.f32 %v664, 1.442695
      %v669 = vpow.pop %v668
      %v670 = vmul.f32 %v665, 1.442695
      %v671 = vpow.pop %v670
      %v672 = vmul.f32 %v666, 1.442695
      %v673 = vpow.pop %v672
      %v674 = vmul.f32 %v667, 1.442695
      %v675 = vpow.pop %v674
      %v676 = vadd.f32 %v669, 1.0
      %v677 = vadd.f32 %v671, 1.0
      %v678 = vadd.f32 %v673, 1.0
      %v679 = vadd.f32 %v675, 1.0
      %v680 = vrcp.pop %v676
      %v681 = vmul.f32 1.0, %v680
      %v682 = vrcp.pop %v677
      %v683 = vmul.f32 1.0, %v682
      %v684 = vrcp.pop %v678
      %v685 = vmul.f32 1.0, %v684
      %v686 = vrcp.pop %v679
      %v687 = vmul.f32 1.0, %v686
      %v688 = vmul.f32 %v602, %v681
      %v689 = vmul.f32 %v603, %v681
      %v690 = vmul.f32 %v604, %v683
      %v691 = vmul.f32 %v605, %v683
      %v692 = vmul.f32 %v606, %v685
      %v693 = vmul.f32 %v607, %v685
      %v694 = vmul.f32 %v608, %v687
      %v695 = vmul.f32 %v609, %v687
      %v696 = vadd.f32 %v688, %v690
      %v697 = vadd.f32 %v696, %v692
      %v698 = vadd.f32 %v697, %v694
      %v699 = vrot.slane %v698, 4
      %v700 = vadd.f32 %v698, %v699
      %v701 = vrot.slane %v700, 2
      %v702 = vadd.f32 %v700, %v701
      %v703 = vrot.slane %v702, 1
      %v704 = vadd.f32 %v702, %v703
      %v705 = vadd.f32 %v689, %v691
      %v706 = vadd.f32 %v705, %v693
      %v707 = vadd.f32 %v706, %v695
      %v708 = vrot.slane %v707, 4
      %v709 = vadd.f32 %v707, %v708
      %v710 = vrot.slane %v709, 2
      %v711 = vadd.f32 %v709, %v710
      %v712 = vrot.slane %v711, 1
      %v713 = vadd.f32 %v711, %v712
      %v714 = vmul.f32 %v704, %v359
      %v715 = vmul.f32 %v713, %v359
      %v718 = vcombine.low %v714, %v715
      %v720 = vunpack.c.l.s4 1966171168
      %v721 = vunpack.c.0.s8 %v720
      %v722 = vlaneseq
      %v723 = vshrl.u32 %v722, 7
      %v724 = vsub.s32 %v721, %v723
      %v725 = vrot.slane %v718, %v724
      %v727 = vunpack.c.l.s4 1966171168
      %v728 = vunpack.c.0.s8 %v727
      %v729 = vlaneseq
      %v730 = vshrl.u32 %v729, 7
      %v731 = vsub.s32 %v728, %v730
      %v732 = vrot.slane %v725, %v731
      %s734 = scalar_lea.vmem [#allocation2], 10
      %735 = vst.msk [vmem:[%s734] ss:$8 sm:$0x3] %vm383, %v732
      %736 = vst.msk [vmem:[%s734] ss:$8 sm:$0x0] %vm383, %v732
      %v737 = vmax.f32 %v688, %v692
      %v738 = vmax.f32 %v690, %v694
      %v739 = vmax.f32 %v737, %v738
      %v740 = vrot.slane %v739, 4
      %v741 = vmax.f32 %v739, %v740
      %v742 = vrot.slane %v741, 2
      %v743 = vmax.f32 %v741, %v742
      %v744 = vrot.slane %v743, 1
      %v745 = vmax.f32 %v743, %v744
      %v746 = vmax.f32 %v689, %v693
      %v747 = vmax.f32 %v691, %v695
      %v748 = vmax.f32 %v746, %v747
      %v749 = vrot.slane %v748, 4
      %v750 = vmax.f32 %v748, %v749
      %v751 = vrot.slane %v750, 2
      %v752 = vmax.f32 %v750, %v751
      %v753 = vrot.slane %v752, 1
      %v754 = vmax.f32 %v752, %v753
      %v757 = vcombine.low %v745, %v754
      %v759 = vunpack.c.l.s4 1966171168
      %v760 = vunpack.c.0.s8 %v759
      %v761 = vlaneseq
      %v762 = vshrl.u32 %v761, 7
      %v763 = vsub.s32 %v760, %v762
      %v764 = vrot.slane %v757, %v763
      %v766 = vunpack.c.l.s4 1966171168
      %v767 = vunpack.c.0.s8 %v766
      %v768 = vlaneseq
      %v769 = vshrl.u32 %v768, 7
      %v770 = vsub.s32 %v767, %v769
      %v771 = vrot.slane %v764, %v770
      %s773 = scalar_lea.vmem [#allocation2], 42
      %774 = vst.msk [vmem:[%s773] ss:$8 sm:$0x3] %vm383, %v771
      %775 = vst.msk [vmem:[%s773] ss:$8 sm:$0x0] %vm383, %v771
      %s776 = scalar_lea.vmem %s224, 192
      %v777 = vld [vmem:[%s776] sm:$0xff]
      %v778 = vld [vmem:[%s776 + $0x8] sm:$0xff]
      %v779 = vld [vmem:[%s776 + $0x10] sm:$0xff]
      %v780 = vld [vmem:[%s776 + $0x18] sm:$0xff]
      %v781 = vld [vmem:[%s776 + $0x20] sm:$0xff]
      %v782 = vld [vmem:[%s776 + $0x28] sm:$0xff]
      %v783 = vld [vmem:[%s776 + $0x30] sm:$0xff]
      %v784 = vld [vmem:[%s776 + $0x38] sm:$0xff]
      %v785 = vadd.f32 %v777, %v778
      %786 = vadd.xlane.f32.xlu0 %v785
      %v787 = vpop.xlane.xlu0 %786
      %v788 = vadd.f32 %v779, %v780
      %789 = vadd.xlane.f32.xlu0 %v788
      %v790 = vpop.xlane.xlu0 %789
      %v791 = vadd.f32 %v781, %v782
      %792 = vadd.xlane.f32.xlu0 %v791
      %v793 = vpop.xlane.xlu0 %792
      %v794 = vadd.f32 %v783, %v784
      %795 = vadd.xlane.f32.xlu0 %v794
      %v796 = vpop.xlane.xlu0 %795
      %v797 = vmul.f32 %v787, %v265
      %v798 = vmul.f32 %v790, %v265
      %v799 = vmul.f32 %v793, %v265
      %v800 = vmul.f32 %v796, %v265
      %v801 = vmul.f32 %v233, %v797
      %v802 = vmul.f32 %v234, %v798
      %v803 = vmul.f32 %v235, %v799
      %v804 = vmul.f32 %v236, %v800
      %v805 = vsel %vm274, %v801, 0.0
      %v806 = vsel %vm274, %v802, 0.0
      %v807 = vadd.f32 %v805, %v806
      %v808 = vsel %vm274, %v803, 0.0
      %v809 = vadd.f32 %v807, %v808
      %v810 = vsel %vm274, %v804, 0.0
      %v811 = vadd.f32 %v809, %v810
      %v812 = vrot.slane %v811, 4
      %v813 = vadd.f32 %v811, %v812
      %v814 = vrot.slane %v813, 2
      %v815 = vadd.f32 %v813, %v814
      %v816 = vrot.slane %v815, 1
      %v817 = vadd.f32 %v815, %v816
      %v818 = vmax.f32 %v817, 0.0
      %v819 = vmul.f32 %v237, %v818
      %v820 = vmul.f32 %v238, %v818
      %v821 = vmul.f32 %v239, %v818
      %v822 = vmul.f32 %v240, %v818
      %v823 = vsel %vm274, %v819, 0.0
      %824 = vadd.xlane.f32.xlu0 %v823
      %v825 = vpop.xlane.xlu0 %824
      %v826 = vsel %vm274, %v820, 0.0
      %827 = vadd.xlane.f32.xlu0 %v826
      %v828 = vpop.xlane.xlu0 %827
      %v829 = vsel %vm274, %v821, 0.0
      %830 = vadd.xlane.f32.xlu0 %v829
      %v831 = vpop.xlane.xlu0 %830
      %v832 = vsel %vm274, %v822, 0.0
      %833 = vadd.xlane.f32.xlu0 %v832
      %v834 = vpop.xlane.xlu0 %833
      %v835 = vadd.f32 %v825, %v825
      %v836 = vadd.f32 %v828, %v828
      %v837 = vadd.f32 %v831, %v831
      %v838 = vadd.f32 %v834, %v834
      %v839 = vxor.u32 %v835, 2147483648
      %v840 = vxor.u32 %v836, 2147483648
      %v841 = vxor.u32 %v837, 2147483648
      %v842 = vxor.u32 %v838, 2147483648
      %v843 = vmul.f32 %v839, 1.442695
      %v844 = vpow.pop %v843
      %v845 = vmul.f32 %v840, 1.442695
      %v846 = vpow.pop %v845
      %v847 = vmul.f32 %v841, 1.442695
      %v848 = vpow.pop %v847
      %v849 = vmul.f32 %v842, 1.442695
      %v850 = vpow.pop %v849
      %v851 = vadd.f32 %v844, 1.0
      %v852 = vadd.f32 %v846, 1.0
      %v853 = vadd.f32 %v848, 1.0
      %v854 = vadd.f32 %v850, 1.0
      %v855 = vrcp.pop %v851
      %v856 = vmul.f32 1.0, %v855
      %v857 = vrcp.pop %v852
      %v858 = vmul.f32 1.0, %v857
      %v859 = vrcp.pop %v853
      %v860 = vmul.f32 1.0, %v859
      %v861 = vrcp.pop %v854
      %v862 = vmul.f32 1.0, %v861
      %v863 = vmul.f32 %v777, %v856
      %v864 = vmul.f32 %v778, %v856
      %v865 = vmul.f32 %v779, %v858
      %v866 = vmul.f32 %v780, %v858
      %v867 = vmul.f32 %v781, %v860
      %v868 = vmul.f32 %v782, %v860
      %v869 = vmul.f32 %v783, %v862
      %v870 = vmul.f32 %v784, %v862
      %v871 = vadd.f32 %v863, %v865
      %v872 = vadd.f32 %v871, %v867
      %v873 = vadd.f32 %v872, %v869
      %v874 = vrot.slane %v873, 4
      %v875 = vadd.f32 %v873, %v874
      %v876 = vrot.slane %v875, 2
      %v877 = vadd.f32 %v875, %v876
      %v878 = vrot.slane %v877, 1
      %v879 = vadd.f32 %v877, %v878
      %v880 = vadd.f32 %v864, %v866
      %v881 = vadd.f32 %v880, %v868
      %v882 = vadd.f32 %v881, %v870
      %v883 = vrot.slane %v882, 4
      %v884 = vadd.f32 %v882, %v883
      %v885 = vrot.slane %v884, 2
      %v886 = vadd.f32 %v884, %v885
      %v887 = vrot.slane %v886, 1
      %v888 = vadd.f32 %v886, %v887
      %v889 = vmul.f32 %v879, %v359
      %v890 = vmul.f32 %v888, %v359
      %v893 = vcombine.low %v889, %v890
      %v895 = vunpack.c.l.s4 1966171168
      %v896 = vunpack.c.0.s8 %v895
      %v897 = vlaneseq
      %v898 = vshrl.u32 %v897, 7
      %v899 = vsub.s32 %v896, %v898
      %v900 = vrot.slane %v893, %v899
      %v902 = vunpack.c.l.s4 1966171168
      %v903 = vunpack.c.0.s8 %v902
      %v904 = vlaneseq
      %v905 = vshrl.u32 %v904, 7
      %v906 = vsub.s32 %v903, %v905
      %v907 = vrot.slane %v900, %v906
      %s909 = scalar_lea.vmem [#allocation2], 11
      %910 = vst.msk [vmem:[%s909] ss:$8 sm:$0x3] %vm383, %v907
      %911 = vst.msk [vmem:[%s909] ss:$8 sm:$0x0] %vm383, %v907
      %v912 = vmax.f32 %v863, %v867
      %v913 = vmax.f32 %v865, %v869
      %v914 = vmax.f32 %v912, %v913
      %v915 = vrot.slane %v914, 4
      %v916 = vmax.f32 %v914, %v915
      %v917 = vrot.slane %v916, 2
      %v918 = vmax.f32 %v916, %v917
      %v919 = vrot.slane %v918, 1
      %v920 = vmax.f32 %v918, %v919
      %v921 = vmax.f32 %v864, %v868
      %v922 = vmax.f32 %v866, %v870
      %v923 = vmax.f32 %v921, %v922
      %v924 = vrot.slane %v923, 4
      %v925 = vmax.f32 %v923, %v924
      %v926 = vrot.slane %v925, 2
      %v927 = vmax.f32 %v925, %v926
      %v928 = vrot.slane %v927, 1
      %v929 = vmax.f32 %v927, %v928
      %v932 = vcombine.low %v920, %v929
      %v934 = vunpack.c.l.s4 1966171168
      %v935 = vunpack.c.0.s8 %v934
      %v936 = vlaneseq
      %v937 = vshrl.u32 %v936, 7
      %v938 = vsub.s32 %v935, %v937
      %v939 = vrot.slane %v932, %v938
      %v941 = vunpack.c.l.s4 1966171168
      %v942 = vunpack.c.0.s8 %v941
      %v943 = vlaneseq
      %v944 = vshrl.u32 %v943, 7
      %v945 = vsub.s32 %v942, %v944
      %v946 = vrot.slane %v939, %v945
      %s948 = scalar_lea.vmem [#allocation2], 43
      %949 = vst.msk [vmem:[%s948] ss:$8 sm:$0x3] %vm383, %v946
      %950 = vst.msk [vmem:[%s948] ss:$8 sm:$0x0] %vm383, %v946
      %s951 = scalar_lea.vmem %s224, 256
      %v952 = vld [vmem:[%s951] sm:$0xff]
      %v953 = vld [vmem:[%s951 + $0x8] sm:$0xff]
      %v954 = vld [vmem:[%s951 + $0x10] sm:$0xff]
      %v955 = vld [vmem:[%s951 + $0x18] sm:$0xff]
      %v956 = vld [vmem:[%s951 + $0x20] sm:$0xff]
      %v957 = vld [vmem:[%s951 + $0x28] sm:$0xff]
      %v958 = vld [vmem:[%s951 + $0x30] sm:$0xff]
      %v959 = vld [vmem:[%s951 + $0x38] sm:$0xff]
      %v960 = vadd.f32 %v952, %v953
      %961 = vadd.xlane.f32.xlu0 %v960
      %v962 = vpop.xlane.xlu0 %961
      %v963 = vadd.f32 %v954, %v955
      %964 = vadd.xlane.f32.xlu0 %v963
      %v965 = vpop.xlane.xlu0 %964
      %v966 = vadd.f32 %v956, %v957
      %967 = vadd.xlane.f32.xlu0 %v966
      %v968 = vpop.xlane.xlu0 %967
      %v969 = vadd.f32 %v958, %v959
      %970 = vadd.xlane.f32.xlu0 %v969
      %v971 = vpop.xlane.xlu0 %970
      %v972 = vmul.f32 %v962, %v265
      %v973 = vmul.f32 %v965, %v265
      %v974 = vmul.f32 %v968, %v265
      %v975 = vmul.f32 %v971, %v265
      %v976 = vmul.f32 %v233, %v972
      %v977 = vmul.f32 %v234, %v973
      %v978 = vmul.f32 %v235, %v974
      %v979 = vmul.f32 %v236, %v975
      %v980 = vsel %vm274, %v976, 0.0
      %v981 = vsel %vm274, %v977, 0.0
      %v982 = vadd.f32 %v980, %v981
      %v983 = vsel %vm274, %v978, 0.0
      %v984 = vadd.f32 %v982, %v983
      %v985 = vsel %vm274, %v979, 0.0
      %v986 = vadd.f32 %v984, %v985
      %v987 = vrot.slane %v986, 4
      %v988 = vadd.f32 %v986, %v987
      %v989 = vrot.slane %v988, 2
      %v990 = vadd.f32 %v988, %v989
      %v991 = vrot.slane %v990, 1
      %v992 = vadd.f32 %v990, %v991
      %v993 = vmax.f32 %v992, 0.0
      %v994 = vmul.f32 %v237, %v993
      %v995 = vmul.f32 %v238, %v993
      %v996 = vmul.f32 %v239, %v993
      %v997 = vmul.f32 %v240, %v993
      %v998 = vsel %vm274, %v994, 0.0
      %999 = vadd.xlane.f32.xlu0 %v998
      %v1000 = vpop.xlane.xlu0 %999
      %v1001 = vsel %vm274, %v995, 0.0
      %1002 = vadd.xlane.f32.xlu0 %v1001
      %v1003 = vpop.xlane.xlu0 %1002
      %v1004 = vsel %vm274, %v996, 0.0
      %1005 = vadd.xlane.f32.xlu0 %v1004
      %v1006 = vpop.xlane.xlu0 %1005
      %v1007 = vsel %vm274, %v997, 0.0
      %1008 = vadd.xlane.f32.xlu0 %v1007
      %v1009 = vpop.xlane.xlu0 %1008
      %v1010 = vadd.f32 %v1000, %v1000
      %v1011 = vadd.f32 %v1003, %v1003
      %v1012 = vadd.f32 %v1006, %v1006
      %v1013 = vadd.f32 %v1009, %v1009
      %v1014 = vxor.u32 %v1010, 2147483648
      %v1015 = vxor.u32 %v1011, 2147483648
      %v1016 = vxor.u32 %v1012, 2147483648
      %v1017 = vxor.u32 %v1013, 2147483648
      %v1018 = vmul.f32 %v1014, 1.442695
      %v1019 = vpow.pop %v1018
      %v1020 = vmul.f32 %v1015, 1.442695
      %v1021 = vpow.pop %v1020
      %v1022 = vmul.f32 %v1016, 1.442695
      %v1023 = vpow.pop %v1022
      %v1024 = vmul.f32 %v1017, 1.442695
      %v1025 = vpow.pop %v1024
      %v1026 = vadd.f32 %v1019, 1.0
      %v1027 = vadd.f32 %v1021, 1.0
      %v1028 = vadd.f32 %v1023, 1.0
      %v1029 = vadd.f32 %v1025, 1.0
      %v1030 = vrcp.pop %v1026
      %v1031 = vmul.f32 1.0, %v1030
      %v1032 = vrcp.pop %v1027
      %v1033 = vmul.f32 1.0, %v1032
      %v1034 = vrcp.pop %v1028
      %v1035 = vmul.f32 1.0, %v1034
      %v1036 = vrcp.pop %v1029
      %v1037 = vmul.f32 1.0, %v1036
      %v1038 = vmul.f32 %v952, %v1031
      %v1039 = vmul.f32 %v953, %v1031
      %v1040 = vmul.f32 %v954, %v1033
      %v1041 = vmul.f32 %v955, %v1033
      %v1042 = vmul.f32 %v956, %v1035
      %v1043 = vmul.f32 %v957, %v1035
      %v1044 = vmul.f32 %v958, %v1037
      %v1045 = vmul.f32 %v959, %v1037
      %v1046 = vadd.f32 %v1038, %v1040
      %v1047 = vadd.f32 %v1046, %v1042
      %v1048 = vadd.f32 %v1047, %v1044
      %v1049 = vrot.slane %v1048, 4
      %v1050 = vadd.f32 %v1048, %v1049
      %v1051 = vrot.slane %v1050, 2
      %v1052 = vadd.f32 %v1050, %v1051
      %v1053 = vrot.slane %v1052, 1
      %v1054 = vadd.f32 %v1052, %v1053
      %v1055 = vadd.f32 %v1039, %v1041
      %v1056 = vadd.f32 %v1055, %v1043
      %v1057 = vadd.f32 %v1056, %v1045
      %v1058 = vrot.slane %v1057, 4
      %v1059 = vadd.f32 %v1057, %v1058
      %v1060 = vrot.slane %v1059, 2
      %v1061 = vadd.f32 %v1059, %v1060
      %v1062 = vrot.slane %v1061, 1
      %v1063 = vadd.f32 %v1061, %v1062
      %v1064 = vmul.f32 %v1054, %v359
      %v1065 = vmul.f32 %v1063, %v359
      %v1068 = vcombine.low %v1064, %v1065
      %v1070 = vunpack.c.l.s4 1966171168
      %v1071 = vunpack.c.0.s8 %v1070
      %v1072 = vlaneseq
      %v1073 = vshrl.u32 %v1072, 7
      %v1074 = vsub.s32 %v1071, %v1073
      %v1075 = vrot.slane %v1068, %v1074
      %v1077 = vunpack.c.l.s4 1966171168
      %v1078 = vunpack.c.0.s8 %v1077
      %v1079 = vlaneseq
      %v1080 = vshrl.u32 %v1079, 7
      %v1081 = vsub.s32 %v1078, %v1080
      %v1082 = vrot.slane %v1075, %v1081
      %s1084 = scalar_lea.vmem [#allocation2], 12
      %1085 = vst.msk [vmem:[%s1084] ss:$8 sm:$0x3] %vm383, %v1082
      %1086 = vst.msk [vmem:[%s1084] ss:$8 sm:$0x0] %vm383, %v1082
      %v1087 = vmax.f32 %v1038, %v1042
      %v1088 = vmax.f32 %v1040, %v1044
      %v1089 = vmax.f32 %v1087, %v1088
      %v1090 = vrot.slane %v1089, 4
      %v1091 = vmax.f32 %v1089, %v1090
      %v1092 = vrot.slane %v1091, 2
      %v1093 = vmax.f32 %v1091, %v1092
      %v1094 = vrot.slane %v1093, 1
      %v1095 = vmax.f32 %v1093, %v1094
      %v1096 = vmax.f32 %v1039, %v1043
      %v1097 = vmax.f32 %v1041, %v1045
      %v1098 = vmax.f32 %v1096, %v1097
      %v1099 = vrot.slane %v1098, 4
      %v1100 = vmax.f32 %v1098, %v1099
      %v1101 = vrot.slane %v1100, 2
      %v1102 = vmax.f32 %v1100, %v1101
      %v1103 = vrot.slane %v1102, 1
      %v1104 = vmax.f32 %v1102, %v1103
      %v1107 = vcombine.low %v1095, %v1104
      %v1109 = vunpack.c.l.s4 1966171168
      %v1110 = vunpack.c.0.s8 %v1109
      %v1111 = vlaneseq
      %v1112 = vshrl.u32 %v1111, 7
      %v1113 = vsub.s32 %v1110, %v1112
      %v1114 = vrot.slane %v1107, %v1113
      %v1116 = vunpack.c.l.s4 1966171168
      %v1117 = vunpack.c.0.s8 %v1116
      %v1118 = vlaneseq
      %v1119 = vshrl.u32 %v1118, 7
      %v1120 = vsub.s32 %v1117, %v1119
      %v1121 = vrot.slane %v1114, %v1120
      %s1123 = scalar_lea.vmem [#allocation2], 44
      %1124 = vst.msk [vmem:[%s1123] ss:$8 sm:$0x3] %vm383, %v1121
      %1125 = vst.msk [vmem:[%s1123] ss:$8 sm:$0x0] %vm383, %v1121
      %s1126 = scalar_lea.vmem %s224, 320
      %v1127 = vld [vmem:[%s1126] sm:$0xff]
      %v1128 = vld [vmem:[%s1126 + $0x8] sm:$0xff]
      %v1129 = vld [vmem:[%s1126 + $0x10] sm:$0xff]
      %v1130 = vld [vmem:[%s1126 + $0x18] sm:$0xff]
      %v1131 = vld [vmem:[%s1126 + $0x20] sm:$0xff]
      %v1132 = vld [vmem:[%s1126 + $0x28] sm:$0xff]
      %v1133 = vld [vmem:[%s1126 + $0x30] sm:$0xff]
      %v1134 = vld [vmem:[%s1126 + $0x38] sm:$0xff]
      %v1135 = vadd.f32 %v1127, %v1128
      %1136 = vadd.xlane.f32.xlu0 %v1135
      %v1137 = vpop.xlane.xlu0 %1136
      %v1138 = vadd.f32 %v1129, %v1130
      %1139 = vadd.xlane.f32.xlu0 %v1138
      %v1140 = vpop.xlane.xlu0 %1139
      %v1141 = vadd.f32 %v1131, %v1132
      %1142 = vadd.xlane.f32.xlu0 %v1141
      %v1143 = vpop.xlane.xlu0 %1142
      %v1144 = vadd.f32 %v1133, %v1134
      %1145 = vadd.xlane.f32.xlu0 %v1144
      %v1146 = vpop.xlane.xlu0 %1145
      %v1147 = vmul.f32 %v1137, %v265
      %v1148 = vmul.f32 %v1140, %v265
      %v1149 = vmul.f32 %v1143, %v265
      %v1150 = vmul.f32 %v1146, %v265
      %v1151 = vmul.f32 %v233, %v1147
      %v1152 = vmul.f32 %v234, %v1148
      %v1153 = vmul.f32 %v235, %v1149
      %v1154 = vmul.f32 %v236, %v1150
      %v1155 = vsel %vm274, %v1151, 0.0
      %v1156 = vsel %vm274, %v1152, 0.0
      %v1157 = vadd.f32 %v1155, %v1156
      %v1158 = vsel %vm274, %v1153, 0.0
      %v1159 = vadd.f32 %v1157, %v1158
      %v1160 = vsel %vm274, %v1154, 0.0
      %v1161 = vadd.f32 %v1159, %v1160
      %v1162 = vrot.slane %v1161, 4
      %v1163 = vadd.f32 %v1161, %v1162
      %v1164 = vrot.slane %v1163, 2
      %v1165 = vadd.f32 %v1163, %v1164
      %v1166 = vrot.slane %v1165, 1
      %v1167 = vadd.f32 %v1165, %v1166
      %v1168 = vmax.f32 %v1167, 0.0
      %v1169 = vmul.f32 %v237, %v1168
      %v1170 = vmul.f32 %v238, %v1168
      %v1171 = vmul.f32 %v239, %v1168
      %v1172 = vmul.f32 %v240, %v1168
      %v1173 = vsel %vm274, %v1169, 0.0
      %1174 = vadd.xlane.f32.xlu0 %v1173
      %v1175 = vpop.xlane.xlu0 %1174
      %v1176 = vsel %vm274, %v1170, 0.0
      %1177 = vadd.xlane.f32.xlu0 %v1176
      %v1178 = vpop.xlane.xlu0 %1177
      %v1179 = vsel %vm274, %v1171, 0.0
      %1180 = vadd.xlane.f32.xlu0 %v1179
      %v1181 = vpop.xlane.xlu0 %1180
      %v1182 = vsel %vm274, %v1172, 0.0
      %1183 = vadd.xlane.f32.xlu0 %v1182
      %v1184 = vpop.xlane.xlu0 %1183
      %v1185 = vadd.f32 %v1175, %v1175
      %v1186 = vadd.f32 %v1178, %v1178
      %v1187 = vadd.f32 %v1181, %v1181
      %v1188 = vadd.f32 %v1184, %v1184
      %v1189 = vxor.u32 %v1185, 2147483648
      %v1190 = vxor.u32 %v1186, 2147483648
      %v1191 = vxor.u32 %v1187, 2147483648
      %v1192 = vxor.u32 %v1188, 2147483648
      %v1193 = vmul.f32 %v1189, 1.442695
      %v1194 = vpow.pop %v1193
      %v1195 = vmul.f32 %v1190, 1.442695
      %v1196 = vpow.pop %v1195
      %v1197 = vmul.f32 %v1191, 1.442695
      %v1198 = vpow.pop %v1197
      %v1199 = vmul.f32 %v1192, 1.442695
      %v1200 = vpow.pop %v1199
      %v1201 = vadd.f32 %v1194, 1.0
      %v1202 = vadd.f32 %v1196, 1.0
      %v1203 = vadd.f32 %v1198, 1.0
      %v1204 = vadd.f32 %v1200, 1.0
      %v1205 = vrcp.pop %v1201
      %v1206 = vmul.f32 1.0, %v1205
      %v1207 = vrcp.pop %v1202
      %v1208 = vmul.f32 1.0, %v1207
      %v1209 = vrcp.pop %v1203
      %v1210 = vmul.f32 1.0, %v1209
      %v1211 = vrcp.pop %v1204
      %v1212 = vmul.f32 1.0, %v1211
      %v1213 = vmul.f32 %v1127, %v1206
      %v1214 = vmul.f32 %v1128, %v1206
      %v1215 = vmul.f32 %v1129, %v1208
      %v1216 = vmul.f32 %v1130, %v1208
      %v1217 = vmul.f32 %v1131, %v1210
      %v1218 = vmul.f32 %v1132, %v1210
      %v1219 = vmul.f32 %v1133, %v1212
      %v1220 = vmul.f32 %v1134, %v1212
      %v1221 = vadd.f32 %v1213, %v1215
      %v1222 = vadd.f32 %v1221, %v1217
      %v1223 = vadd.f32 %v1222, %v1219
      %v1224 = vrot.slane %v1223, 4
      %v1225 = vadd.f32 %v1223, %v1224
      %v1226 = vrot.slane %v1225, 2
      %v1227 = vadd.f32 %v1225, %v1226
      %v1228 = vrot.slane %v1227, 1
      %v1229 = vadd.f32 %v1227, %v1228
      %v1230 = vadd.f32 %v1214, %v1216
      %v1231 = vadd.f32 %v1230, %v1218
      %v1232 = vadd.f32 %v1231, %v1220
      %v1233 = vrot.slane %v1232, 4
      %v1234 = vadd.f32 %v1232, %v1233
      %v1235 = vrot.slane %v1234, 2
      %v1236 = vadd.f32 %v1234, %v1235
      %v1237 = vrot.slane %v1236, 1
      %v1238 = vadd.f32 %v1236, %v1237
      %v1239 = vmul.f32 %v1229, %v359
      %v1240 = vmul.f32 %v1238, %v359
      %v1243 = vcombine.low %v1239, %v1240
      %v1245 = vunpack.c.l.s4 1966171168
      %v1246 = vunpack.c.0.s8 %v1245
      %v1247 = vlaneseq
      %v1248 = vshrl.u32 %v1247, 7
      %v1249 = vsub.s32 %v1246, %v1248
      %v1250 = vrot.slane %v1243, %v1249
      %v1252 = vunpack.c.l.s4 1966171168
      %v1253 = vunpack.c.0.s8 %v1252
      %v1254 = vlaneseq
      %v1255 = vshrl.u32 %v1254, 7
      %v1256 = vsub.s32 %v1253, %v1255
      %v1257 = vrot.slane %v1250, %v1256
      %s1259 = scalar_lea.vmem [#allocation2], 13
      %1260 = vst.msk [vmem:[%s1259] ss:$8 sm:$0x3] %vm383, %v1257
      %1261 = vst.msk [vmem:[%s1259] ss:$8 sm:$0x0] %vm383, %v1257
      %v1262 = vmax.f32 %v1213, %v1217
      %v1263 = vmax.f32 %v1215, %v1219
      %v1264 = vmax.f32 %v1262, %v1263
      %v1265 = vrot.slane %v1264, 4
      %v1266 = vmax.f32 %v1264, %v1265
      %v1267 = vrot.slane %v1266, 2
      %v1268 = vmax.f32 %v1266, %v1267
      %v1269 = vrot.slane %v1268, 1
      %v1270 = vmax.f32 %v1268, %v1269
      %v1271 = vmax.f32 %v1214, %v1218
      %v1272 = vmax.f32 %v1216, %v1220
      %v1273 = vmax.f32 %v1271, %v1272
      %v1274 = vrot.slane %v1273, 4
      %v1275 = vmax.f32 %v1273, %v1274
      %v1276 = vrot.slane %v1275, 2
      %v1277 = vmax.f32 %v1275, %v1276
      %v1278 = vrot.slane %v1277, 1
      %v1279 = vmax.f32 %v1277, %v1278
      %v1282 = vcombine.low %v1270, %v1279
      %v1284 = vunpack.c.l.s4 1966171168
      %v1285 = vunpack.c.0.s8 %v1284
      %v1286 = vlaneseq
      %v1287 = vshrl.u32 %v1286, 7
      %v1288 = vsub.s32 %v1285, %v1287
      %v1289 = vrot.slane %v1282, %v1288
      %v1291 = vunpack.c.l.s4 1966171168
      %v1292 = vunpack.c.0.s8 %v1291
      %v1293 = vlaneseq
      %v1294 = vshrl.u32 %v1293, 7
      %v1295 = vsub.s32 %v1292, %v1294
      %v1296 = vrot.slane %v1289, %v1295
      %s1298 = scalar_lea.vmem [#allocation2], 45
      %1299 = vst.msk [vmem:[%s1298] ss:$8 sm:$0x3] %vm383, %v1296
      %1300 = vst.msk [vmem:[%s1298] ss:$8 sm:$0x0] %vm383, %v1296
      %s1301 = scalar_lea.vmem %s224, 384
      %v1302 = vld [vmem:[%s1301] sm:$0xff]
      %v1303 = vld [vmem:[%s1301 + $0x8] sm:$0xff]
      %v1304 = vld [vmem:[%s1301 + $0x10] sm:$0xff]
      %v1305 = vld [vmem:[%s1301 + $0x18] sm:$0xff]
      %v1306 = vld [vmem:[%s1301 + $0x20] sm:$0xff]
      %v1307 = vld [vmem:[%s1301 + $0x28] sm:$0xff]
      %v1308 = vld [vmem:[%s1301 + $0x30] sm:$0xff]
      %v1309 = vld [vmem:[%s1301 + $0x38] sm:$0xff]
      %v1310 = vadd.f32 %v1302, %v1303
      %1311 = vadd.xlane.f32.xlu0 %v1310
      %v1312 = vpop.xlane.xlu0 %1311
      %v1313 = vadd.f32 %v1304, %v1305
      %1314 = vadd.xlane.f32.xlu0 %v1313
      %v1315 = vpop.xlane.xlu0 %1314
      %v1316 = vadd.f32 %v1306, %v1307
      %1317 = vadd.xlane.f32.xlu0 %v1316
      %v1318 = vpop.xlane.xlu0 %1317
      %v1319 = vadd.f32 %v1308, %v1309
      %1320 = vadd.xlane.f32.xlu0 %v1319
      %v1321 = vpop.xlane.xlu0 %1320
      %v1322 = vmul.f32 %v1312, %v265
      %v1323 = vmul.f32 %v1315, %v265
      %v1324 = vmul.f32 %v1318, %v265
      %v1325 = vmul.f32 %v1321, %v265
      %v1326 = vmul.f32 %v233, %v1322
      %v1327 = vmul.f32 %v234, %v1323
      %v1328 = vmul.f32 %v235, %v1324
      %v1329 = vmul.f32 %v236, %v1325
      %v1330 = vsel %vm274, %v1326, 0.0
      %v1331 = vsel %vm274, %v1327, 0.0
      %v1332 = vadd.f32 %v1330, %v1331
      %v1333 = vsel %vm274, %v1328, 0.0
      %v1334 = vadd.f32 %v1332, %v1333
      %v1335 = vsel %vm274, %v1329, 0.0
      %v1336 = vadd.f32 %v1334, %v1335
      %v1337 = vrot.slane %v1336, 4
      %v1338 = vadd.f32 %v1336, %v1337
      %v1339 = vrot.slane %v1338, 2
      %v1340 = vadd.f32 %v1338, %v1339
      %v1341 = vrot.slane %v1340, 1
      %v1342 = vadd.f32 %v1340, %v1341
      %v1343 = vmax.f32 %v1342, 0.0
      %v1344 = vmul.f32 %v237, %v1343
      %v1345 = vmul.f32 %v238, %v1343
      %v1346 = vmul.f32 %v239, %v1343
      %v1347 = vmul.f32 %v240, %v1343
      %v1348 = vsel %vm274, %v1344, 0.0
      %1349 = vadd.xlane.f32.xlu0 %v1348
      %v1350 = vpop.xlane.xlu0 %1349
      %v1351 = vsel %vm274, %v1345, 0.0
      %1352 = vadd.xlane.f32.xlu0 %v1351
      %v1353 = vpop.xlane.xlu0 %1352
      %v1354 = vsel %vm274, %v1346, 0.0
      %1355 = vadd.xlane.f32.xlu0 %v1354
      %v1356 = vpop.xlane.xlu0 %1355
      %v1357 = vsel %vm274, %v1347, 0.0
      %1358 = vadd.xlane.f32.xlu0 %v1357
      %v1359 = vpop.xlane.xlu0 %1358
      %v1360 = vadd.f32 %v1350, %v1350
      %v1361 = vadd.f32 %v1353, %v1353
      %v1362 = vadd.f32 %v1356, %v1356
      %v1363 = vadd.f32 %v1359, %v1359
      %v1364 = vxor.u32 %v1360, 2147483648
      %v1365 = vxor.u32 %v1361, 2147483648
      %v1366 = vxor.u32 %v1362, 2147483648
      %v1367 = vxor.u32 %v1363, 2147483648
      %v1368 = vmul.f32 %v1364, 1.442695
      %v1369 = vpow.pop %v1368
      %v1370 = vmul.f32 %v1365, 1.442695
      %v1371 = vpow.pop %v1370
      %v1372 = vmul.f32 %v1366, 1.442695
      %v1373 = vpow.pop %v1372
      %v1374 = vmul.f32 %v1367, 1.442695
      %v1375 = vpow.pop %v1374
      %v1376 = vadd.f32 %v1369, 1.0
      %v1377 = vadd.f32 %v1371, 1.0
      %v1378 = vadd.f32 %v1373, 1.0
      %v1379 = vadd.f32 %v1375, 1.0
      %v1380 = vrcp.pop %v1376
      %v1381 = vmul.f32 1.0, %v1380
      %v1382 = vrcp.pop %v1377
      %v1383 = vmul.f32 1.0, %v1382
      %v1384 = vrcp.pop %v1378
      %v1385 = vmul.f32 1.0, %v1384
      %v1386 = vrcp.pop %v1379
      %v1387 = vmul.f32 1.0, %v1386
      %v1388 = vmul.f32 %v1302, %v1381
      %v1389 = vmul.f32 %v1303, %v1381
      %v1390 = vmul.f32 %v1304, %v1383
      %v1391 = vmul.f32 %v1305, %v1383
      %v1392 = vmul.f32 %v1306, %v1385
      %v1393 = vmul.f32 %v1307, %v1385
      %v1394 = vmul.f32 %v1308, %v1387
      %v1395 = vmul.f32 %v1309, %v1387
      %v1396 = vadd.f32 %v1388, %v1390
      %v1397 = vadd.f32 %v1396, %v1392
      %v1398 = vadd.f32 %v1397, %v1394
      %v1399 = vrot.slane %v1398, 4
      %v1400 = vadd.f32 %v1398, %v1399
      %v1401 = vrot.slane %v1400, 2
      %v1402 = vadd.f32 %v1400, %v1401
      %v1403 = vrot.slane %v1402, 1
      %v1404 = vadd.f32 %v1402, %v1403
      %v1405 = vadd.f32 %v1389, %v1391
      %v1406 = vadd.f32 %v1405, %v1393
      %v1407 = vadd.f32 %v1406, %v1395
      %v1408 = vrot.slane %v1407, 4
      %v1409 = vadd.f32 %v1407, %v1408
      %v1410 = vrot.slane %v1409, 2
      %v1411 = vadd.f32 %v1409, %v1410
      %v1412 = vrot.slane %v1411, 1
      %v1413 = vadd.f32 %v1411, %v1412
      %v1414 = vmul.f32 %v1404, %v359
      %v1415 = vmul.f32 %v1413, %v359
      %v1418 = vcombine.low %v1414, %v1415
      %v1420 = vunpack.c.l.s4 1966171168
      %v1421 = vunpack.c.0.s8 %v1420
      %v1422 = vlaneseq
      %v1423 = vshrl.u32 %v1422, 7
      %v1424 = vsub.s32 %v1421, %v1423
      %v1425 = vrot.slane %v1418, %v1424
      %v1427 = vunpack.c.l.s4 1966171168
      %v1428 = vunpack.c.0.s8 %v1427
      %v1429 = vlaneseq
      %v1430 = vshrl.u32 %v1429, 7
      %v1431 = vsub.s32 %v1428, %v1430
      %v1432 = vrot.slane %v1425, %v1431
      %s1434 = scalar_lea.vmem [#allocation2], 14
      %1435 = vst.msk [vmem:[%s1434] ss:$8 sm:$0x3] %vm383, %v1432
      %1436 = vst.msk [vmem:[%s1434] ss:$8 sm:$0x0] %vm383, %v1432
      %v1437 = vmax.f32 %v1388, %v1392
      %v1438 = vmax.f32 %v1390, %v1394
      %v1439 = vmax.f32 %v1437, %v1438
      %v1440 = vrot.slane %v1439, 4
      %v1441 = vmax.f32 %v1439, %v1440
      %v1442 = vrot.slane %v1441, 2
      %v1443 = vmax.f32 %v1441, %v1442
      %v1444 = vrot.slane %v1443, 1
      %v1445 = vmax.f32 %v1443, %v1444
      %v1446 = vmax.f32 %v1389, %v1393
      %v1447 = vmax.f32 %v1391, %v1395
      %v1448 = vmax.f32 %v1446, %v1447
      %v1449 = vrot.slane %v1448, 4
      %v1450 = vmax.f32 %v1448, %v1449
      %v1451 = vrot.slane %v1450, 2
      %v1452 = vmax.f32 %v1450, %v1451
      %v1453 = vrot.slane %v1452, 1
      %v1454 = vmax.f32 %v1452, %v1453
      %v1457 = vcombine.low %v1445, %v1454
      %v1459 = vunpack.c.l.s4 1966171168
      %v1460 = vunpack.c.0.s8 %v1459
      %v1461 = vlaneseq
      %v1462 = vshrl.u32 %v1461, 7
      %v1463 = vsub.s32 %v1460, %v1462
      %v1464 = vrot.slane %v1457, %v1463
      %v1466 = vunpack.c.l.s4 1966171168
      %v1467 = vunpack.c.0.s8 %v1466
      %v1468 = vlaneseq
      %v1469 = vshrl.u32 %v1468, 7
      %v1470 = vsub.s32 %v1467, %v1469
      %v1471 = vrot.slane %v1464, %v1470
      %s1473 = scalar_lea.vmem [#allocation2], 46
      %1474 = vst.msk [vmem:[%s1473] ss:$8 sm:$0x3] %vm383, %v1471
      %1475 = vst.msk [vmem:[%s1473] ss:$8 sm:$0x0] %vm383, %v1471
      %s1476 = scalar_lea.vmem %s224, 448
      %v1477 = vld [vmem:[%s1476] sm:$0xff]
      %v1478 = vld [vmem:[%s1476 + $0x8] sm:$0xff]
      %v1479 = vld [vmem:[%s1476 + $0x10] sm:$0xff]
      %v1480 = vld [vmem:[%s1476 + $0x18] sm:$0xff]
      %v1481 = vld [vmem:[%s1476 + $0x20] sm:$0xff]
      %v1482 = vld [vmem:[%s1476 + $0x28] sm:$0xff]
      %v1483 = vld [vmem:[%s1476 + $0x30] sm:$0xff]
      %v1484 = vld [vmem:[%s1476 + $0x38] sm:$0xff]
      %v1485 = vadd.f32 %v1477, %v1478
      %1486 = vadd.xlane.f32.xlu0 %v1485
      %v1487 = vpop.xlane.xlu0 %1486
      %v1488 = vadd.f32 %v1479, %v1480
      %1489 = vadd.xlane.f32.xlu0 %v1488
      %v1490 = vpop.xlane.xlu0 %1489
      %v1491 = vadd.f32 %v1481, %v1482
      %1492 = vadd.xlane.f32.xlu0 %v1491
      %v1493 = vpop.xlane.xlu0 %1492
      %v1494 = vadd.f32 %v1483, %v1484
      %1495 = vadd.xlane.f32.xlu0 %v1494
      %v1496 = vpop.xlane.xlu0 %1495
      %v1497 = vmul.f32 %v1487, %v265
      %v1498 = vmul.f32 %v1490, %v265
      %v1499 = vmul.f32 %v1493, %v265
      %v1500 = vmul.f32 %v1496, %v265
      %v1501 = vmul.f32 %v233, %v1497
      %v1502 = vmul.f32 %v234, %v1498
      %v1503 = vmul.f32 %v235, %v1499
      %v1504 = vmul.f32 %v236, %v1500
      %v1505 = vsel %vm274, %v1501, 0.0
      %v1506 = vsel %vm274, %v1502, 0.0
      %v1507 = vadd.f32 %v1505, %v1506
      %v1508 = vsel %vm274, %v1503, 0.0
      %v1509 = vadd.f32 %v1507, %v1508
      %v1510 = vsel %vm274, %v1504, 0.0
      %v1511 = vadd.f32 %v1509, %v1510
      %v1512 = vrot.slane %v1511, 4
      %v1513 = vadd.f32 %v1511, %v1512
      %v1514 = vrot.slane %v1513, 2
      %v1515 = vadd.f32 %v1513, %v1514
      %v1516 = vrot.slane %v1515, 1
      %v1517 = vadd.f32 %v1515, %v1516
      %v1518 = vmax.f32 %v1517, 0.0
      %v1519 = vmul.f32 %v237, %v1518
      %v1520 = vmul.f32 %v238, %v1518
      %v1521 = vmul.f32 %v239, %v1518
      %v1522 = vmul.f32 %v240, %v1518
      %v1523 = vsel %vm274, %v1519, 0.0
      %1524 = vadd.xlane.f32.xlu0 %v1523
      %v1525 = vpop.xlane.xlu0 %1524
      %v1526 = vsel %vm274, %v1520, 0.0
      %1527 = vadd.xlane.f32.xlu0 %v1526
      %v1528 = vpop.xlane.xlu0 %1527
      %v1529 = vsel %vm274, %v1521, 0.0
      %1530 = vadd.xlane.f32.xlu0 %v1529
      %v1531 = vpop.xlane.xlu0 %1530
      %v1532 = vsel %vm274, %v1522, 0.0
      %1533 = vadd.xlane.f32.xlu0 %v1532
      %v1534 = vpop.xlane.xlu0 %1533
      %v1535 = vadd.f32 %v1525, %v1525
      %v1536 = vadd.f32 %v1528, %v1528
      %v1537 = vadd.f32 %v1531, %v1531
      %v1538 = vadd.f32 %v1534, %v1534
      %v1539 = vxor.u32 %v1535, 2147483648
      %v1540 = vxor.u32 %v1536, 2147483648
      %v1541 = vxor.u32 %v1537, 2147483648
      %v1542 = vxor.u32 %v1538, 2147483648
      %v1543 = vmul.f32 %v1539, 1.442695
      %v1544 = vpow.pop %v1543
      %v1545 = vmul.f32 %v1540, 1.442695
      %v1546 = vpow.pop %v1545
      %v1547 = vmul.f32 %v1541, 1.442695
      %v1548 = vpow.pop %v1547
      %v1549 = vmul.f32 %v1542, 1.442695
      %v1550 = vpow.pop %v1549
      %v1551 = vadd.f32 %v1544, 1.0
      %v1552 = vadd.f32 %v1546, 1.0
      %v1553 = vadd.f32 %v1548, 1.0
      %v1554 = vadd.f32 %v1550, 1.0
      %v1555 = vrcp.pop %v1551
      %v1556 = vmul.f32 1.0, %v1555
      %v1557 = vrcp.pop %v1552
      %v1558 = vmul.f32 1.0, %v1557
      %v1559 = vrcp.pop %v1553
      %v1560 = vmul.f32 1.0, %v1559
      %v1561 = vrcp.pop %v1554
      %v1562 = vmul.f32 1.0, %v1561
      %v1563 = vmul.f32 %v1477, %v1556
      %v1564 = vmul.f32 %v1478, %v1556
      %v1565 = vmul.f32 %v1479, %v1558
      %v1566 = vmul.f32 %v1480, %v1558
      %v1567 = vmul.f32 %v1481, %v1560
      %v1568 = vmul.f32 %v1482, %v1560
      %v1569 = vmul.f32 %v1483, %v1562
      %v1570 = vmul.f32 %v1484, %v1562
      %v1571 = vadd.f32 %v1563, %v1565
      %v1572 = vadd.f32 %v1571, %v1567
      %v1573 = vadd.f32 %v1572, %v1569
      %v1574 = vrot.slane %v1573, 4
      %v1575 = vadd.f32 %v1573, %v1574
      %v1576 = vrot.slane %v1575, 2
      %v1577 = vadd.f32 %v1575, %v1576
      %v1578 = vrot.slane %v1577, 1
      %v1579 = vadd.f32 %v1577, %v1578
      %v1580 = vadd.f32 %v1564, %v1566
      %v1581 = vadd.f32 %v1580, %v1568
      %v1582 = vadd.f32 %v1581, %v1570
      %v1583 = vrot.slane %v1582, 4
      %v1584 = vadd.f32 %v1582, %v1583
      %v1585 = vrot.slane %v1584, 2
      %v1586 = vadd.f32 %v1584, %v1585
      %v1587 = vrot.slane %v1586, 1
      %v1588 = vadd.f32 %v1586, %v1587
      %v1589 = vmul.f32 %v1579, %v359
      %v1590 = vmul.f32 %v1588, %v359
      %v1593 = vcombine.low %v1589, %v1590
      %v1595 = vunpack.c.l.s4 1966171168
      %v1596 = vunpack.c.0.s8 %v1595
      %v1597 = vlaneseq
      %v1598 = vshrl.u32 %v1597, 7
      %v1599 = vsub.s32 %v1596, %v1598
      %v1600 = vrot.slane %v1593, %v1599
      %v1602 = vunpack.c.l.s4 1966171168
      %v1603 = vunpack.c.0.s8 %v1602
      %v1604 = vlaneseq
      %v1605 = vshrl.u32 %v1604, 7
      %v1606 = vsub.s32 %v1603, %v1605
      %v1607 = vrot.slane %v1600, %v1606
      %s1609 = scalar_lea.vmem [#allocation2], 15
      %1610 = vst.msk [vmem:[%s1609] ss:$8 sm:$0x3] %vm383, %v1607
      %1611 = vst.msk [vmem:[%s1609] ss:$8 sm:$0x0] %vm383, %v1607
      %v1612 = vmax.f32 %v1563, %v1567
      %v1613 = vmax.f32 %v1565, %v1569
      %v1614 = vmax.f32 %v1612, %v1613
      %v1615 = vrot.slane %v1614, 4
      %v1616 = vmax.f32 %v1614, %v1615
      %v1617 = vrot.slane %v1616, 2
      %v1618 = vmax.f32 %v1616, %v1617
      %v1619 = vrot.slane %v1618, 1
      %v1620 = vmax.f32 %v1618, %v1619
      %v1621 = vmax.f32 %v1564, %v1568
      %v1622 = vmax.f32 %v1566, %v1570
      %v1623 = vmax.f32 %v1621, %v1622
      %v1624 = vrot.slane %v1623, 4
      %v1625 = vmax.f32 %v1623, %v1624
      %v1626 = vrot.slane %v1625, 2
      %v1627 = vmax.f32 %v1625, %v1626
      %v1628 = vrot.slane %v1627, 1
      %v1629 = vmax.f32 %v1627, %v1628
      %v1632 = vcombine.low %v1620, %v1629
      %v1634 = vunpack.c.l.s4 1966171168
      %v1635 = vunpack.c.0.s8 %v1634
      %v1636 = vlaneseq
      %v1637 = vshrl.u32 %v1636, 7
      %v1638 = vsub.s32 %v1635, %v1637
      %v1639 = vrot.slane %v1632, %v1638
      %v1641 = vunpack.c.l.s4 1966171168
      %v1642 = vunpack.c.0.s8 %v1641
      %v1643 = vlaneseq
      %v1644 = vshrl.u32 %v1643, 7
      %v1645 = vsub.s32 %v1642, %v1644
      %v1646 = vrot.slane %v1639, %v1645
      %s1648 = scalar_lea.vmem [#allocation2], 47
      %1649 = vst.msk [vmem:[%s1648] ss:$8 sm:$0x3] %vm383, %v1646
      %1650 = vst.msk [vmem:[%s1648] ss:$8 sm:$0x0] %vm383, %v1646
      %v1651 = vld [vmem:[%s4] sm:$0xff]
      %v1652 = vld [vmem:[%s4 + $0x8] sm:$0xff]
      %v1653 = vld [vmem:[#allocation2] sm:$0xff]
      %v1654 = vld [vmem:[#allocation2 + $0x8] sm:$0xff]
      %v1655 = vld [vmem:[#allocation2 + $0x10] sm:$0xff]
      %v1656 = vld [vmem:[#allocation2 + $0x20] sm:$0xff]
      %v1657 = vld [vmem:[#allocation2 + $0x28] sm:$0xff]
      %v1658 = vld [vmem:[#allocation2 + $0x30] sm:$0xff]
      %1660 = vset.pattern.permute.xlu0 0
      %1661 = vperm.xlu0 %1660, %v1651
      %v1662 = vpop.permute.xlu0 %1661
      %1665 = vset.pattern.permute.xlu0 0
      %1666 = vperm.xlu0 %1665, %v1652
      %v1667 = vpop.permute.xlu0 %1666
      %v1669 = vmul.f32 %v1662, %v1653
      %v1670 = vmul.f32 %v1662, %v1654
      %v1671 = vmul.f32 %v1662, %v1655
      %v1672 = vmul.f32 %v1667, %v1656
      %v1673 = vmul.f32 %v1667, %v1657
      %v1674 = vmul.f32 %v1667, %v1658
      %v1675 = vadd.f32 %v1669, 0.0
      %v1676 = vadd.f32 %v1670, 0.0
      %v1677 = vadd.f32 %v1671, 0.0
      %v1678 = vadd.f32 %v1672, 0.0
      %v1679 = vadd.f32 %v1673, 0.0
      %v1680 = vadd.f32 %v1674, 0.0
      %1681 = vset.pattern.permute.xlu0 7
      %1682 = vperm.xlu0 %1681, %v1651
      %v1683 = vpop.permute.xlu0 %1682
      %1685 = vset.pattern.permute.xlu0 7
      %1686 = vperm.xlu0 %1685, %v1652
      %v1687 = vpop.permute.xlu0 %1686
      %v1689 = vmul.f32 %v1683, %v1653
      %v1690 = vmul.f32 %v1683, %v1654
      %v1691 = vmul.f32 %v1683, %v1655
      %v1692 = vmul.f32 %v1687, %v1656
      %v1693 = vmul.f32 %v1687, %v1657
      %v1694 = vmul.f32 %v1687, %v1658
      %1701 = vrot.lane.b32.xlu0 %v1689, 112
      %v1702 = vpop.permute.xlu0 %1701
      %1703 = vrot.lane.b32.xlu0 %v1690, 112
      %v1704 = vpop.permute.xlu0 %1703
      %1705 = vrot.lane.b32.xlu0 %v1691, 112
      %v1706 = vpop.permute.xlu0 %1705
      %1707 = vrot.lane.b32.xlu0 %v1692, 112
      %v1708 = vpop.permute.xlu0 %1707
      %1709 = vrot.lane.b32.xlu0 %v1693, 112
      %v1710 = vpop.permute.xlu0 %1709
      %1711 = vrot.lane.b32.xlu0 %v1694, 112
      %v1712 = vpop.permute.xlu0 %1711
      %vm1713 = vcmask 916480
      %v1714 = vsel %vm1713, %v1702, %v1704
      %v1715 = vsel %vm1713, %v1704, %v1706
      %v1716 = vsel %vm1713, %v1708, %v1710
      %v1717 = vsel %vm1713, %v1710, %v1712
      %v1724 = vadd.f32 %v1675, %v1714
      %v1725 = vadd.f32 %v1676, %v1715
      %v1726 = vadd.f32 %v1677, %v1706
      %v1727 = vadd.f32 %v1678, %v1716
      %v1728 = vadd.f32 %v1679, %v1717
      %v1729 = vadd.f32 %v1680, %v1712
      %1730 = vset.pattern.permute.xlu0 14
      %1731 = vperm.xlu0 %1730, %v1651
      %v1732 = vpop.permute.xlu0 %1731
      %1734 = vset.pattern.permute.xlu0 14
      %1735 = vperm.xlu0 %1734, %v1652
      %v1736 = vpop.permute.xlu0 %1735
      %v1738 = vmul.f32 %v1732, %v1653
      %v1739 = vmul.f32 %v1732, %v1654
      %v1740 = vmul.f32 %v1732, %v1655
      %v1741 = vmul.f32 %v1736, %v1656
      %v1742 = vmul.f32 %v1736, %v1657
      %v1743 = vmul.f32 %v1736, %v1658
      %1750 = vrot.lane.b32.xlu0 %v1738, 96
      %v1751 = vpop.permute.xlu0 %1750
      %1752 = vrot.lane.b32.xlu0 %v1739, 96
      %v1753 = vpop.permute.xlu0 %1752
      %1754 = vrot.lane.b32.xlu0 %v1740, 96
      %v1755 = vpop.permute.xlu0 %1754
      %1756 = vrot.lane.b32.xlu0 %v1741, 96
      %v1757 = vpop.permute.xlu0 %1756
      %1758 = vrot.lane.b32.xlu0 %v1742, 96
      %v1759 = vpop.permute.xlu0 %1758
      %1760 = vrot.lane.b32.xlu0 %v1743, 96
      %v1761 = vpop.permute.xlu0 %1760
      %vm1762 = vcmask 785408
      %v1763 = vsel %vm1762, %v1751, %v1753
      %v1764 = vsel %vm1762, %v1753, %v1755
      %v1765 = vsel %vm1762, %v1757, %v1759
      %v1766 = vsel %vm1762, %v1759, %v1761
      %v1773 = vadd.f32 %v1724, %v1763
      %v1774 = vadd.f32 %v1725, %v1764
      %v1775 = vadd.f32 %v1726, %v1755
      %v1776 = vadd.f32 %v1727, %v1765
      %v1777 = vadd.f32 %v1728, %v1766
      %v1778 = vadd.f32 %v1729, %v1761
      %1779 = vset.pattern.permute.xlu0 21
      %1780 = vperm.xlu0 %1779, %v1651
      %v1781 = vpop.permute.xlu0 %1780
      %1783 = vset.pattern.permute.xlu0 21
      %1784 = vperm.xlu0 %1783, %v1652
      %v1785 = vpop.permute.xlu0 %1784
      %v1787 = vmul.f32 %v1781, %v1653
      %v1788 = vmul.f32 %v1781, %v1654
      %v1789 = vmul.f32 %v1781, %v1655
      %v1790 = vmul.f32 %v1785, %v1656
      %v1791 = vmul.f32 %v1785, %v1657
      %v1792 = vmul.f32 %v1785, %v1658
      %1799 = vrot.lane.b32.xlu0 %v1787, 80
      %v1800 = vpop.permute.xlu0 %1799
      %1801 = vrot.lane.b32.xlu0 %v1788, 80
      %v1802 = vpop.permute.xlu0 %1801
      %1803 = vrot.lane.b32.xlu0 %v1789, 80
      %v1804 = vpop.permute.xlu0 %1803
      %1805 = vrot.lane.b32.xlu0 %v1790, 80
      %v1806 = vpop.permute.xlu0 %1805
      %1807 = vrot.lane.b32.xlu0 %v1791, 80
      %v1808 = vpop.permute.xlu0 %1807
      %1809 = vrot.lane.b32.xlu0 %v1792, 80
      %v1810 = vpop.permute.xlu0 %1809
      %vm1811 = vcmask 654336
      %v1812 = vsel %vm1811, %v1800, %v1802
      %v1813 = vsel %vm1811, %v1802, %v1804
      %v1814 = vsel %vm1811, %v1806, %v1808
      %v1815 = vsel %vm1811, %v1808, %v1810
      %v1822 = vadd.f32 %v1773, %v1812
      %v1823 = vadd.f32 %v1774, %v1813
      %v1824 = vadd.f32 %v1775, %v1804
      %v1825 = vadd.f32 %v1776, %v1814
      %v1826 = vadd.f32 %v1777, %v1815
      %v1827 = vadd.f32 %v1778, %v1810
      %v1828 = vld [vmem:[#allocation2 + $0x8] sm:$0xff]
      %v1829 = vld [vmem:[#allocation2 + $0x10] sm:$0xff]
      %v1830 = vld [vmem:[#allocation2 + $0x18] sm:$0xff]
      %v1831 = vld [vmem:[#allocation2 + $0x28] sm:$0xff]
      %v1832 = vld [vmem:[#allocation2 + $0x30] sm:$0xff]
      %v1833 = vld [vmem:[#allocation2 + $0x38] sm:$0xff]
      %1834 = vset.pattern.permute.xlu0 28
      %1835 = vperm.xlu0 %1834, %v1651
      %v1836 = vpop.permute.xlu0 %1835
      %1838 = vset.pattern.permute.xlu0 28
      %1839 = vperm.xlu0 %1838, %v1652
      %v1840 = vpop.permute.xlu0 %1839
      %v1842 = vmul.f32 %v1836, %v1828
      %v1843 = vmul.f32 %v1836, %v1829
      %v1844 = vmul.f32 %v1836, %v1830
      %v1845 = vmul.f32 %v1840, %v1831
      %v1846 = vmul.f32 %v1840, %v1832
      %v1847 = vmul.f32 %v1840, %v1833
      %1854 = vrot.lane.b32.xlu0 %v1842, 64
      %v1855 = vpop.permute.xlu0 %1854
      %1856 = vrot.lane.b32.xlu0 %v1843, 64
      %v1857 = vpop.permute.xlu0 %1856
      %1858 = vrot.lane.b32.xlu0 %v1844, 64
      %v1859 = vpop.permute.xlu0 %1858
      %1860 = vrot.lane.b32.xlu0 %v1845, 64
      %v1861 = vpop.permute.xlu0 %1860
      %1862 = vrot.lane.b32.xlu0 %v1846, 64
      %v1863 = vpop.permute.xlu0 %1862
      %1864 = vrot.lane.b32.xlu0 %v1847, 64
      %v1865 = vpop.permute.xlu0 %1864
      %vm1866 = vcmask 523264
      %v1867 = vsel %vm1866, %v1855, %v1857
      %v1868 = vsel %vm1866, %v1857, %v1859
      %v1869 = vsel %vm1866, %v1861, %v1863
      %v1870 = vsel %vm1866, %v1863, %v1865
      %v1877 = vadd.f32 %v1822, %v1855
      %v1878 = vadd.f32 %v1823, %v1867
      %v1879 = vadd.f32 %v1824, %v1868
      %v1880 = vadd.f32 %v1825, %v1861
      %v1881 = vadd.f32 %v1826, %v1869
      %v1882 = vadd.f32 %v1827, %v1870
      %1883 = vset.pattern.permute.xlu0 35
      %1884 = vperm.xlu0 %1883, %v1651
      %v1885 = vpop.permute.xlu0 %1884
      %1887 = vset.pattern.permute.xlu0 35
      %1888 = vperm.xlu0 %1887, %v1652
      %v1889 = vpop.permute.xlu0 %1888
      %v1891 = vmul.f32 %v1885, %v1828
      %v1892 = vmul.f32 %v1885, %v1829
      %v1893 = vmul.f32 %v1885, %v1830
      %v1894 = vmul.f32 %v1889, %v1831
      %v1895 = vmul.f32 %v1889, %v1832
      %v1896 = vmul.f32 %v1889, %v1833
      %1903 = vrot.lane.b32.xlu0 %v1891, 48
      %v1904 = vpop.permute.xlu0 %1903
      %1905 = vrot.lane.b32.xlu0 %v1892, 48
      %v1906 = vpop.permute.xlu0 %1905
      %1907 = vrot.lane.b32.xlu0 %v1893, 48
      %v1908 = vpop.permute.xlu0 %1907
      %1909 = vrot.lane.b32.xlu0 %v1894, 48
      %v1910 = vpop.permute.xlu0 %1909
      %1911 = vrot.lane.b32.xlu0 %v1895, 48
      %v1912 = vpop.permute.xlu0 %1911
      %1913 = vrot.lane.b32.xlu0 %v1896, 48
      %v1914 = vpop.permute.xlu0 %1913
      %vm1915 = vcmask 392192
      %v1916 = vsel %vm1915, %v1904, %v1906
      %v1917 = vsel %vm1915, %v1906, %v1908
      %v1918 = vsel %vm1915, %v1910, %v1912
      %v1919 = vsel %vm1915, %v1912, %v1914
      %v1926 = vadd.f32 %v1877, %v1904
      %v1927 = vadd.f32 %v1878, %v1916
      %v1928 = vadd.f32 %v1879, %v1917
      %v1929 = vadd.f32 %v1880, %v1910
      %v1930 = vadd.f32 %v1881, %v1918
      %v1931 = vadd.f32 %v1882, %v1919
      %1932 = vset.pattern.permute.xlu0 42
      %1933 = vperm.xlu0 %1932, %v1651
      %v1934 = vpop.permute.xlu0 %1933
      %1936 = vset.pattern.permute.xlu0 42
      %1937 = vperm.xlu0 %1936, %v1652
      %v1938 = vpop.permute.xlu0 %1937
      %v1940 = vmul.f32 %v1934, %v1828
      %v1941 = vmul.f32 %v1934, %v1829
      %v1942 = vmul.f32 %v1934, %v1830
      %v1943 = vmul.f32 %v1938, %v1831
      %v1944 = vmul.f32 %v1938, %v1832
      %v1945 = vmul.f32 %v1938, %v1833
      %1952 = vrot.lane.b32.xlu0 %v1940, 32
      %v1953 = vpop.permute.xlu0 %1952
      %1954 = vrot.lane.b32.xlu0 %v1941, 32
      %v1955 = vpop.permute.xlu0 %1954
      %1956 = vrot.lane.b32.xlu0 %v1942, 32
      %v1957 = vpop.permute.xlu0 %1956
      %1958 = vrot.lane.b32.xlu0 %v1943, 32
      %v1959 = vpop.permute.xlu0 %1958
      %1960 = vrot.lane.b32.xlu0 %v1944, 32
      %v1961 = vpop.permute.xlu0 %1960
      %1962 = vrot.lane.b32.xlu0 %v1945, 32
      %v1963 = vpop.permute.xlu0 %1962
      %vm1964 = vcmask 261120
      %v1965 = vsel %vm1964, %v1953, %v1955
      %v1966 = vsel %vm1964, %v1955, %v1957
      %v1967 = vsel %vm1964, %v1959, %v1961
      %v1968 = vsel %vm1964, %v1961, %v1963
      %v1975 = vadd.f32 %v1926, %v1953
      %v1976 = vadd.f32 %v1927, %v1965
      %v1977 = vadd.f32 %v1928, %v1966
      %v1978 = vadd.f32 %v1929, %v1959
      %v1979 = vadd.f32 %v1930, %v1967
      %v1980 = vadd.f32 %v1931, %v1968
      %v1981 = vld [vmem:[%s3] ss:$8 sm:$0x3]
      %v1983 = vlaneseq
      %v1984 = vshrl.u32 %v1983, 7
      %v1985 = vsub.s32 0, %v1984
      %v1986 = vrot.slane %v1981, %v1985
      %v1987 = vlaneseq
      %v1988 = vshrl.u32 %v1987, 7
      %v1989 = vsub.s32 1, %v1988
      %v1990 = vrot.slane %v1981, %v1989
      %1999 = vrot.lane.b32.xlu0 %v1975, 51
      %v2000 = vpop.permute.xlu0 %1999
      %2001 = vrot.lane.b32.xlu0 %v1976, 51
      %v2002 = vpop.permute.xlu0 %2001
      %2003 = vrot.lane.b32.xlu0 %v1977, 51
      %v2004 = vpop.permute.xlu0 %2003
      %2005 = vrot.lane.b32.xlu0 %v1978, 51
      %v2006 = vpop.permute.xlu0 %2005
      %2007 = vrot.lane.b32.xlu0 %v1979, 51
      %v2008 = vpop.permute.xlu0 %2007
      %2009 = vrot.lane.b32.xlu0 %v1980, 51
      %v2010 = vpop.permute.xlu0 %2009
      %vm2011 = vcmask 416768
      %v2012 = vsel %vm2011, %v2000, %v2002
      %v2013 = vsel %vm2011, %v2002, %v2004
      %v2014 = vsel %vm2011, %v2006, %v2008
      %v2015 = vsel %vm2011, %v2008, %v2010
      %v2020 = vmul.f32 %v1986, %v2012
      %v2021 = vmul.f32 %v1990, %v2013
      %v2022 = vmul.f32 %v1986, %v2014
      %v2023 = vmul.f32 %v1990, %v2015
      %v2024 = vadd.f32 %v2020, 0.0
      %v2025 = vadd.f32 %v2021, 0.0
      %v2026 = vadd.f32 %v2022, 0.0
      %v2027 = vadd.f32 %v2023, 0.0
      %2028 = vset.pattern.permute.xlu0 1
      %2029 = vperm.xlu0 %2028, %v1651
      %v2030 = vpop.permute.xlu0 %2029
      %2032 = vset.pattern.permute.xlu0 1
      %2033 = vperm.xlu0 %2032, %v1652
      %v2034 = vpop.permute.xlu0 %2033
      %v2036 = vmul.f32 %v2030, %v1653
      %v2037 = vmul.f32 %v2030, %v1654
      %v2038 = vmul.f32 %v2030, %v1655
      %v2039 = vmul.f32 %v2034, %v1656
      %v2040 = vmul.f32 %v2034, %v1657
      %v2041 = vmul.f32 %v2034, %v1658
      %v2042 = vadd.f32 %v2036, 0.0
      %v2043 = vadd.f32 %v2037, 0.0
      %v2044 = vadd.f32 %v2038, 0.0
      %v2045 = vadd.f32 %v2039, 0.0
      %v2046 = vadd.f32 %v2040, 0.0
      %v2047 = vadd.f32 %v2041, 0.0
      %2048 = vset.pattern.permute.xlu0 8
      %2049 = vperm.xlu0 %2048, %v1651
      %v2050 = vpop.permute.xlu0 %2049
      %2052 = vset.pattern.permute.xlu0 8
      %2053 = vperm.xlu0 %2052, %v1652
      %v2054 = vpop.permute.xlu0 %2053
      %v2056 = vmul.f32 %v2050, %v1653
      %v2057 = vmul.f32 %v2050, %v1654
      %v2058 = vmul.f32 %v2050, %v1655
      %v2059 = vmul.f32 %v2054, %v1656
      %v2060 = vmul.f32 %v2054, %v1657
      %v2061 = vmul.f32 %v2054, %v1658
      %2068 = vrot.lane.b32.xlu0 %v2056, 112
      %v2069 = vpop.permute.xlu0 %2068
      %2070 = vrot.lane.b32.xlu0 %v2057, 112
      %v2071 = vpop.permute.xlu0 %2070
      %2072 = vrot.lane.b32.xlu0 %v2058, 112
      %v2073 = vpop.permute.xlu0 %2072
      %2074 = vrot.lane.b32.xlu0 %v2059, 112
      %v2075 = vpop.permute.xlu0 %2074
      %2076 = vrot.lane.b32.xlu0 %v2060, 112
      %v2077 = vpop.permute.xlu0 %2076
      %2078 = vrot.lane.b32.xlu0 %v2061, 112
      %v2079 = vpop.permute.xlu0 %2078
      %v2080 = vsel %vm1713, %v2069, %v2071
      %v2081 = vsel %vm1713, %v2071, %v2073
      %v2082 = vsel %vm1713, %v2075, %v2077
      %v2083 = vsel %vm1713, %v2077, %v2079
      %v2090 = vadd.f32 %v2042, %v2080
      %v2091 = vadd.f32 %v2043, %v2081
      %v2092 = vadd.f32 %v2044, %v2073
      %v2093 = vadd.f32 %v2045, %v2082
      %v2094 = vadd.f32 %v2046, %v2083
      %v2095 = vadd.f32 %v2047, %v2079
      %2096 = vset.pattern.permute.xlu0 15
      %2097 = vperm.xlu0 %2096, %v1651
      %v2098 = vpop.permute.xlu0 %2097
      %2100 = vset.pattern.permute.xlu0 15
      %2101 = vperm.xlu0 %2100, %v1652
      %v2102 = vpop.permute.xlu0 %2101
      %v2104 = vmul.f32 %v2098, %v1653
      %v2105 = vmul.f32 %v2098, %v1654
      %v2106 = vmul.f32 %v2098, %v1655
      %v2107 = vmul.f32 %v2102, %v1656
      %v2108 = vmul.f32 %v2102, %v1657
      %v2109 = vmul.f32 %v2102, %v1658
      %2116 = vrot.lane.b32.xlu0 %v2104, 96
      %v2117 = vpop.permute.xlu0 %2116
      %2118 = vrot.lane.b32.xlu0 %v2105, 96
      %v2119 = vpop.permute.xlu0 %2118
      %2120 = vrot.lane.b32.xlu0 %v2106, 96
      %v2121 = vpop.permute.xlu0 %2120
      %2122 = vrot.lane.b32.xlu0 %v2107, 96
      %v2123 = vpop.permute.xlu0 %2122
      %2124 = vrot.lane.b32.xlu0 %v2108, 96
      %v2125 = vpop.permute.xlu0 %2124
      %2126 = vrot.lane.b32.xlu0 %v2109, 96
      %v2127 = vpop.permute.xlu0 %2126
      %v2128 = vsel %vm1762, %v2117, %v2119
      %v2129 = vsel %vm1762, %v2119, %v2121
      %v2130 = vsel %vm1762, %v2123, %v2125
      %v2131 = vsel %vm1762, %v2125, %v2127
      %v2138 = vadd.f32 %v2090, %v2128
      %v2139 = vadd.f32 %v2091, %v2129
      %v2140 = vadd.f32 %v2092, %v2121
      %v2141 = vadd.f32 %v2093, %v2130
      %v2142 = vadd.f32 %v2094, %v2131
      %v2143 = vadd.f32 %v2095, %v2127
      %2144 = vset.pattern.permute.xlu0 22
      %2145 = vperm.xlu0 %2144, %v1651
      %v2146 = vpop.permute.xlu0 %2145
      %2148 = vset.pattern.permute.xlu0 22
      %2149 = vperm.xlu0 %2148, %v1652
      %v2150 = vpop.permute.xlu0 %2149
      %v2152 = vmul.f32 %v2146, %v1653
      %v2153 = vmul.f32 %v2146, %v1654
      %v2154 = vmul.f32 %v2146, %v1655
      %v2155 = vmul.f32 %v2150, %v1656
      %v2156 = vmul.f32 %v2150, %v1657
      %v2157 = vmul.f32 %v2150, %v1658
      %2164 = vrot.lane.b32.xlu0 %v2152, 80
      %v2165 = vpop.permute.xlu0 %2164
      %2166 = vrot.lane.b32.xlu0 %v2153, 80
      %v2167 = vpop.permute.xlu0 %2166
      %2168 = vrot.lane.b32.xlu0 %v2154, 80
      %v2169 = vpop.permute.xlu0 %2168
      %2170 = vrot.lane.b32.xlu0 %v2155, 80
      %v2171 = vpop.permute.xlu0 %2170
      %2172 = vrot.lane.b32.xlu0 %v2156, 80
      %v2173 = vpop.permute.xlu0 %2172
      %2174 = vrot.lane.b32.xlu0 %v2157, 80
      %v2175 = vpop.permute.xlu0 %2174
      %v2176 = vsel %vm1811, %v2165, %v2167
      %v2177 = vsel %vm1811, %v2167, %v2169
      %v2178 = vsel %vm1811, %v2171, %v2173
      %v2179 = vsel %vm1811, %v2173, %v2175
      %v2186 = vadd.f32 %v2138, %v2176
      %v2187 = vadd.f32 %v2139, %v2177
      %v2188 = vadd.f32 %v2140, %v2169
      %v2189 = vadd.f32 %v2141, %v2178
      %v2190 = vadd.f32 %v2142, %v2179
      %v2191 = vadd.f32 %v2143, %v2175
      %2192 = vset.pattern.permute.xlu0 29
      %2193 = vperm.xlu0 %2192, %v1651
      %v2194 = vpop.permute.xlu0 %2193
      %2196 = vset.pattern.permute.xlu0 29
      %2197 = vperm.xlu0 %2196, %v1652
      %v2198 = vpop.permute.xlu0 %2197
      %v2200 = vmul.f32 %v2194, %v1828
      %v2201 = vmul.f32 %v2194, %v1829
      %v2202 = vmul.f32 %v2194, %v1830
      %v2203 = vmul.f32 %v2198, %v1831
      %v2204 = vmul.f32 %v2198, %v1832
      %v2205 = vmul.f32 %v2198, %v1833
      %2212 = vrot.lane.b32.xlu0 %v2200, 64
      %v2213 = vpop.permute.xlu0 %2212
      %2214 = vrot.lane.b32.xlu0 %v2201, 64
      %v2215 = vpop.permute.xlu0 %2214
      %2216 = vrot.lane.b32.xlu0 %v2202, 64
      %v2217 = vpop.permute.xlu0 %2216
      %2218 = vrot.lane.b32.xlu0 %v2203, 64
      %v2219 = vpop.permute.xlu0 %2218
      %2220 = vrot.lane.b32.xlu0 %v2204, 64
      %v2221 = vpop.permute.xlu0 %2220
      %2222 = vrot.lane.b32.xlu0 %v2205, 64
      %v2223 = vpop.permute.xlu0 %2222
      %v2224 = vsel %vm1866, %v2213, %v2215
      %v2225 = vsel %vm1866, %v2215, %v2217
      %v2226 = vsel %vm1866, %v2219, %v2221
      %v2227 = vsel %vm1866, %v2221, %v2223
      %v2234 = vadd.f32 %v2186, %v2213
      %v2235 = vadd.f32 %v2187, %v2224
      %v2236 = vadd.f32 %v2188, %v2225
      %v2237 = vadd.f32 %v2189, %v2219
      %v2238 = vadd.f32 %v2190, %v2226
      %v2239 = vadd.f32 %v2191, %v2227
      %2240 = vset.pattern.permute.xlu0 36
      %2241 = vperm.xlu0 %2240, %v1651
      %v2242 = vpop.permute.xlu0 %2241
      %2244 = vset.pattern.permute.xlu0 36
      %2245 = vperm.xlu0 %2244, %v1652
      %v2246 = vpop.permute.xlu0 %2245
      %v2248 = vmul.f32 %v2242, %v1828
      %v2249 = vmul.f32 %v2242, %v1829
      %v2250 = vmul.f32 %v2242, %v1830
      %v2251 = vmul.f32 %v2246, %v1831
      %v2252 = vmul.f32 %v2246, %v1832
      %v2253 = vmul.f32 %v2246, %v1833
      %2260 = vrot.lane.b32.xlu0 %v2248, 48
      %v2261 = vpop.permute.xlu0 %2260
      %2262 = vrot.lane.b32.xlu0 %v2249, 48
      %v2263 = vpop.permute.xlu0 %2262
      %2264 = vrot.lane.b32.xlu0 %v2250, 48
      %v2265 = vpop.permute.xlu0 %2264
      %2266 = vrot.lane.b32.xlu0 %v2251, 48
      %v2267 = vpop.permute.xlu0 %2266
      %2268 = vrot.lane.b32.xlu0 %v2252, 48
      %v2269 = vpop.permute.xlu0 %2268
      %2270 = vrot.lane.b32.xlu0 %v2253, 48
      %v2271 = vpop.permute.xlu0 %2270
      %v2272 = vsel %vm1915, %v2261, %v2263
      %v2273 = vsel %vm1915, %v2263, %v2265
      %v2274 = vsel %vm1915, %v2267, %v2269
      %v2275 = vsel %vm1915, %v2269, %v2271
      %v2282 = vadd.f32 %v2234, %v2261
      %v2283 = vadd.f32 %v2235, %v2272
      %v2284 = vadd.f32 %v2236, %v2273
      %v2285 = vadd.f32 %v2237, %v2267
      %v2286 = vadd.f32 %v2238, %v2274
      %v2287 = vadd.f32 %v2239, %v2275
      %2288 = vset.pattern.permute.xlu0 43
      %2289 = vperm.xlu0 %2288, %v1651
      %v2290 = vpop.permute.xlu0 %2289
      %2292 = vset.pattern.permute.xlu0 43
      %2293 = vperm.xlu0 %2292, %v1652
      %v2294 = vpop.permute.xlu0 %2293
      %v2296 = vmul.f32 %v2290, %v1828
      %v2297 = vmul.f32 %v2290, %v1829
      %v2298 = vmul.f32 %v2290, %v1830
      %v2299 = vmul.f32 %v2294, %v1831
      %v2300 = vmul.f32 %v2294, %v1832
      %v2301 = vmul.f32 %v2294, %v1833
      %2308 = vrot.lane.b32.xlu0 %v2296, 32
      %v2309 = vpop.permute.xlu0 %2308
      %2310 = vrot.lane.b32.xlu0 %v2297, 32
      %v2311 = vpop.permute.xlu0 %2310
      %2312 = vrot.lane.b32.xlu0 %v2298, 32
      %v2313 = vpop.permute.xlu0 %2312
      %2314 = vrot.lane.b32.xlu0 %v2299, 32
      %v2315 = vpop.permute.xlu0 %2314
      %2316 = vrot.lane.b32.xlu0 %v2300, 32
      %v2317 = vpop.permute.xlu0 %2316
      %2318 = vrot.lane.b32.xlu0 %v2301, 32
      %v2319 = vpop.permute.xlu0 %2318
      %v2320 = vsel %vm1964, %v2309, %v2311
      %v2321 = vsel %vm1964, %v2311, %v2313
      %v2322 = vsel %vm1964, %v2315, %v2317
      %v2323 = vsel %vm1964, %v2317, %v2319
      %v2330 = vadd.f32 %v2282, %v2309
      %v2331 = vadd.f32 %v2283, %v2320
      %v2332 = vadd.f32 %v2284, %v2321
      %v2333 = vadd.f32 %v2285, %v2315
      %v2334 = vadd.f32 %v2286, %v2322
      %v2335 = vadd.f32 %v2287, %v2323
      %s2336 = scalar_lea.vmem %s3, 1
      %v2337 = vld [vmem:[%s2336] ss:$8 sm:$0x3]
      %v2339 = vlaneseq
      %v2340 = vshrl.u32 %v2339, 7
      %v2341 = vsub.s32 0, %v2340
      %v2342 = vrot.slane %v2337, %v2341
      %v2343 = vlaneseq
      %v2344 = vshrl.u32 %v2343, 7
      %v2345 = vsub.s32 1, %v2344
      %v2346 = vrot.slane %v2337, %v2345
      %2355 = vrot.lane.b32.xlu0 %v2330, 50
      %v2356 = vpop.permute.xlu0 %2355
      %2357 = vrot.lane.b32.xlu0 %v2331, 50
      %v2358 = vpop.permute.xlu0 %2357
      %2359 = vrot.lane.b32.xlu0 %v2332, 50
      %v2360 = vpop.permute.xlu0 %2359
      %2361 = vrot.lane.b32.xlu0 %v2333, 50
      %v2362 = vpop.permute.xlu0 %2361
      %2363 = vrot.lane.b32.xlu0 %v2334, 50
      %v2364 = vpop.permute.xlu0 %2363
      %2365 = vrot.lane.b32.xlu0 %v2335, 50
      %v2366 = vpop.permute.xlu0 %2365
      %vm2367 = vcmask 408576
      %v2368 = vsel %vm2367, %v2356, %v2358
      %v2369 = vsel %vm2367, %v2358, %v2360
      %v2370 = vsel %vm2367, %v2362, %v2364
      %v2371 = vsel %vm2367, %v2364, %v2366
      %v2376 = vmul.f32 %v2342, %v2368
      %v2377 = vmul.f32 %v2346, %v2369
      %v2378 = vmul.f32 %v2342, %v2370
      %v2379 = vmul.f32 %v2346, %v2371
      %v2380 = vadd.f32 %v2024, %v2376
      %v2381 = vadd.f32 %v2025, %v2377
      %v2382 = vadd.f32 %v2026, %v2378
      %v2383 = vadd.f32 %v2027, %v2379
      %2384 = vset.pattern.permute.xlu0 2
      %2385 = vperm.xlu0 %2384, %v1651
      %v2386 = vpop.permute.xlu0 %2385
      %2388 = vset.pattern.permute.xlu0 2
      %2389 = vperm.xlu0 %2388, %v1652
      %v2390 = vpop.permute.xlu0 %2389
      %v2392 = vmul.f32 %v2386, %v1653
      %v2393 = vmul.f32 %v2386, %v1654
      %v2394 = vmul.f32 %v2386, %v1655
      %v2395 = vmul.f32 %v2390, %v1656
      %v2396 = vmul.f32 %v2390, %v1657
      %v2397 = vmul.f32 %v2390, %v1658
      %v2398 = vadd.f32 %v2392, 0.0
      %v2399 = vadd.f32 %v2393, 0.0
      %v2400 = vadd.f32 %v2394, 0.0
      %v2401 = vadd.f32 %v2395, 0.0
      %v2402 = vadd.f32 %v2396, 0.0
      %v2403 = vadd.f32 %v2397, 0.0
      %2404 = vset.pattern.permute.xlu0 9
      %2405 = vperm.xlu0 %2404, %v1651
      %v2406 = vpop.permute.xlu0 %2405
      %2408 = vset.pattern.permute.xlu0 9
      %2409 = vperm.xlu0 %2408, %v1652
      %v2410 = vpop.permute.xlu0 %2409
      %v2412 = vmul.f32 %v2406, %v1653
      %v2413 = vmul.f32 %v2406, %v1654
      %v2414 = vmul.f32 %v2406, %v1655
      %v2415 = vmul.f32 %v2410, %v1656
      %v2416 = vmul.f32 %v2410, %v1657
      %v2417 = vmul.f32 %v2410, %v1658
      %2424 = vrot.lane.b32.xlu0 %v2412, 112
      %v2425 = vpop.permute.xlu0 %2424
      %2426 = vrot.lane.b32.xlu0 %v2413, 112
      %v2427 = vpop.permute.xlu0 %2426
      %2428 = vrot.lane.b32.xlu0 %v2414, 112
      %v2429 = vpop.permute.xlu0 %2428
      %2430 = vrot.lane.b32.xlu0 %v2415, 112
      %v2431 = vpop.permute.xlu0 %2430
      %2432 = vrot.lane.b32.xlu0 %v2416, 112
      %v2433 = vpop.permute.xlu0 %2432
      %2434 = vrot.lane.b32.xlu0 %v2417, 112
      %v2435 = vpop.permute.xlu0 %2434
      %v2436 = vsel %vm1713, %v2425, %v2427
      %v2437 = vsel %vm1713, %v2427, %v2429
      %v2438 = vsel %vm1713, %v2431, %v2433
      %v2439 = vsel %vm1713, %v2433, %v2435
      %v2446 = vadd.f32 %v2398, %v2436
      %v2447 = vadd.f32 %v2399, %v2437
      %v2448 = vadd.f32 %v2400, %v2429
      %v2449 = vadd.f32 %v2401, %v2438
      %v2450 = vadd.f32 %v2402, %v2439
      %v2451 = vadd.f32 %v2403, %v2435
      %2452 = vset.pattern.permute.xlu0 16
      %2453 = vperm.xlu0 %2452, %v1651
      %v2454 = vpop.permute.xlu0 %2453
      %2456 = vset.pattern.permute.xlu0 16
      %2457 = vperm.xlu0 %2456, %v1652
      %v2458 = vpop.permute.xlu0 %2457
      %v2460 = vmul.f32 %v2454, %v1653
      %v2461 = vmul.f32 %v2454, %v1654
      %v2462 = vmul.f32 %v2454, %v1655
      %v2463 = vmul.f32 %v2458, %v1656
      %v2464 = vmul.f32 %v2458, %v1657
      %v2465 = vmul.f32 %v2458, %v1658
      %2472 = vrot.lane.b32.xlu0 %v2460, 96
      %v2473 = vpop.permute.xlu0 %2472
      %2474 = vrot.lane.b32.xlu0 %v2461, 96
      %v2475 = vpop.permute.xlu0 %2474
      %2476 = vrot.lane.b32.xlu0 %v2462, 96
      %v2477 = vpop.permute.xlu0 %2476
      %2478 = vrot.lane.b32.xlu0 %v2463, 96
      %v2479 = vpop.permute.xlu0 %2478
      %2480 = vrot.lane.b32.xlu0 %v2464, 96
      %v2481 = vpop.permute.xlu0 %2480
      %2482 = vrot.lane.b32.xlu0 %v2465, 96
      %v2483 = vpop.permute.xlu0 %2482
      %v2484 = vsel %vm1762, %v2473, %v2475
      %v2485 = vsel %vm1762, %v2475, %v2477
      %v2486 = vsel %vm1762, %v2479, %v2481
      %v2487 = vsel %vm1762, %v2481, %v2483
      %v2494 = vadd.f32 %v2446, %v2484
      %v2495 = vadd.f32 %v2447, %v2485
      %v2496 = vadd.f32 %v2448, %v2477
      %v2497 = vadd.f32 %v2449, %v2486
      %v2498 = vadd.f32 %v2450, %v2487
      %v2499 = vadd.f32 %v2451, %v2483
      %2500 = vset.pattern.permute.xlu0 23
      %2501 = vperm.xlu0 %2500, %v1651
      %v2502 = vpop.permute.xlu0 %2501
      %2504 = vset.pattern.permute.xlu0 23
      %2505 = vperm.xlu0 %2504, %v1652
      %v2506 = vpop.permute.xlu0 %2505
      %v2508 = vmul.f32 %v2502, %v1653
      %v2509 = vmul.f32 %v2502, %v1654
      %v2510 = vmul.f32 %v2502, %v1655
      %v2511 = vmul.f32 %v2506, %v1656
      %v2512 = vmul.f32 %v2506, %v1657
      %v2513 = vmul.f32 %v2506, %v1658
      %2520 = vrot.lane.b32.xlu0 %v2508, 80
      %v2521 = vpop.permute.xlu0 %2520
      %2522 = vrot.lane.b32.xlu0 %v2509, 80
      %v2523 = vpop.permute.xlu0 %2522
      %2524 = vrot.lane.b32.xlu0 %v2510, 80
      %v2525 = vpop.permute.xlu0 %2524
      %2526 = vrot.lane.b32.xlu0 %v2511, 80
      %v2527 = vpop.permute.xlu0 %2526
      %2528 = vrot.lane.b32.xlu0 %v2512, 80
      %v2529 = vpop.permute.xlu0 %2528
      %2530 = vrot.lane.b32.xlu0 %v2513, 80
      %v2531 = vpop.permute.xlu0 %2530
      %v2532 = vsel %vm1811, %v2521, %v2523
      %v2533 = vsel %vm1811, %v2523, %v2525
      %v2534 = vsel %vm1811, %v2527, %v2529
      %v2535 = vsel %vm1811, %v2529, %v2531
      %v2542 = vadd.f32 %v2494, %v2532
      %v2543 = vadd.f32 %v2495, %v2533
      %v2544 = vadd.f32 %v2496, %v2525
      %v2545 = vadd.f32 %v2497, %v2534
      %v2546 = vadd.f32 %v2498, %v2535
      %v2547 = vadd.f32 %v2499, %v2531
      %2548 = vset.pattern.permute.xlu0 30
      %2549 = vperm.xlu0 %2548, %v1651
      %v2550 = vpop.permute.xlu0 %2549
      %2552 = vset.pattern.permute.xlu0 30
      %2553 = vperm.xlu0 %2552, %v1652
      %v2554 = vpop.permute.xlu0 %2553
      %v2556 = vmul.f32 %v2550, %v1828
      %v2557 = vmul.f32 %v2550, %v1829
      %v2558 = vmul.f32 %v2550, %v1830
      %v2559 = vmul.f32 %v2554, %v1831
      %v2560 = vmul.f32 %v2554, %v1832
      %v2561 = vmul.f32 %v2554, %v1833
      %2568 = vrot.lane.b32.xlu0 %v2556, 64
      %v2569 = vpop.permute.xlu0 %2568
      %2570 = vrot.lane.b32.xlu0 %v2557, 64
      %v2571 = vpop.permute.xlu0 %2570
      %2572 = vrot.lane.b32.xlu0 %v2558, 64
      %v2573 = vpop.permute.xlu0 %2572
      %2574 = vrot.lane.b32.xlu0 %v2559, 64
      %v2575 = vpop.permute.xlu0 %2574
      %2576 = vrot.lane.b32.xlu0 %v2560, 64
      %v2577 = vpop.permute.xlu0 %2576
      %2578 = vrot.lane.b32.xlu0 %v2561, 64
      %v2579 = vpop.permute.xlu0 %2578
      %v2580 = vsel %vm1866, %v2569, %v2571
      %v2581 = vsel %vm1866, %v2571, %v2573
      %v2582 = vsel %vm1866, %v2575, %v2577
      %v2583 = vsel %vm1866, %v2577, %v2579
      %v2590 = vadd.f32 %v2542, %v2569
      %v2591 = vadd.f32 %v2543, %v2580
      %v2592 = vadd.f32 %v2544, %v2581
      %v2593 = vadd.f32 %v2545, %v2575
      %v2594 = vadd.f32 %v2546, %v2582
      %v2595 = vadd.f32 %v2547, %v2583
      %2596 = vset.pattern.permute.xlu0 37
      %2597 = vperm.xlu0 %2596, %v1651
      %v2598 = vpop.permute.xlu0 %2597
      %2600 = vset.pattern.permute.xlu0 37
      %2601 = vperm.xlu0 %2600, %v1652
      %v2602 = vpop.permute.xlu0 %2601
      %v2604 = vmul.f32 %v2598, %v1828
      %v2605 = vmul.f32 %v2598, %v1829
      %v2606 = vmul.f32 %v2598, %v1830
      %v2607 = vmul.f32 %v2602, %v1831
      %v2608 = vmul.f32 %v2602, %v1832
      %v2609 = vmul.f32 %v2602, %v1833
      %2616 = vrot.lane.b32.xlu0 %v2604, 48
      %v2617 = vpop.permute.xlu0 %2616
      %2618 = vrot.lane.b32.xlu0 %v2605, 48
      %v2619 = vpop.permute.xlu0 %2618
      %2620 = vrot.lane.b32.xlu0 %v2606, 48
      %v2621 = vpop.permute.xlu0 %2620
      %2622 = vrot.lane.b32.xlu0 %v2607, 48
      %v2623 = vpop.permute.xlu0 %2622
      %2624 = vrot.lane.b32.xlu0 %v2608, 48
      %v2625 = vpop.permute.xlu0 %2624
      %2626 = vrot.lane.b32.xlu0 %v2609, 48
      %v2627 = vpop.permute.xlu0 %2626
      %v2628 = vsel %vm1915, %v2617, %v2619
      %v2629 = vsel %vm1915, %v2619, %v2621
      %v2630 = vsel %vm1915, %v2623, %v2625
      %v2631 = vsel %vm1915, %v2625, %v2627
      %v2638 = vadd.f32 %v2590, %v2617
      %v2639 = vadd.f32 %v2591, %v2628
      %v2640 = vadd.f32 %v2592, %v2629
      %v2641 = vadd.f32 %v2593, %v2623
      %v2642 = vadd.f32 %v2594, %v2630
      %v2643 = vadd.f32 %v2595, %v2631
      %2644 = vset.pattern.permute.xlu0 44
      %2645 = vperm.xlu0 %2644, %v1651
      %v2646 = vpop.permute.xlu0 %2645
      %2648 = vset.pattern.permute.xlu0 44
      %2649 = vperm.xlu0 %2648, %v1652
      %v2650 = vpop.permute.xlu0 %2649
      %v2652 = vmul.f32 %v2646, %v1828
      %v2653 = vmul.f32 %v2646, %v1829
      %v2654 = vmul.f32 %v2646, %v1830
      %v2655 = vmul.f32 %v2650, %v1831
      %v2656 = vmul.f32 %v2650, %v1832
      %v2657 = vmul.f32 %v2650, %v1833
      %2664 = vrot.lane.b32.xlu0 %v2652, 32
      %v2665 = vpop.permute.xlu0 %2664
      %2666 = vrot.lane.b32.xlu0 %v2653, 32
      %v2667 = vpop.permute.xlu0 %2666
      %2668 = vrot.lane.b32.xlu0 %v2654, 32
      %v2669 = vpop.permute.xlu0 %2668
      %2670 = vrot.lane.b32.xlu0 %v2655, 32
      %v2671 = vpop.permute.xlu0 %2670
      %2672 = vrot.lane.b32.xlu0 %v2656, 32
      %v2673 = vpop.permute.xlu0 %2672
      %2674 = vrot.lane.b32.xlu0 %v2657, 32
      %v2675 = vpop.permute.xlu0 %2674
      %v2676 = vsel %vm1964, %v2665, %v2667
      %v2677 = vsel %vm1964, %v2667, %v2669
      %v2678 = vsel %vm1964, %v2671, %v2673
      %v2679 = vsel %vm1964, %v2673, %v2675
      %v2686 = vadd.f32 %v2638, %v2665
      %v2687 = vadd.f32 %v2639, %v2676
      %v2688 = vadd.f32 %v2640, %v2677
      %v2689 = vadd.f32 %v2641, %v2671
      %v2690 = vadd.f32 %v2642, %v2678
      %v2691 = vadd.f32 %v2643, %v2679
      %s2692 = scalar_lea.vmem %s3, 2
      %v2693 = vld [vmem:[%s2692] ss:$8 sm:$0x3]
      %v2695 = vlaneseq
      %v2696 = vshrl.u32 %v2695, 7
      %v2697 = vsub.s32 0, %v2696
      %v2698 = vrot.slane %v2693, %v2697
      %v2699 = vlaneseq
      %v2700 = vshrl.u32 %v2699, 7
      %v2701 = vsub.s32 1, %v2700
      %v2702 = vrot.slane %v2693, %v2701
      %2711 = vrot.lane.b32.xlu0 %v2686, 49
      %v2712 = vpop.permute.xlu0 %2711
      %2713 = vrot.lane.b32.xlu0 %v2687, 49
      %v2714 = vpop.permute.xlu0 %2713
      %2715 = vrot.lane.b32.xlu0 %v2688, 49
      %v2716 = vpop.permute.xlu0 %2715
      %2717 = vrot.lane.b32.xlu0 %v2689, 49
      %v2718 = vpop.permute.xlu0 %2717
      %2719 = vrot.lane.b32.xlu0 %v2690, 49
      %v2720 = vpop.permute.xlu0 %2719
      %2721 = vrot.lane.b32.xlu0 %v2691, 49
      %v2722 = vpop.permute.xlu0 %2721
      %vm2723 = vcmask 400384
      %v2724 = vsel %vm2723, %v2712, %v2714
      %v2725 = vsel %vm2723, %v2714, %v2716
      %v2726 = vsel %vm2723, %v2718, %v2720
      %v2727 = vsel %vm2723, %v2720, %v2722
      %v2732 = vmul.f32 %v2698, %v2724
      %v2733 = vmul.f32 %v2702, %v2725
      %v2734 = vmul.f32 %v2698, %v2726
      %v2735 = vmul.f32 %v2702, %v2727
      %v2736 = vadd.f32 %v2380, %v2732
      %v2737 = vadd.f32 %v2381, %v2733
      %v2738 = vadd.f32 %v2382, %v2734
      %v2739 = vadd.f32 %v2383, %v2735
      %2740 = vset.pattern.permute.xlu0 3
      %2741 = vperm.xlu0 %2740, %v1651
      %v2742 = vpop.permute.xlu0 %2741
      %2744 = vset.pattern.permute.xlu0 3
      %2745 = vperm.xlu0 %2744, %v1652
      %v2746 = vpop.permute.xlu0 %2745
      %v2748 = vmul.f32 %v2742, %v1653
      %v2749 = vmul.f32 %v2742, %v1654
      %v2750 = vmul.f32 %v2742, %v1655
      %v2751 = vmul.f32 %v2746, %v1656
      %v2752 = vmul.f32 %v2746, %v1657
      %v2753 = vmul.f32 %v2746, %v1658
      %v2754 = vadd.f32 %v2748, 0.0
      %v2755 = vadd.f32 %v2749, 0.0
      %v2756 = vadd.f32 %v2750, 0.0
      %v2757 = vadd.f32 %v2751, 0.0
      %v2758 = vadd.f32 %v2752, 0.0
      %v2759 = vadd.f32 %v2753, 0.0
      %2760 = vset.pattern.permute.xlu0 10
      %2761 = vperm.xlu0 %2760, %v1651
      %v2762 = vpop.permute.xlu0 %2761
      %2764 = vset.pattern.permute.xlu0 10
      %2765 = vperm.xlu0 %2764, %v1652
      %v2766 = vpop.permute.xlu0 %2765
      %v2768 = vmul.f32 %v2762, %v1653
      %v2769 = vmul.f32 %v2762, %v1654
      %v2770 = vmul.f32 %v2762, %v1655
      %v2771 = vmul.f32 %v2766, %v1656
      %v2772 = vmul.f32 %v2766, %v1657
      %v2773 = vmul.f32 %v2766, %v1658
      %2780 = vrot.lane.b32.xlu0 %v2768, 112
      %v2781 = vpop.permute.xlu0 %2780
      %2782 = vrot.lane.b32.xlu0 %v2769, 112
      %v2783 = vpop.permute.xlu0 %2782
      %2784 = vrot.lane.b32.xlu0 %v2770, 112
      %v2785 = vpop.permute.xlu0 %2784
      %2786 = vrot.lane.b32.xlu0 %v2771, 112
      %v2787 = vpop.permute.xlu0 %2786
      %2788 = vrot.lane.b32.xlu0 %v2772, 112
      %v2789 = vpop.permute.xlu0 %2788
      %2790 = vrot.lane.b32.xlu0 %v2773, 112
      %v2791 = vpop.permute.xlu0 %2790
      %v2792 = vsel %vm1713, %v2781, %v2783
      %v2793 = vsel %vm1713, %v2783, %v2785
      %v2794 = vsel %vm1713, %v2787, %v2789
      %v2795 = vsel %vm1713, %v2789, %v2791
      %v2802 = vadd.f32 %v2754, %v2792
      %v2803 = vadd.f32 %v2755, %v2793
      %v2804 = vadd.f32 %v2756, %v2785
      %v2805 = vadd.f32 %v2757, %v2794
      %v2806 = vadd.f32 %v2758, %v2795
      %v2807 = vadd.f32 %v2759, %v2791
      %2808 = vset.pattern.permute.xlu0 17
      %2809 = vperm.xlu0 %2808, %v1651
      %v2810 = vpop.permute.xlu0 %2809
      %2812 = vset.pattern.permute.xlu0 17
      %2813 = vperm.xlu0 %2812, %v1652
      %v2814 = vpop.permute.xlu0 %2813
      %v2816 = vmul.f32 %v2810, %v1653
      %v2817 = vmul.f32 %v2810, %v1654
      %v2818 = vmul.f32 %v2810, %v1655
      %v2819 = vmul.f32 %v2814, %v1656
      %v2820 = vmul.f32 %v2814, %v1657
      %v2821 = vmul.f32 %v2814, %v1658
      %2828 = vrot.lane.b32.xlu0 %v2816, 96
      %v2829 = vpop.permute.xlu0 %2828
      %2830 = vrot.lane.b32.xlu0 %v2817, 96
      %v2831 = vpop.permute.xlu0 %2830
      %2832 = vrot.lane.b32.xlu0 %v2818, 96
      %v2833 = vpop.permute.xlu0 %2832
      %2834 = vrot.lane.b32.xlu0 %v2819, 96
      %v2835 = vpop.permute.xlu0 %2834
      %2836 = vrot.lane.b32.xlu0 %v2820, 96
      %v2837 = vpop.permute.xlu0 %2836
      %2838 = vrot.lane.b32.xlu0 %v2821, 96
      %v2839 = vpop.permute.xlu0 %2838
      %v2840 = vsel %vm1762, %v2829, %v2831
      %v2841 = vsel %vm1762, %v2831, %v2833
      %v2842 = vsel %vm1762, %v2835, %v2837
      %v2843 = vsel %vm1762, %v2837, %v2839
      %v2850 = vadd.f32 %v2802, %v2840
      %v2851 = vadd.f32 %v2803, %v2841
      %v2852 = vadd.f32 %v2804, %v2833
      %v2853 = vadd.f32 %v2805, %v2842
      %v2854 = vadd.f32 %v2806, %v2843
      %v2855 = vadd.f32 %v2807, %v2839
      %2856 = vset.pattern.permute.xlu0 24
      %2857 = vperm.xlu0 %2856, %v1651
      %v2858 = vpop.permute.xlu0 %2857
      %2860 = vset.pattern.permute.xlu0 24
      %2861 = vperm.xlu0 %2860, %v1652
      %v2862 = vpop.permute.xlu0 %2861
      %v2864 = vmul.f32 %v2858, %v1654
      %v2865 = vmul.f32 %v2858, %v1655
      %v2866 = vmul.f32 %v2862, %v1657
      %v2867 = vmul.f32 %v2862, %v1658
      %2872 = vrot.lane.b32.xlu0 %v2864, 80
      %v2873 = vpop.permute.xlu0 %2872
      %2874 = vrot.lane.b32.xlu0 %v2865, 80
      %v2875 = vpop.permute.xlu0 %2874
      %2876 = vrot.lane.b32.xlu0 %v2866, 80
      %v2877 = vpop.permute.xlu0 %2876
      %2878 = vrot.lane.b32.xlu0 %v2867, 80
      %v2879 = vpop.permute.xlu0 %2878
      %v2880 = vsel %vm1811, %v2873, %v2875
      %v2881 = vsel %vm1811, %v2877, %v2879
      %v2888 = vadd.f32 %v2850, %v2873
      %v2889 = vadd.f32 %v2851, %v2880
      %v2890 = vadd.f32 %v2852, %v2875
      %v2891 = vadd.f32 %v2853, %v2877
      %v2892 = vadd.f32 %v2854, %v2881
      %v2893 = vadd.f32 %v2855, %v2879
      %2894 = vset.pattern.permute.xlu0 31
      %2895 = vperm.xlu0 %2894, %v1651
      %v2896 = vpop.permute.xlu0 %2895
      %2898 = vset.pattern.permute.xlu0 31
      %2899 = vperm.xlu0 %2898, %v1652
      %v2900 = vpop.permute.xlu0 %2899
      %v2902 = vmul.f32 %v2896, %v1828
      %v2903 = vmul.f32 %v2896, %v1829
      %v2904 = vmul.f32 %v2896, %v1830
      %v2905 = vmul.f32 %v2900, %v1831
      %v2906 = vmul.f32 %v2900, %v1832
      %v2907 = vmul.f32 %v2900, %v1833
      %2914 = vrot.lane.b32.xlu0 %v2902, 64
      %v2915 = vpop.permute.xlu0 %2914
      %2916 = vrot.lane.b32.xlu0 %v2903, 64
      %v2917 = vpop.permute.xlu0 %2916
      %2918 = vrot.lane.b32.xlu0 %v2904, 64
      %v2919 = vpop.permute.xlu0 %2918
      %2920 = vrot.lane.b32.xlu0 %v2905, 64
      %v2921 = vpop.permute.xlu0 %2920
      %2922 = vrot.lane.b32.xlu0 %v2906, 64
      %v2923 = vpop.permute.xlu0 %2922
      %2924 = vrot.lane.b32.xlu0 %v2907, 64
      %v2925 = vpop.permute.xlu0 %2924
      %v2926 = vsel %vm1866, %v2915, %v2917
      %v2927 = vsel %vm1866, %v2917, %v2919
      %v2928 = vsel %vm1866, %v2921, %v2923
      %v2929 = vsel %vm1866, %v2923, %v2925
      %v2936 = vadd.f32 %v2888, %v2915
      %v2937 = vadd.f32 %v2889, %v2926
      %v2938 = vadd.f32 %v2890, %v2927
      %v2939 = vadd.f32 %v2891, %v2921
      %v2940 = vadd.f32 %v2892, %v2928
      %v2941 = vadd.f32 %v2893, %v2929
      %2942 = vset.pattern.permute.xlu0 38
      %2943 = vperm.xlu0 %2942, %v1651
      %v2944 = vpop.permute.xlu0 %2943
      %2946 = vset.pattern.permute.xlu0 38
      %2947 = vperm.xlu0 %2946, %v1652
      %v2948 = vpop.permute.xlu0 %2947
      %v2950 = vmul.f32 %v2944, %v1828
      %v2951 = vmul.f32 %v2944, %v1829
      %v2952 = vmul.f32 %v2944, %v1830
      %v2953 = vmul.f32 %v2948, %v1831
      %v2954 = vmul.f32 %v2948, %v1832
      %v2955 = vmul.f32 %v2948, %v1833
      %2962 = vrot.lane.b32.xlu0 %v2950, 48
      %v2963 = vpop.permute.xlu0 %2962
      %2964 = vrot.lane.b32.xlu0 %v2951, 48
      %v2965 = vpop.permute.xlu0 %2964
      %2966 = vrot.lane.b32.xlu0 %v2952, 48
      %v2967 = vpop.permute.xlu0 %2966
      %2968 = vrot.lane.b32.xlu0 %v2953, 48
      %v2969 = vpop.permute.xlu0 %2968
      %2970 = vrot.lane.b32.xlu0 %v2954, 48
      %v2971 = vpop.permute.xlu0 %2970
      %2972 = vrot.lane.b32.xlu0 %v2955, 48
      %v2973 = vpop.permute.xlu0 %2972
      %v2974 = vsel %vm1915, %v2963, %v2965
      %v2975 = vsel %vm1915, %v2965, %v2967
      %v2976 = vsel %vm1915, %v2969, %v2971
      %v2977 = vsel %vm1915, %v2971, %v2973
      %v2984 = vadd.f32 %v2936, %v2963
      %v2985 = vadd.f32 %v2937, %v2974
      %v2986 = vadd.f32 %v2938, %v2975
      %v2987 = vadd.f32 %v2939, %v2969
      %v2988 = vadd.f32 %v2940, %v2976
      %v2989 = vadd.f32 %v2941, %v2977
      %2990 = vset.pattern.permute.xlu0 45
      %2991 = vperm.xlu0 %2990, %v1651
      %v2992 = vpop.permute.xlu0 %2991
      %2994 = vset.pattern.permute.xlu0 45
      %2995 = vperm.xlu0 %2994, %v1652
      %v2996 = vpop.permute.xlu0 %2995
      %v2998 = vmul.f32 %v2992, %v1828
      %v2999 = vmul.f32 %v2992, %v1829
      %v3000 = vmul.f32 %v2992, %v1830
      %v3001 = vmul.f32 %v2996, %v1831
      %v3002 = vmul.f32 %v2996, %v1832
      %v3003 = vmul.f32 %v2996, %v1833
      %3010 = vrot.lane.b32.xlu0 %v2998, 32
      %v3011 = vpop.permute.xlu0 %3010
      %3012 = vrot.lane.b32.xlu0 %v2999, 32
      %v3013 = vpop.permute.xlu0 %3012
      %3014 = vrot.lane.b32.xlu0 %v3000, 32
      %v3015 = vpop.permute.xlu0 %3014
      %3016 = vrot.lane.b32.xlu0 %v3001, 32
      %v3017 = vpop.permute.xlu0 %3016
      %3018 = vrot.lane.b32.xlu0 %v3002, 32
      %v3019 = vpop.permute.xlu0 %3018
      %3020 = vrot.lane.b32.xlu0 %v3003, 32
      %v3021 = vpop.permute.xlu0 %3020
      %v3022 = vsel %vm1964, %v3011, %v3013
      %v3023 = vsel %vm1964, %v3013, %v3015
      %v3024 = vsel %vm1964, %v3017, %v3019
      %v3025 = vsel %vm1964, %v3019, %v3021
      %v3032 = vadd.f32 %v2984, %v3011
      %v3033 = vadd.f32 %v2985, %v3022
      %v3034 = vadd.f32 %v2986, %v3023
      %v3035 = vadd.f32 %v2987, %v3017
      %v3036 = vadd.f32 %v2988, %v3024
      %v3037 = vadd.f32 %v2989, %v3025
      %s3038 = scalar_lea.vmem %s3, 3
      %v3039 = vld [vmem:[%s3038] ss:$8 sm:$0x3]
      %v3041 = vlaneseq
      %v3042 = vshrl.u32 %v3041, 7
      %v3043 = vsub.s32 0, %v3042
      %v3044 = vrot.slane %v3039, %v3043
      %v3045 = vlaneseq
      %v3046 = vshrl.u32 %v3045, 7
      %v3047 = vsub.s32 1, %v3046
      %v3048 = vrot.slane %v3039, %v3047
      %3057 = vrot.lane.b32.xlu0 %v3032, 48
      %v3058 = vpop.permute.xlu0 %3057
      %3059 = vrot.lane.b32.xlu0 %v3033, 48
      %v3060 = vpop.permute.xlu0 %3059
      %3061 = vrot.lane.b32.xlu0 %v3034, 48
      %v3062 = vpop.permute.xlu0 %3061
      %3063 = vrot.lane.b32.xlu0 %v3035, 48
      %v3064 = vpop.permute.xlu0 %3063
      %3065 = vrot.lane.b32.xlu0 %v3036, 48
      %v3066 = vpop.permute.xlu0 %3065
      %3067 = vrot.lane.b32.xlu0 %v3037, 48
      %v3068 = vpop.permute.xlu0 %3067
      %v3069 = vsel %vm1915, %v3058, %v3060
      %v3070 = vsel %vm1915, %v3060, %v3062
      %v3071 = vsel %vm1915, %v3064, %v3066
      %v3072 = vsel %vm1915, %v3066, %v3068
      %v3077 = vmul.f32 %v3044, %v3069
      %v3078 = vmul.f32 %v3048, %v3070
      %v3079 = vmul.f32 %v3044, %v3071
      %v3080 = vmul.f32 %v3048, %v3072
      %v3081 = vadd.f32 %v2736, %v3077
      %v3082 = vadd.f32 %v2737, %v3078
      %v3083 = vadd.f32 %v2738, %v3079
      %v3084 = vadd.f32 %v2739, %v3080
      %3085 = vset.pattern.permute.xlu0 4
      %3086 = vperm.xlu0 %3085, %v1651
      %v3087 = vpop.permute.xlu0 %3086
      %3089 = vset.pattern.permute.xlu0 4
      %3090 = vperm.xlu0 %3089, %v1652
      %v3091 = vpop.permute.xlu0 %3090
      %v3093 = vmul.f32 %v3087, %v1653
      %v3094 = vmul.f32 %v3087, %v1654
      %v3095 = vmul.f32 %v3087, %v1655
      %v3096 = vmul.f32 %v3091, %v1656
      %v3097 = vmul.f32 %v3091, %v1657
      %v3098 = vmul.f32 %v3091, %v1658
      %v3099 = vadd.f32 %v3093, 0.0
      %v3100 = vadd.f32 %v3094, 0.0
      %v3101 = vadd.f32 %v3095, 0.0
      %v3102 = vadd.f32 %v3096, 0.0
      %v3103 = vadd.f32 %v3097, 0.0
      %v3104 = vadd.f32 %v3098, 0.0
      %3105 = vset.pattern.permute.xlu0 11
      %3106 = vperm.xlu0 %3105, %v1651
      %v3107 = vpop.permute.xlu0 %3106
      %3109 = vset.pattern.permute.xlu0 11
      %3110 = vperm.xlu0 %3109, %v1652
      %v3111 = vpop.permute.xlu0 %3110
      %v3113 = vmul.f32 %v3107, %v1653
      %v3114 = vmul.f32 %v3107, %v1654
      %v3115 = vmul.f32 %v3107, %v1655
      %v3116 = vmul.f32 %v3111, %v1656
      %v3117 = vmul.f32 %v3111, %v1657
      %v3118 = vmul.f32 %v3111, %v1658
      %3125 = vrot.lane.b32.xlu0 %v3113, 112
      %v3126 = vpop.permute.xlu0 %3125
      %3127 = vrot.lane.b32.xlu0 %v3114, 112
      %v3128 = vpop.permute.xlu0 %3127
      %3129 = vrot.lane.b32.xlu0 %v3115, 112
      %v3130 = vpop.permute.xlu0 %3129
      %3131 = vrot.lane.b32.xlu0 %v3116, 112
      %v3132 = vpop.permute.xlu0 %3131
      %3133 = vrot.lane.b32.xlu0 %v3117, 112
      %v3134 = vpop.permute.xlu0 %3133
      %3135 = vrot.lane.b32.xlu0 %v3118, 112
      %v3136 = vpop.permute.xlu0 %3135
      %v3137 = vsel %vm1713, %v3126, %v3128
      %v3138 = vsel %vm1713, %v3128, %v3130
      %v3139 = vsel %vm1713, %v3132, %v3134
      %v3140 = vsel %vm1713, %v3134, %v3136
      %v3147 = vadd.f32 %v3099, %v3137
      %v3148 = vadd.f32 %v3100, %v3138
      %v3149 = vadd.f32 %v3101, %v3130
      %v3150 = vadd.f32 %v3102, %v3139
      %v3151 = vadd.f32 %v3103, %v3140
      %v3152 = vadd.f32 %v3104, %v3136
      %3153 = vset.pattern.permute.xlu0 18
      %3154 = vperm.xlu0 %3153, %v1651
      %v3155 = vpop.permute.xlu0 %3154
      %3157 = vset.pattern.permute.xlu0 18
      %3158 = vperm.xlu0 %3157, %v1652
      %v3159 = vpop.permute.xlu0 %3158
      %v3161 = vmul.f32 %v3155, %v1653
      %v3162 = vmul.f32 %v3155, %v1654
      %v3163 = vmul.f32 %v3155, %v1655
      %v3164 = vmul.f32 %v3159, %v1656
      %v3165 = vmul.f32 %v3159, %v1657
      %v3166 = vmul.f32 %v3159, %v1658
      %3173 = vrot.lane.b32.xlu0 %v3161, 96
      %v3174 = vpop.permute.xlu0 %3173
      %3175 = vrot.lane.b32.xlu0 %v3162, 96
      %v3176 = vpop.permute.xlu0 %3175
      %3177 = vrot.lane.b32.xlu0 %v3163, 96
      %v3178 = vpop.permute.xlu0 %3177
      %3179 = vrot.lane.b32.xlu0 %v3164, 96
      %v3180 = vpop.permute.xlu0 %3179
      %3181 = vrot.lane.b32.xlu0 %v3165, 96
      %v3182 = vpop.permute.xlu0 %3181
      %3183 = vrot.lane.b32.xlu0 %v3166, 96
      %v3184 = vpop.permute.xlu0 %3183
      %v3185 = vsel %vm1762, %v3174, %v3176
      %v3186 = vsel %vm1762, %v3176, %v3178
      %v3187 = vsel %vm1762, %v3180, %v3182
      %v3188 = vsel %vm1762, %v3182, %v3184
      %v3195 = vadd.f32 %v3147, %v3185
      %v3196 = vadd.f32 %v3148, %v3186
      %v3197 = vadd.f32 %v3149, %v3178
      %v3198 = vadd.f32 %v3150, %v3187
      %v3199 = vadd.f32 %v3151, %v3188
      %v3200 = vadd.f32 %v3152, %v3184
      %3201 = vset.pattern.permute.xlu0 25
      %3202 = vperm.xlu0 %3201, %v1651
      %v3203 = vpop.permute.xlu0 %3202
      %3205 = vset.pattern.permute.xlu0 25
      %3206 = vperm.xlu0 %3205, %v1652
      %v3207 = vpop.permute.xlu0 %3206
      %v3209 = vmul.f32 %v3203, %v1828
      %v3210 = vmul.f32 %v3203, %v1829
      %v3211 = vmul.f32 %v3203, %v1830
      %v3212 = vmul.f32 %v3207, %v1831
      %v3213 = vmul.f32 %v3207, %v1832
      %v3214 = vmul.f32 %v3207, %v1833
      %3221 = vrot.lane.b32.xlu0 %v3209, 80
      %v3222 = vpop.permute.xlu0 %3221
      %3223 = vrot.lane.b32.xlu0 %v3210, 80
      %v3224 = vpop.permute.xlu0 %3223
      %3225 = vrot.lane.b32.xlu0 %v3211, 80
      %v3226 = vpop.permute.xlu0 %3225
      %3227 = vrot.lane.b32.xlu0 %v3212, 80
      %v3228 = vpop.permute.xlu0 %3227
      %3229 = vrot.lane.b32.xlu0 %v3213, 80
      %v3230 = vpop.permute.xlu0 %3229
      %3231 = vrot.lane.b32.xlu0 %v3214, 80
      %v3232 = vpop.permute.xlu0 %3231
      %v3233 = vsel %vm1811, %v3222, %v3224
      %v3234 = vsel %vm1811, %v3224, %v3226
      %v3235 = vsel %vm1811, %v3228, %v3230
      %v3236 = vsel %vm1811, %v3230, %v3232
      %v3243 = vadd.f32 %v3195, %v3222
      %v3244 = vadd.f32 %v3196, %v3233
      %v3245 = vadd.f32 %v3197, %v3234
      %v3246 = vadd.f32 %v3198, %v3228
      %v3247 = vadd.f32 %v3199, %v3235
      %v3248 = vadd.f32 %v3200, %v3236
      %3249 = vset.pattern.permute.xlu0 32
      %3250 = vperm.xlu0 %3249, %v1651
      %v3251 = vpop.permute.xlu0 %3250
      %3253 = vset.pattern.permute.xlu0 32
      %3254 = vperm.xlu0 %3253, %v1652
      %v3255 = vpop.permute.xlu0 %3254
      %v3257 = vmul.f32 %v3251, %v1828
      %v3258 = vmul.f32 %v3251, %v1829
      %v3259 = vmul.f32 %v3251, %v1830
      %v3260 = vmul.f32 %v3255, %v1831
      %v3261 = vmul.f32 %v3255, %v1832
      %v3262 = vmul.f32 %v3255, %v1833
      %3269 = vrot.lane.b32.xlu0 %v3257, 64
      %v3270 = vpop.permute.xlu0 %3269
      %3271 = vrot.lane.b32.xlu0 %v3258, 64
      %v3272 = vpop.permute.xlu0 %3271
      %3273 = vrot.lane.b32.xlu0 %v3259, 64
      %v3274 = vpop.permute.xlu0 %3273
      %3275 = vrot.lane.b32.xlu0 %v3260, 64
      %v3276 = vpop.permute.xlu0 %3275
      %3277 = vrot.lane.b32.xlu0 %v3261, 64
      %v3278 = vpop.permute.xlu0 %3277
      %3279 = vrot.lane.b32.xlu0 %v3262, 64
      %v3280 = vpop.permute.xlu0 %3279
      %v3281 = vsel %vm1866, %v3270, %v3272
      %v3282 = vsel %vm1866, %v3272, %v3274
      %v3283 = vsel %vm1866, %v3276, %v3278
      %v3284 = vsel %vm1866, %v3278, %v3280
      %v3291 = vadd.f32 %v3243, %v3270
      %v3292 = vadd.f32 %v3244, %v3281
      %v3293 = vadd.f32 %v3245, %v3282
      %v3294 = vadd.f32 %v3246, %v3276
      %v3295 = vadd.f32 %v3247, %v3283
      %v3296 = vadd.f32 %v3248, %v3284
      %3297 = vset.pattern.permute.xlu0 39
      %3298 = vperm.xlu0 %3297, %v1651
      %v3299 = vpop.permute.xlu0 %3298
      %3301 = vset.pattern.permute.xlu0 39
      %3302 = vperm.xlu0 %3301, %v1652
      %v3303 = vpop.permute.xlu0 %3302
      %v3305 = vmul.f32 %v3299, %v1828
      %v3306 = vmul.f32 %v3299, %v1829
      %v3307 = vmul.f32 %v3299, %v1830
      %v3308 = vmul.f32 %v3303, %v1831
      %v3309 = vmul.f32 %v3303, %v1832
      %v3310 = vmul.f32 %v3303, %v1833
      %3317 = vrot.lane.b32.xlu0 %v3305, 48
      %v3318 = vpop.permute.xlu0 %3317
      %3319 = vrot.lane.b32.xlu0 %v3306, 48
      %v3320 = vpop.permute.xlu0 %3319
      %3321 = vrot.lane.b32.xlu0 %v3307, 48
      %v3322 = vpop.permute.xlu0 %3321
      %3323 = vrot.lane.b32.xlu0 %v3308, 48
      %v3324 = vpop.permute.xlu0 %3323
      %3325 = vrot.lane.b32.xlu0 %v3309, 48
      %v3326 = vpop.permute.xlu0 %3325
      %3327 = vrot.lane.b32.xlu0 %v3310, 48
      %v3328 = vpop.permute.xlu0 %3327
      %v3329 = vsel %vm1915, %v3318, %v3320
      %v3330 = vsel %vm1915, %v3320, %v3322
      %v3331 = vsel %vm1915, %v3324, %v3326
      %v3332 = vsel %vm1915, %v3326, %v3328
      %v3339 = vadd.f32 %v3291, %v3318
      %v3340 = vadd.f32 %v3292, %v3329
      %v3341 = vadd.f32 %v3293, %v3330
      %v3342 = vadd.f32 %v3294, %v3324
      %v3343 = vadd.f32 %v3295, %v3331
      %v3344 = vadd.f32 %v3296, %v3332
      %3345 = vset.pattern.permute.xlu0 46
      %3346 = vperm.xlu0 %3345, %v1651
      %v3347 = vpop.permute.xlu0 %3346
      %3349 = vset.pattern.permute.xlu0 46
      %3350 = vperm.xlu0 %3349, %v1652
      %v3351 = vpop.permute.xlu0 %3350
      %v3353 = vmul.f32 %v3347, %v1828
      %v3354 = vmul.f32 %v3347, %v1829
      %v3355 = vmul.f32 %v3347, %v1830
      %v3356 = vmul.f32 %v3351, %v1831
      %v3357 = vmul.f32 %v3351, %v1832
      %v3358 = vmul.f32 %v3351, %v1833
      %3365 = vrot.lane.b32.xlu0 %v3353, 32
      %v3366 = vpop.permute.xlu0 %3365
      %3367 = vrot.lane.b32.xlu0 %v3354, 32
      %v3368 = vpop.permute.xlu0 %3367
      %3369 = vrot.lane.b32.xlu0 %v3355, 32
      %v3370 = vpop.permute.xlu0 %3369
      %3371 = vrot.lane.b32.xlu0 %v3356, 32
      %v3372 = vpop.permute.xlu0 %3371
      %3373 = vrot.lane.b32.xlu0 %v3357, 32
      %v3374 = vpop.permute.xlu0 %3373
      %3375 = vrot.lane.b32.xlu0 %v3358, 32
      %v3376 = vpop.permute.xlu0 %3375
      %v3377 = vsel %vm1964, %v3366, %v3368
      %v3378 = vsel %vm1964, %v3368, %v3370
      %v3379 = vsel %vm1964, %v3372, %v3374
      %v3380 = vsel %vm1964, %v3374, %v3376
      %v3387 = vadd.f32 %v3339, %v3366
      %v3388 = vadd.f32 %v3340, %v3377
      %v3389 = vadd.f32 %v3341, %v3378
      %v3390 = vadd.f32 %v3342, %v3372
      %v3391 = vadd.f32 %v3343, %v3379
      %v3392 = vadd.f32 %v3344, %v3380
      %s3393 = scalar_lea.vmem %s3, 4
      %v3394 = vld [vmem:[%s3393] ss:$8 sm:$0x3]
      %v3396 = vlaneseq
      %v3397 = vshrl.u32 %v3396, 7
      %v3398 = vsub.s32 0, %v3397
      %v3399 = vrot.slane %v3394, %v3398
      %v3400 = vlaneseq
      %v3401 = vshrl.u32 %v3400, 7
      %v3402 = vsub.s32 1, %v3401
      %v3403 = vrot.slane %v3394, %v3402
      %3412 = vrot.lane.b32.xlu0 %v3387, 47
      %v3413 = vpop.permute.xlu0 %3412
      %3414 = vrot.lane.b32.xlu0 %v3388, 47
      %v3415 = vpop.permute.xlu0 %3414
      %3416 = vrot.lane.b32.xlu0 %v3389, 47
      %v3417 = vpop.permute.xlu0 %3416
      %3418 = vrot.lane.b32.xlu0 %v3390, 47
      %v3419 = vpop.permute.xlu0 %3418
      %3420 = vrot.lane.b32.xlu0 %v3391, 47
      %v3421 = vpop.permute.xlu0 %3420
      %3422 = vrot.lane.b32.xlu0 %v3392, 47
      %v3423 = vpop.permute.xlu0 %3422
      %vm3424 = vcmask 384000
      %v3425 = vsel %vm3424, %v3413, %v3415
      %v3426 = vsel %vm3424, %v3415, %v3417
      %v3427 = vsel %vm3424, %v3419, %v3421
      %v3428 = vsel %vm3424, %v3421, %v3423
      %v3433 = vmul.f32 %v3399, %v3425
      %v3434 = vmul.f32 %v3403, %v3426
      %v3435 = vmul.f32 %v3399, %v3427
      %v3436 = vmul.f32 %v3403, %v3428
      %v3437 = vadd.f32 %v3081, %v3433
      %v3438 = vadd.f32 %v3082, %v3434
      %v3439 = vadd.f32 %v3083, %v3435
      %v3440 = vadd.f32 %v3084, %v3436
      %3441 = vset.pattern.permute.xlu0 5
      %3442 = vperm.xlu0 %3441, %v1651
      %v3443 = vpop.permute.xlu0 %3442
      %3445 = vset.pattern.permute.xlu0 5
      %3446 = vperm.xlu0 %3445, %v1652
      %v3447 = vpop.permute.xlu0 %3446
      %v3449 = vmul.f32 %v3443, %v1653
      %v3450 = vmul.f32 %v3443, %v1654
      %v3451 = vmul.f32 %v3443, %v1655
      %v3452 = vmul.f32 %v3447, %v1656
      %v3453 = vmul.f32 %v3447, %v1657
      %v3454 = vmul.f32 %v3447, %v1658
      %v3455 = vadd.f32 %v3449, 0.0
      %v3456 = vadd.f32 %v3450, 0.0
      %v3457 = vadd.f32 %v3451, 0.0
      %v3458 = vadd.f32 %v3452, 0.0
      %v3459 = vadd.f32 %v3453, 0.0
      %v3460 = vadd.f32 %v3454, 0.0
      %3461 = vset.pattern.permute.xlu0 12
      %3462 = vperm.xlu0 %3461, %v1651
      %v3463 = vpop.permute.xlu0 %3462
      %3465 = vset.pattern.permute.xlu0 12
      %3466 = vperm.xlu0 %3465, %v1652
      %v3467 = vpop.permute.xlu0 %3466
      %v3469 = vmul.f32 %v3463, %v1653
      %v3470 = vmul.f32 %v3463, %v1654
      %v3471 = vmul.f32 %v3463, %v1655
      %v3472 = vmul.f32 %v3467, %v1656
      %v3473 = vmul.f32 %v3467, %v1657
      %v3474 = vmul.f32 %v3467, %v1658
      %3481 = vrot.lane.b32.xlu0 %v3469, 112
      %v3482 = vpop.permute.xlu0 %3481
      %3483 = vrot.lane.b32.xlu0 %v3470, 112
      %v3484 = vpop.permute.xlu0 %3483
      %3485 = vrot.lane.b32.xlu0 %v3471, 112
      %v3486 = vpop.permute.xlu0 %3485
      %3487 = vrot.lane.b32.xlu0 %v3472, 112
      %v3488 = vpop.permute.xlu0 %3487
      %3489 = vrot.lane.b32.xlu0 %v3473, 112
      %v3490 = vpop.permute.xlu0 %3489
      %3491 = vrot.lane.b32.xlu0 %v3474, 112
      %v3492 = vpop.permute.xlu0 %3491
      %v3493 = vsel %vm1713, %v3482, %v3484
      %v3494 = vsel %vm1713, %v3484, %v3486
      %v3495 = vsel %vm1713, %v3488, %v3490
      %v3496 = vsel %vm1713, %v3490, %v3492
      %v3503 = vadd.f32 %v3455, %v3493
      %v3504 = vadd.f32 %v3456, %v3494
      %v3505 = vadd.f32 %v3457, %v3486
      %v3506 = vadd.f32 %v3458, %v3495
      %v3507 = vadd.f32 %v3459, %v3496
      %v3508 = vadd.f32 %v3460, %v3492
      %3509 = vset.pattern.permute.xlu0 19
      %3510 = vperm.xlu0 %3509, %v1651
      %v3511 = vpop.permute.xlu0 %3510
      %3513 = vset.pattern.permute.xlu0 19
      %3514 = vperm.xlu0 %3513, %v1652
      %v3515 = vpop.permute.xlu0 %3514
      %v3517 = vmul.f32 %v3511, %v1653
      %v3518 = vmul.f32 %v3511, %v1654
      %v3519 = vmul.f32 %v3511, %v1655
      %v3520 = vmul.f32 %v3515, %v1656
      %v3521 = vmul.f32 %v3515, %v1657
      %v3522 = vmul.f32 %v3515, %v1658
      %3529 = vrot.lane.b32.xlu0 %v3517, 96
      %v3530 = vpop.permute.xlu0 %3529
      %3531 = vrot.lane.b32.xlu0 %v3518, 96
      %v3532 = vpop.permute.xlu0 %3531
      %3533 = vrot.lane.b32.xlu0 %v3519, 96
      %v3534 = vpop.permute.xlu0 %3533
      %3535 = vrot.lane.b32.xlu0 %v3520, 96
      %v3536 = vpop.permute.xlu0 %3535
      %3537 = vrot.lane.b32.xlu0 %v3521, 96
      %v3538 = vpop.permute.xlu0 %3537
      %3539 = vrot.lane.b32.xlu0 %v3522, 96
      %v3540 = vpop.permute.xlu0 %3539
      %v3541 = vsel %vm1762, %v3530, %v3532
      %v3542 = vsel %vm1762, %v3532, %v3534
      %v3543 = vsel %vm1762, %v3536, %v3538
      %v3544 = vsel %vm1762, %v3538, %v3540
      %v3551 = vadd.f32 %v3503, %v3541
      %v3552 = vadd.f32 %v3504, %v3542
      %v3553 = vadd.f32 %v3505, %v3534
      %v3554 = vadd.f32 %v3506, %v3543
      %v3555 = vadd.f32 %v3507, %v3544
      %v3556 = vadd.f32 %v3508, %v3540
      %3557 = vset.pattern.permute.xlu0 26
      %3558 = vperm.xlu0 %3557, %v1651
      %v3559 = vpop.permute.xlu0 %3558
      %3561 = vset.pattern.permute.xlu0 26
      %3562 = vperm.xlu0 %3561, %v1652
      %v3563 = vpop.permute.xlu0 %3562
      %v3565 = vmul.f32 %v3559, %v1828
      %v3566 = vmul.f32 %v3559, %v1829
      %v3567 = vmul.f32 %v3559, %v1830
      %v3568 = vmul.f32 %v3563, %v1831
      %v3569 = vmul.f32 %v3563, %v1832
      %v3570 = vmul.f32 %v3563, %v1833
      %3577 = vrot.lane.b32.xlu0 %v3565, 80
      %v3578 = vpop.permute.xlu0 %3577
      %3579 = vrot.lane.b32.xlu0 %v3566, 80
      %v3580 = vpop.permute.xlu0 %3579
      %3581 = vrot.lane.b32.xlu0 %v3567, 80
      %v3582 = vpop.permute.xlu0 %3581
      %3583 = vrot.lane.b32.xlu0 %v3568, 80
      %v3584 = vpop.permute.xlu0 %3583
      %3585 = vrot.lane.b32.xlu0 %v3569, 80
      %v3586 = vpop.permute.xlu0 %3585
      %3587 = vrot.lane.b32.xlu0 %v3570, 80
      %v3588 = vpop.permute.xlu0 %3587
      %v3589 = vsel %vm1811, %v3578, %v3580
      %v3590 = vsel %vm1811, %v3580, %v3582
      %v3591 = vsel %vm1811, %v3584, %v3586
      %v3592 = vsel %vm1811, %v3586, %v3588
      %v3599 = vadd.f32 %v3551, %v3578
      %v3600 = vadd.f32 %v3552, %v3589
      %v3601 = vadd.f32 %v3553, %v3590
      %v3602 = vadd.f32 %v3554, %v3584
      %v3603 = vadd.f32 %v3555, %v3591
      %v3604 = vadd.f32 %v3556, %v3592
      %3605 = vset.pattern.permute.xlu0 33
      %3606 = vperm.xlu0 %3605, %v1651
      %v3607 = vpop.permute.xlu0 %3606
      %3609 = vset.pattern.permute.xlu0 33
      %3610 = vperm.xlu0 %3609, %v1652
      %v3611 = vpop.permute.xlu0 %3610
      %v3613 = vmul.f32 %v3607, %v1828
      %v3614 = vmul.f32 %v3607, %v1829
      %v3615 = vmul.f32 %v3607, %v1830
      %v3616 = vmul.f32 %v3611, %v1831
      %v3617 = vmul.f32 %v3611, %v1832
      %v3618 = vmul.f32 %v3611, %v1833
      %3625 = vrot.lane.b32.xlu0 %v3613, 64
      %v3626 = vpop.permute.xlu0 %3625
      %3627 = vrot.lane.b32.xlu0 %v3614, 64
      %v3628 = vpop.permute.xlu0 %3627
      %3629 = vrot.lane.b32.xlu0 %v3615, 64
      %v3630 = vpop.permute.xlu0 %3629
      %3631 = vrot.lane.b32.xlu0 %v3616, 64
      %v3632 = vpop.permute.xlu0 %3631
      %3633 = vrot.lane.b32.xlu0 %v3617, 64
      %v3634 = vpop.permute.xlu0 %3633
      %3635 = vrot.lane.b32.xlu0 %v3618, 64
      %v3636 = vpop.permute.xlu0 %3635
      %v3637 = vsel %vm1866, %v3626, %v3628
      %v3638 = vsel %vm1866, %v3628, %v3630
      %v3639 = vsel %vm1866, %v3632, %v3634
      %v3640 = vsel %vm1866, %v3634, %v3636
      %v3647 = vadd.f32 %v3599, %v3626
      %v3648 = vadd.f32 %v3600, %v3637
      %v3649 = vadd.f32 %v3601, %v3638
      %v3650 = vadd.f32 %v3602, %v3632
      %v3651 = vadd.f32 %v3603, %v3639
      %v3652 = vadd.f32 %v3604, %v3640
      %3653 = vset.pattern.permute.xlu0 40
      %3654 = vperm.xlu0 %3653, %v1651
      %v3655 = vpop.permute.xlu0 %3654
      %3657 = vset.pattern.permute.xlu0 40
      %3658 = vperm.xlu0 %3657, %v1652
      %v3659 = vpop.permute.xlu0 %3658
      %v3661 = vmul.f32 %v3655, %v1828
      %v3662 = vmul.f32 %v3655, %v1829
      %v3663 = vmul.f32 %v3655, %v1830
      %v3664 = vmul.f32 %v3659, %v1831
      %v3665 = vmul.f32 %v3659, %v1832
      %v3666 = vmul.f32 %v3659, %v1833
      %3673 = vrot.lane.b32.xlu0 %v3661, 48
      %v3674 = vpop.permute.xlu0 %3673
      %3675 = vrot.lane.b32.xlu0 %v3662, 48
      %v3676 = vpop.permute.xlu0 %3675
      %3677 = vrot.lane.b32.xlu0 %v3663, 48
      %v3678 = vpop.permute.xlu0 %3677
      %3679 = vrot.lane.b32.xlu0 %v3664, 48
      %v3680 = vpop.permute.xlu0 %3679
      %3681 = vrot.lane.b32.xlu0 %v3665, 48
      %v3682 = vpop.permute.xlu0 %3681
      %3683 = vrot.lane.b32.xlu0 %v3666, 48
      %v3684 = vpop.permute.xlu0 %3683
      %v3685 = vsel %vm1915, %v3674, %v3676
      %v3686 = vsel %vm1915, %v3676, %v3678
      %v3687 = vsel %vm1915, %v3680, %v3682
      %v3688 = vsel %vm1915, %v3682, %v3684
      %v3695 = vadd.f32 %v3647, %v3674
      %v3696 = vadd.f32 %v3648, %v3685
      %v3697 = vadd.f32 %v3649, %v3686
      %v3698 = vadd.f32 %v3650, %v3680
      %v3699 = vadd.f32 %v3651, %v3687
      %v3700 = vadd.f32 %v3652, %v3688
      %3701 = vset.pattern.permute.xlu0 47
      %3702 = vperm.xlu0 %3701, %v1651
      %v3703 = vpop.permute.xlu0 %3702
      %3705 = vset.pattern.permute.xlu0 47
      %3706 = vperm.xlu0 %3705, %v1652
      %v3707 = vpop.permute.xlu0 %3706
      %v3709 = vmul.f32 %v3703, %v1828
      %v3710 = vmul.f32 %v3703, %v1829
      %v3711 = vmul.f32 %v3703, %v1830
      %v3712 = vmul.f32 %v3707, %v1831
      %v3713 = vmul.f32 %v3707, %v1832
      %v3714 = vmul.f32 %v3707, %v1833
      %3721 = vrot.lane.b32.xlu0 %v3709, 32
      %v3722 = vpop.permute.xlu0 %3721
      %3723 = vrot.lane.b32.xlu0 %v3710, 32
      %v3724 = vpop.permute.xlu0 %3723
      %3725 = vrot.lane.b32.xlu0 %v3711, 32
      %v3726 = vpop.permute.xlu0 %3725
      %3727 = vrot.lane.b32.xlu0 %v3712, 32
      %v3728 = vpop.permute.xlu0 %3727
      %3729 = vrot.lane.b32.xlu0 %v3713, 32
      %v3730 = vpop.permute.xlu0 %3729
      %3731 = vrot.lane.b32.xlu0 %v3714, 32
      %v3732 = vpop.permute.xlu0 %3731
      %v3733 = vsel %vm1964, %v3722, %v3724
      %v3734 = vsel %vm1964, %v3724, %v3726
      %v3735 = vsel %vm1964, %v3728, %v3730
      %v3736 = vsel %vm1964, %v3730, %v3732
      %v3743 = vadd.f32 %v3695, %v3722
      %v3744 = vadd.f32 %v3696, %v3733
      %v3745 = vadd.f32 %v3697, %v3734
      %v3746 = vadd.f32 %v3698, %v3728
      %v3747 = vadd.f32 %v3699, %v3735
      %v3748 = vadd.f32 %v3700, %v3736
      %s3749 = scalar_lea.vmem %s3, 5
      %v3750 = vld [vmem:[%s3749] ss:$8 sm:$0x3]
      %v3752 = vlaneseq
      %v3753 = vshrl.u32 %v3752, 7
      %v3754 = vsub.s32 0, %v3753
      %v3755 = vrot.slane %v3750, %v3754
      %v3756 = vlaneseq
      %v3757 = vshrl.u32 %v3756, 7
      %v3758 = vsub.s32 1, %v3757
      %v3759 = vrot.slane %v3750, %v3758
      %3768 = vrot.lane.b32.xlu0 %v3743, 46
      %v3769 = vpop.permute.xlu0 %3768
      %3770 = vrot.lane.b32.xlu0 %v3744, 46
      %v3771 = vpop.permute.xlu0 %3770
      %3772 = vrot.lane.b32.xlu0 %v3745, 46
      %v3773 = vpop.permute.xlu0 %3772
      %3774 = vrot.lane.b32.xlu0 %v3746, 46
      %v3775 = vpop.permute.xlu0 %3774
      %3776 = vrot.lane.b32.xlu0 %v3747, 46
      %v3777 = vpop.permute.xlu0 %3776
      %3778 = vrot.lane.b32.xlu0 %v3748, 46
      %v3779 = vpop.permute.xlu0 %3778
      %vm3780 = vcmask 375808
      %v3781 = vsel %vm3780, %v3769, %v3771
      %v3782 = vsel %vm3780, %v3771, %v3773
      %v3783 = vsel %vm3780, %v3775, %v3777
      %v3784 = vsel %vm3780, %v3777, %v3779
      %v3789 = vmul.f32 %v3755, %v3781
      %v3790 = vmul.f32 %v3759, %v3782
      %v3791 = vmul.f32 %v3755, %v3783
      %v3792 = vmul.f32 %v3759, %v3784
      %v3793 = vadd.f32 %v3437, %v3789
      %v3794 = vadd.f32 %v3438, %v3790
      %v3795 = vadd.f32 %v3439, %v3791
      %v3796 = vadd.f32 %v3440, %v3792
      %3797 = vset.pattern.permute.xlu0 6
      %3798 = vperm.xlu0 %3797, %v1651
      %v3799 = vpop.permute.xlu0 %3798
      %3801 = vset.pattern.permute.xlu0 6
      %3802 = vperm.xlu0 %3801, %v1652
      %v3803 = vpop.permute.xlu0 %3802
      %v3805 = vmul.f32 %v3799, %v1653
      %v3806 = vmul.f32 %v3799, %v1654
      %v3807 = vmul.f32 %v3799, %v1655
      %v3808 = vmul.f32 %v3803, %v1656
      %v3809 = vmul.f32 %v3803, %v1657
      %v3810 = vmul.f32 %v3803, %v1658
      %v3811 = vadd.f32 %v3805, 0.0
      %v3812 = vadd.f32 %v3806, 0.0
      %v3813 = vadd.f32 %v3807, 0.0
      %v3814 = vadd.f32 %v3808, 0.0
      %v3815 = vadd.f32 %v3809, 0.0
      %v3816 = vadd.f32 %v3810, 0.0
      %3817 = vset.pattern.permute.xlu0 13
      %3818 = vperm.xlu0 %3817, %v1651
      %v3819 = vpop.permute.xlu0 %3818
      %3821 = vset.pattern.permute.xlu0 13
      %3822 = vperm.xlu0 %3821, %v1652
      %v3823 = vpop.permute.xlu0 %3822
      %v3825 = vmul.f32 %v3819, %v1653
      %v3826 = vmul.f32 %v3819, %v1654
      %v3827 = vmul.f32 %v3819, %v1655
      %v3828 = vmul.f32 %v3823, %v1656
      %v3829 = vmul.f32 %v3823, %v1657
      %v3830 = vmul.f32 %v3823, %v1658
      %3837 = vrot.lane.b32.xlu0 %v3825, 112
      %v3838 = vpop.permute.xlu0 %3837
      %3839 = vrot.lane.b32.xlu0 %v3826, 112
      %v3840 = vpop.permute.xlu0 %3839
      %3841 = vrot.lane.b32.xlu0 %v3827, 112
      %v3842 = vpop.permute.xlu0 %3841
      %3843 = vrot.lane.b32.xlu0 %v3828, 112
      %v3844 = vpop.permute.xlu0 %3843
      %3845 = vrot.lane.b32.xlu0 %v3829, 112
      %v3846 = vpop.permute.xlu0 %3845
      %3847 = vrot.lane.b32.xlu0 %v3830, 112
      %v3848 = vpop.permute.xlu0 %3847
      %v3849 = vsel %vm1713, %v3838, %v3840
      %v3850 = vsel %vm1713, %v3840, %v3842
      %v3851 = vsel %vm1713, %v3844, %v3846
      %v3852 = vsel %vm1713, %v3846, %v3848
      %v3859 = vadd.f32 %v3811, %v3849
      %v3860 = vadd.f32 %v3812, %v3850
      %v3861 = vadd.f32 %v3813, %v3842
      %v3862 = vadd.f32 %v3814, %v3851
      %v3863 = vadd.f32 %v3815, %v3852
      %v3864 = vadd.f32 %v3816, %v3848
      %3865 = vset.pattern.permute.xlu0 20
      %3866 = vperm.xlu0 %3865, %v1651
      %v3867 = vpop.permute.xlu0 %3866
      %3869 = vset.pattern.permute.xlu0 20
      %3870 = vperm.xlu0 %3869, %v1652
      %v3871 = vpop.permute.xlu0 %3870
      %v3873 = vmul.f32 %v3867, %v1653
      %v3874 = vmul.f32 %v3867, %v1654
      %v3875 = vmul.f32 %v3867, %v1655
      %v3876 = vmul.f32 %v3871, %v1656
      %v3877 = vmul.f32 %v3871, %v1657
      %v3878 = vmul.f32 %v3871, %v1658
      %3885 = vrot.lane.b32.xlu0 %v3873, 96
      %v3886 = vpop.permute.xlu0 %3885
      %3887 = vrot.lane.b32.xlu0 %v3874, 96
      %v3888 = vpop.permute.xlu0 %3887
      %3889 = vrot.lane.b32.xlu0 %v3875, 96
      %v3890 = vpop.permute.xlu0 %3889
      %3891 = vrot.lane.b32.xlu0 %v3876, 96
      %v3892 = vpop.permute.xlu0 %3891
      %3893 = vrot.lane.b32.xlu0 %v3877, 96
      %v3894 = vpop.permute.xlu0 %3893
      %3895 = vrot.lane.b32.xlu0 %v3878, 96
      %v3896 = vpop.permute.xlu0 %3895
      %v3897 = vsel %vm1762, %v3886, %v3888
      %v3898 = vsel %vm1762, %v3888, %v3890
      %v3899 = vsel %vm1762, %v3892, %v3894
      %v3900 = vsel %vm1762, %v3894, %v3896
      %v3907 = vadd.f32 %v3859, %v3897
      %v3908 = vadd.f32 %v3860, %v3898
      %v3909 = vadd.f32 %v3861, %v3890
      %v3910 = vadd.f32 %v3862, %v3899
      %v3911 = vadd.f32 %v3863, %v3900
      %v3912 = vadd.f32 %v3864, %v3896
      %3913 = vset.pattern.permute.xlu0 27
      %3914 = vperm.xlu0 %3913, %v1651
      %v3915 = vpop.permute.xlu0 %3914
      %3917 = vset.pattern.permute.xlu0 27
      %3918 = vperm.xlu0 %3917, %v1652
      %v3919 = vpop.permute.xlu0 %3918
      %v3921 = vmul.f32 %v3915, %v1828
      %v3922 = vmul.f32 %v3915, %v1829
      %v3923 = vmul.f32 %v3915, %v1830
      %v3924 = vmul.f32 %v3919, %v1831
      %v3925 = vmul.f32 %v3919, %v1832
      %v3926 = vmul.f32 %v3919, %v1833
      %3933 = vrot.lane.b32.xlu0 %v3921, 80
      %v3934 = vpop.permute.xlu0 %3933
      %3935 = vrot.lane.b32.xlu0 %v3922, 80
      %v3936 = vpop.permute.xlu0 %3935
      %3937 = vrot.lane.b32.xlu0 %v3923, 80
      %v3938 = vpop.permute.xlu0 %3937
      %3939 = vrot.lane.b32.xlu0 %v3924, 80
      %v3940 = vpop.permute.xlu0 %3939
      %3941 = vrot.lane.b32.xlu0 %v3925, 80
      %v3942 = vpop.permute.xlu0 %3941
      %3943 = vrot.lane.b32.xlu0 %v3926, 80
      %v3944 = vpop.permute.xlu0 %3943
      %v3945 = vsel %vm1811, %v3934, %v3936
      %v3946 = vsel %vm1811, %v3936, %v3938
      %v3947 = vsel %vm1811, %v3940, %v3942
      %v3948 = vsel %vm1811, %v3942, %v3944
      %v3955 = vadd.f32 %v3907, %v3934
      %v3956 = vadd.f32 %v3908, %v3945
      %v3957 = vadd.f32 %v3909, %v3946
      %v3958 = vadd.f32 %v3910, %v3940
      %v3959 = vadd.f32 %v3911, %v3947
      %v3960 = vadd.f32 %v3912, %v3948
      %3961 = vset.pattern.permute.xlu0 34
      %3962 = vperm.xlu0 %3961, %v1651
      %v3963 = vpop.permute.xlu0 %3962
      %3965 = vset.pattern.permute.xlu0 34
      %3966 = vperm.xlu0 %3965, %v1652
      %v3967 = vpop.permute.xlu0 %3966
      %v3969 = vmul.f32 %v3963, %v1828
      %v3970 = vmul.f32 %v3963, %v1829
      %v3971 = vmul.f32 %v3963, %v1830
      %v3972 = vmul.f32 %v3967, %v1831
      %v3973 = vmul.f32 %v3967, %v1832
      %v3974 = vmul.f32 %v3967, %v1833
      %3981 = vrot.lane.b32.xlu0 %v3969, 64
      %v3982 = vpop.permute.xlu0 %3981
      %3983 = vrot.lane.b32.xlu0 %v3970, 64
      %v3984 = vpop.permute.xlu0 %3983
      %3985 = vrot.lane.b32.xlu0 %v3971, 64
      %v3986 = vpop.permute.xlu0 %3985
      %3987 = vrot.lane.b32.xlu0 %v3972, 64
      %v3988 = vpop.permute.xlu0 %3987
      %3989 = vrot.lane.b32.xlu0 %v3973, 64
      %v3990 = vpop.permute.xlu0 %3989
      %3991 = vrot.lane.b32.xlu0 %v3974, 64
      %v3992 = vpop.permute.xlu0 %3991
      %v3993 = vsel %vm1866, %v3982, %v3984
      %v3994 = vsel %vm1866, %v3984, %v3986
      %v3995 = vsel %vm1866, %v3988, %v3990
      %v3996 = vsel %vm1866, %v3990, %v3992
      %v4003 = vadd.f32 %v3955, %v3982
      %v4004 = vadd.f32 %v3956, %v3993
      %v4005 = vadd.f32 %v3957, %v3994
      %v4006 = vadd.f32 %v3958, %v3988
      %v4007 = vadd.f32 %v3959, %v3995
      %v4008 = vadd.f32 %v3960, %v3996
      %4009 = vset.pattern.permute.xlu0 41
      %4010 = vperm.xlu0 %4009, %v1651
      %v4011 = vpop.permute.xlu0 %4010
      %4013 = vset.pattern.permute.xlu0 41
      %4014 = vperm.xlu0 %4013, %v1652
      %v4015 = vpop.permute.xlu0 %4014
      %v4017 = vmul.f32 %v4011, %v1828
      %v4018 = vmul.f32 %v4011, %v1829
      %v4019 = vmul.f32 %v4011, %v1830
      %v4020 = vmul.f32 %v4015, %v1831
      %v4021 = vmul.f32 %v4015, %v1832
      %v4022 = vmul.f32 %v4015, %v1833
      %4029 = vrot.lane.b32.xlu0 %v4017, 48
      %v4030 = vpop.permute.xlu0 %4029
      %4031 = vrot.lane.b32.xlu0 %v4018, 48
      %v4032 = vpop.permute.xlu0 %4031
      %4033 = vrot.lane.b32.xlu0 %v4019, 48
      %v4034 = vpop.permute.xlu0 %4033
      %4035 = vrot.lane.b32.xlu0 %v4020, 48
      %v4036 = vpop.permute.xlu0 %4035
      %4037 = vrot.lane.b32.xlu0 %v4021, 48
      %v4038 = vpop.permute.xlu0 %4037
      %4039 = vrot.lane.b32.xlu0 %v4022, 48
      %v4040 = vpop.permute.xlu0 %4039
      %v4041 = vsel %vm1915, %v4030, %v4032
      %v4042 = vsel %vm1915, %v4032, %v4034
      %v4043 = vsel %vm1915, %v4036, %v4038
      %v4044 = vsel %vm1915, %v4038, %v4040
      %v4051 = vadd.f32 %v4003, %v4030
      %v4052 = vadd.f32 %v4004, %v4041
      %v4053 = vadd.f32 %v4005, %v4042
      %v4054 = vadd.f32 %v4006, %v4036
      %v4055 = vadd.f32 %v4007, %v4043
      %v4056 = vadd.f32 %v4008, %v4044
      %4057 = vset.pattern.permute.xlu0 48
      %4058 = vperm.xlu0 %4057, %v1651
      %v4059 = vpop.permute.xlu0 %4058
      %4061 = vset.pattern.permute.xlu0 48
      %4062 = vperm.xlu0 %4061, %v1652
      %v4063 = vpop.permute.xlu0 %4062
      %v4065 = vmul.f32 %v4059, %v1828
      %v4066 = vmul.f32 %v4059, %v1829
      %v4067 = vmul.f32 %v4059, %v1830
      %v4068 = vmul.f32 %v4063, %v1831
      %v4069 = vmul.f32 %v4063, %v1832
      %v4070 = vmul.f32 %v4063, %v1833
      %4077 = vrot.lane.b32.xlu0 %v4065, 32
      %v4078 = vpop.permute.xlu0 %4077
      %4079 = vrot.lane.b32.xlu0 %v4066, 32
      %v4080 = vpop.permute.xlu0 %4079
      %4081 = vrot.lane.b32.xlu0 %v4067, 32
      %v4082 = vpop.permute.xlu0 %4081
      %4083 = vrot.lane.b32.xlu0 %v4068, 32
      %v4084 = vpop.permute.xlu0 %4083
      %4085 = vrot.lane.b32.xlu0 %v4069, 32
      %v4086 = vpop.permute.xlu0 %4085
      %4087 = vrot.lane.b32.xlu0 %v4070, 32
      %v4088 = vpop.permute.xlu0 %4087
      %v4089 = vsel %vm1964, %v4078, %v4080
      %v4090 = vsel %vm1964, %v4080, %v4082
      %v4091 = vsel %vm1964, %v4084, %v4086
      %v4092 = vsel %vm1964, %v4086, %v4088
      %v4099 = vadd.f32 %v4051, %v4078
      %v4100 = vadd.f32 %v4052, %v4089
      %v4101 = vadd.f32 %v4053, %v4090
      %v4102 = vadd.f32 %v4054, %v4084
      %v4103 = vadd.f32 %v4055, %v4091
      %v4104 = vadd.f32 %v4056, %v4092
      %s4105 = scalar_lea.vmem %s3, 6
      %v4106 = vld [vmem:[%s4105] ss:$8 sm:$0x3]
      %v4108 = vlaneseq
      %v4109 = vshrl.u32 %v4108, 7
      %v4110 = vsub.s32 0, %v4109
      %v4111 = vrot.slane %v4106, %v4110
      %v4112 = vlaneseq
      %v4113 = vshrl.u32 %v4112, 7
      %v4114 = vsub.s32 1, %v4113
      %v4115 = vrot.slane %v4106, %v4114
      %4124 = vrot.lane.b32.xlu0 %v4099, 45
      %v4125 = vpop.permute.xlu0 %4124
      %4126 = vrot.lane.b32.xlu0 %v4100, 45
      %v4127 = vpop.permute.xlu0 %4126
      %4128 = vrot.lane.b32.xlu0 %v4101, 45
      %v4129 = vpop.permute.xlu0 %4128
      %4130 = vrot.lane.b32.xlu0 %v4102, 45
      %v4131 = vpop.permute.xlu0 %4130
      %4132 = vrot.lane.b32.xlu0 %v4103, 45
      %v4133 = vpop.permute.xlu0 %4132
      %4134 = vrot.lane.b32.xlu0 %v4104, 45
      %v4135 = vpop.permute.xlu0 %4134
      %vm4136 = vcmask 367616
      %v4137 = vsel %vm4136, %v4125, %v4127
      %v4138 = vsel %vm4136, %v4127, %v4129
      %v4139 = vsel %vm4136, %v4131, %v4133
      %v4140 = vsel %vm4136, %v4133, %v4135
      %v4145 = vmul.f32 %v4111, %v4137
      %v4146 = vmul.f32 %v4115, %v4138
      %v4147 = vmul.f32 %v4111, %v4139
      %v4148 = vmul.f32 %v4115, %v4140
      %v4149 = vadd.f32 %v3793, %v4145
      %v4150 = vadd.f32 %v3794, %v4146
      %v4151 = vadd.f32 %v3795, %v4147
      %v4152 = vadd.f32 %v3796, %v4148
      %v4153 = vadd.f32 %v4149, %v4151
      %v4154 = vadd.f32 %v4150, %v4152
      %v4155 = vxor.u32 %v4153, 2147483648
      %v4156 = vxor.u32 %v4154, 2147483648
      %v4157 = vmul.f32 %v4155, 1.442695
      %v4158 = vpow.pop %v4157
      %v4159 = vmul.f32 %v4156, 1.442695
      %v4160 = vpow.pop %v4159
      %v4161 = vadd.f32 %v4158, 1.0
      %v4162 = vadd.f32 %v4160, 1.0
      %v4163 = vrcp.pop %v4161
      %v4164 = vmul.f32 1.0, %v4163
      %v4165 = vrcp.pop %v4162
      %v4166 = vmul.f32 1.0, %v4165
      %v4167 = vld [vmem:[%s224] sm:$0xff]
      %v4168 = vld [vmem:[%s224 + $0x8] sm:$0xff]
      %v4169 = vld [vmem:[%s224 + $0x10] sm:$0xff]
      %v4170 = vld [vmem:[%s224 + $0x18] sm:$0xff]
      %v4171 = vld [vmem:[%s224 + $0x20] sm:$0xff]
      %v4172 = vld [vmem:[%s224 + $0x28] sm:$0xff]
      %v4173 = vld [vmem:[%s224 + $0x30] sm:$0xff]
      %v4174 = vld [vmem:[%s224 + $0x38] sm:$0xff]
      %v4175 = vmul.f32 %v4167, %v326
      %v4176 = vmul.f32 %v4168, %v326
      %v4177 = vmul.f32 %v4169, %v328
      %v4178 = vmul.f32 %v4170, %v328
      %v4179 = vmul.f32 %v4171, %v330
      %v4180 = vmul.f32 %v4172, %v330
      %v4181 = vmul.f32 %v4173, %v332
      %v4182 = vmul.f32 %v4174, %v332
      %v4183 = vlaneseq
      %v4184 = vshrl.u32 %v4183, 7
      %v4185 = vsub.s32 0, %v4184
      %v4186 = vrot.slane %v4164, %v4185
      %v4187 = vlaneseq
      %v4188 = vshrl.u32 %v4187, 7
      %v4189 = vsub.s32 0, %v4188
      %v4190 = vrot.slane %v4166, %v4189
      %v4191 = vmul.f32 %v4175, %v4186
      %v4192 = vmul.f32 %v4176, %v4190
      %v4193 = vmul.f32 %v4177, %v4186
      %v4194 = vmul.f32 %v4178, %v4190
      %v4195 = vmul.f32 %v4179, %v4186
      %v4196 = vmul.f32 %v4180, %v4190
      %v4197 = vmul.f32 %v4181, %v4186
      %v4198 = vmul.f32 %v4182, %v4190
      %4199 = vst [vmem:[%s231] sm:$0xff] %v4191
      %4200 = vst [vmem:[%s231 + $0x8] sm:$0xff] %v4192
      %4201 = vst [vmem:[%s231 + $0x10] sm:$0xff] %v4193
      %4202 = vst [vmem:[%s231 + $0x18] sm:$0xff] %v4194
      %4203 = vst [vmem:[%s231 + $0x20] sm:$0xff] %v4195
      %4204 = vst [vmem:[%s231 + $0x28] sm:$0xff] %v4196
      %4205 = vst [vmem:[%s231 + $0x30] sm:$0xff] %v4197
      %4206 = vst [vmem:[%s231 + $0x38] sm:$0xff] %v4198
      %v4207 = vld [vmem:[%s426] sm:$0xff]
      %v4208 = vld [vmem:[%s426 + $0x8] sm:$0xff]
      %v4209 = vld [vmem:[%s426 + $0x10] sm:$0xff]
      %v4210 = vld [vmem:[%s426 + $0x18] sm:$0xff]
      %v4211 = vld [vmem:[%s426 + $0x20] sm:$0xff]
      %v4212 = vld [vmem:[%s426 + $0x28] sm:$0xff]
      %v4213 = vld [vmem:[%s426 + $0x30] sm:$0xff]
      %v4214 = vld [vmem:[%s426 + $0x38] sm:$0xff]
      %v4215 = vmul.f32 %v4207, %v506
      %v4216 = vmul.f32 %v4208, %v506
      %v4217 = vmul.f32 %v4209, %v508
      %v4218 = vmul.f32 %v4210, %v508
      %v4219 = vmul.f32 %v4211, %v510
      %v4220 = vmul.f32 %v4212, %v510
      %v4221 = vmul.f32 %v4213, %v512
      %v4222 = vmul.f32 %v4214, %v512
      %v4223 = vlaneseq
      %v4224 = vshrl.u32 %v4223, 7
      %v4225 = vsub.s32 1, %v4224
      %v4226 = vrot.slane %v4164, %v4225
      %v4227 = vlaneseq
      %v4228 = vshrl.u32 %v4227, 7
      %v4229 = vsub.s32 1, %v4228
      %v4230 = vrot.slane %v4166, %v4229
      %v4231 = vmul.f32 %v4215, %v4226
      %v4232 = vmul.f32 %v4216, %v4230
      %v4233 = vmul.f32 %v4217, %v4226
      %v4234 = vmul.f32 %v4218, %v4230
      %v4235 = vmul.f32 %v4219, %v4226
      %v4236 = vmul.f32 %v4220, %v4230
      %v4237 = vmul.f32 %v4221, %v4226
      %v4238 = vmul.f32 %v4222, %v4230
      %s4239 = scalar_lea.vmem %s231, 64
      %4240 = vst [vmem:[%s4239] sm:$0xff] %v4231
      %4241 = vst [vmem:[%s4239 + $0x8] sm:$0xff] %v4232
      %4242 = vst [vmem:[%s4239 + $0x10] sm:$0xff] %v4233
      %4243 = vst [vmem:[%s4239 + $0x18] sm:$0xff] %v4234
      %4244 = vst [vmem:[%s4239 + $0x20] sm:$0xff] %v4235
      %4245 = vst [vmem:[%s4239 + $0x28] sm:$0xff] %v4236
      %4246 = vst [vmem:[%s4239 + $0x30] sm:$0xff] %v4237
      %4247 = vst [vmem:[%s4239 + $0x38] sm:$0xff] %v4238
      %v4248 = vld [vmem:[%s601] sm:$0xff]
      %v4249 = vld [vmem:[%s601 + $0x8] sm:$0xff]
      %v4250 = vld [vmem:[%s601 + $0x10] sm:$0xff]
      %v4251 = vld [vmem:[%s601 + $0x18] sm:$0xff]
      %v4252 = vld [vmem:[%s601 + $0x20] sm:$0xff]
      %v4253 = vld [vmem:[%s601 + $0x28] sm:$0xff]
      %v4254 = vld [vmem:[%s601 + $0x30] sm:$0xff]
      %v4255 = vld [vmem:[%s601 + $0x38] sm:$0xff]
      %v4256 = vmul.f32 %v4248, %v681
      %v4257 = vmul.f32 %v4249, %v681
      %v4258 = vmul.f32 %v4250, %v683
      %v4259 = vmul.f32 %v4251, %v683
      %v4260 = vmul.f32 %v4252, %v685
      %v4261 = vmul.f32 %v4253, %v685
      %v4262 = vmul.f32 %v4254, %v687
      %v4263 = vmul.f32 %v4255, %v687
      %v4264 = vlaneseq
      %v4265 = vshrl.u32 %v4264, 7
      %v4266 = vsub.s32 2, %v4265
      %v4267 = vrot.slane %v4164, %v4266
      %v4268 = vlaneseq
      %v4269 = vshrl.u32 %v4268, 7
      %v4270 = vsub.s32 2, %v4269
      %v4271 = vrot.slane %v4166, %v4270
      %v4272 = vmul.f32 %v4256, %v4267
      %v4273 = vmul.f32 %v4257, %v4271
      %v4274 = vmul.f32 %v4258, %v4267
      %v4275 = vmul.f32 %v4259, %v4271
      %v4276 = vmul.f32 %v4260, %v4267
      %v4277 = vmul.f32 %v4261, %v4271
      %v4278 = vmul.f32 %v4262, %v4267
      %v4279 = vmul.f32 %v4263, %v4271
      %s4280 = scalar_lea.vmem %s231, 128
      %4281 = vst [vmem:[%s4280] sm:$0xff] %v4272
      %4282 = vst [vmem:[%s4280 + $0x8] sm:$0xff] %v4273
      %4283 = vst [vmem:[%s4280 + $0x10] sm:$0xff] %v4274
      %4284 = vst [vmem:[%s4280 + $0x18] sm:$0xff] %v4275
      %4285 = vst [vmem:[%s4280 + $0x20] sm:$0xff] %v4276
      %4286 = vst [vmem:[%s4280 + $0x28] sm:$0xff] %v4277
      %4287 = vst [vmem:[%s4280 + $0x30] sm:$0xff] %v4278
      %4288 = vst [vmem:[%s4280 + $0x38] sm:$0xff] %v4279
      %v4289 = vld [vmem:[%s776] sm:$0xff]
      %v4290 = vld [vmem:[%s776 + $0x8] sm:$0xff]
      %v4291 = vld [vmem:[%s776 + $0x10] sm:$0xff]
      %v4292 = vld [vmem:[%s776 + $0x18] sm:$0xff]
      %v4293 = vld [vmem:[%s776 + $0x20] sm:$0xff]
      %v4294 = vld [vmem:[%s776 + $0x28] sm:$0xff]
      %v4295 = vld [vmem:[%s776 + $0x30] sm:$0xff]
      %v4296 = vld [vmem:[%s776 + $0x38] sm:$0xff]
      %v4297 = vmul.f32 %v4289, %v856
      %v4298 = vmul.f32 %v4290, %v856
      %v4299 = vmul.f32 %v4291, %v858
      %v4300 = vmul.f32 %v4292, %v858
      %v4301 = vmul.f32 %v4293, %v860
      %v4302 = vmul.f32 %v4294, %v860
      %v4303 = vmul.f32 %v4295, %v862
      %v4304 = vmul.f32 %v4296, %v862
      %v4305 = vlaneseq
      %v4306 = vshrl.u32 %v4305, 7
      %v4307 = vsub.s32 3, %v4306
      %v4308 = vrot.slane %v4164, %v4307
      %v4309 = vlaneseq
      %v4310 = vshrl.u32 %v4309, 7
      %v4311 = vsub.s32 3, %v4310
      %v4312 = vrot.slane %v4166, %v4311
      %v4313 = vmul.f32 %v4297, %v4308
      %v4314 = vmul.f32 %v4298, %v4312
      %v4315 = vmul.f32 %v4299, %v4308
      %v4316 = vmul.f32 %v4300, %v4312
      %v4317 = vmul.f32 %v4301, %v4308
      %v4318 = vmul.f32 %v4302, %v4312
      %v4319 = vmul.f32 %v4303, %v4308
      %v4320 = vmul.f32 %v4304, %v4312
      %s4321 = scalar_lea.vmem %s231, 192
      %4322 = vst [vmem:[%s4321] sm:$0xff] %v4313
      %4323 = vst [vmem:[%s4321 + $0x8] sm:$0xff] %v4314
      %4324 = vst [vmem:[%s4321 + $0x10] sm:$0xff] %v4315
      %4325 = vst [vmem:[%s4321 + $0x18] sm:$0xff] %v4316
      %4326 = vst [vmem:[%s4321 + $0x20] sm:$0xff] %v4317
      %4327 = vst [vmem:[%s4321 + $0x28] sm:$0xff] %v4318
      %4328 = vst [vmem:[%s4321 + $0x30] sm:$0xff] %v4319
      %4329 = vst [vmem:[%s4321 + $0x38] sm:$0xff] %v4320
      %v4330 = vld [vmem:[%s951] sm:$0xff]
      %v4331 = vld [vmem:[%s951 + $0x8] sm:$0xff]
      %v4332 = vld [vmem:[%s951 + $0x10] sm:$0xff]
      %v4333 = vld [vmem:[%s951 + $0x18] sm:$0xff]
      %v4334 = vld [vmem:[%s951 + $0x20] sm:$0xff]
      %v4335 = vld [vmem:[%s951 + $0x28] sm:$0xff]
      %v4336 = vld [vmem:[%s951 + $0x30] sm:$0xff]
      %v4337 = vld [vmem:[%s951 + $0x38] sm:$0xff]
      %v4338 = vmul.f32 %v4330, %v1031
      %v4339 = vmul.f32 %v4331, %v1031
      %v4340 = vmul.f32 %v4332, %v1033
      %v4341 = vmul.f32 %v4333, %v1033
      %v4342 = vmul.f32 %v4334, %v1035
      %v4343 = vmul.f32 %v4335, %v1035
      %v4344 = vmul.f32 %v4336, %v1037
      %v4345 = vmul.f32 %v4337, %v1037
      %v4346 = vlaneseq
      %v4347 = vshrl.u32 %v4346, 7
      %v4348 = vsub.s32 4, %v4347
      %v4349 = vrot.slane %v4164, %v4348
      %v4350 = vlaneseq
      %v4351 = vshrl.u32 %v4350, 7
      %v4352 = vsub.s32 4, %v4351
      %v4353 = vrot.slane %v4166, %v4352
      %v4354 = vmul.f32 %v4338, %v4349
      %v4355 = vmul.f32 %v4339, %v4353
      %v4356 = vmul.f32 %v4340, %v4349
      %v4357 = vmul.f32 %v4341, %v4353
      %v4358 = vmul.f32 %v4342, %v4349
      %v4359 = vmul.f32 %v4343, %v4353
      %v4360 = vmul.f32 %v4344, %v4349
      %v4361 = vmul.f32 %v4345, %v4353
      %s4362 = scalar_lea.vmem %s231, 256
      %4363 = vst [vmem:[%s4362] sm:$0xff] %v4354
      %4364 = vst [vmem:[%s4362 + $0x8] sm:$0xff] %v4355
      %4365 = vst [vmem:[%s4362 + $0x10] sm:$0xff] %v4356
      %4366 = vst [vmem:[%s4362 + $0x18] sm:$0xff] %v4357
      %4367 = vst [vmem:[%s4362 + $0x20] sm:$0xff] %v4358
      %4368 = vst [vmem:[%s4362 + $0x28] sm:$0xff] %v4359
      %4369 = vst [vmem:[%s4362 + $0x30] sm:$0xff] %v4360
      %4370 = vst [vmem:[%s4362 + $0x38] sm:$0xff] %v4361
      %v4371 = vld [vmem:[%s1126] sm:$0xff]
      %v4372 = vld [vmem:[%s1126 + $0x8] sm:$0xff]
      %v4373 = vld [vmem:[%s1126 + $0x10] sm:$0xff]
      %v4374 = vld [vmem:[%s1126 + $0x18] sm:$0xff]
      %v4375 = vld [vmem:[%s1126 + $0x20] sm:$0xff]
      %v4376 = vld [vmem:[%s1126 + $0x28] sm:$0xff]
      %v4377 = vld [vmem:[%s1126 + $0x30] sm:$0xff]
      %v4378 = vld [vmem:[%s1126 + $0x38] sm:$0xff]
      %v4379 = vmul.f32 %v4371, %v1206
      %v4380 = vmul.f32 %v4372, %v1206
      %v4381 = vmul.f32 %v4373, %v1208
      %v4382 = vmul.f32 %v4374, %v1208
      %v4383 = vmul.f32 %v4375, %v1210
      %v4384 = vmul.f32 %v4376, %v1210
      %v4385 = vmul.f32 %v4377, %v1212
      %v4386 = vmul.f32 %v4378, %v1212
      %v4387 = vlaneseq
      %v4388 = vshrl.u32 %v4387, 7
      %v4389 = vsub.s32 5, %v4388
      %v4390 = vrot.slane %v4164, %v4389
      %v4391 = vlaneseq
      %v4392 = vshrl.u32 %v4391, 7
      %v4393 = vsub.s32 5, %v4392
      %v4394 = vrot.slane %v4166, %v4393
      %v4395 = vmul.f32 %v4379, %v4390
      %v4396 = vmul.f32 %v4380, %v4394
      %v4397 = vmul.f32 %v4381, %v4390
      %v4398 = vmul.f32 %v4382, %v4394
      %v4399 = vmul.f32 %v4383, %v4390
      %v4400 = vmul.f32 %v4384, %v4394
      %v4401 = vmul.f32 %v4385, %v4390
      %v4402 = vmul.f32 %v4386, %v4394
      %s4403 = scalar_lea.vmem %s231, 320
      %4404 = vst [vmem:[%s4403] sm:$0xff] %v4395
      %4405 = vst [vmem:[%s4403 + $0x8] sm:$0xff] %v4396
      %4406 = vst [vmem:[%s4403 + $0x10] sm:$0xff] %v4397
      %4407 = vst [vmem:[%s4403 + $0x18] sm:$0xff] %v4398
      %4408 = vst [vmem:[%s4403 + $0x20] sm:$0xff] %v4399
      %4409 = vst [vmem:[%s4403 + $0x28] sm:$0xff] %v4400
      %4410 = vst [vmem:[%s4403 + $0x30] sm:$0xff] %v4401
      %4411 = vst [vmem:[%s4403 + $0x38] sm:$0xff] %v4402
      %v4412 = vld [vmem:[%s1301] sm:$0xff]
      %v4413 = vld [vmem:[%s1301 + $0x8] sm:$0xff]
      %v4414 = vld [vmem:[%s1301 + $0x10] sm:$0xff]
      %v4415 = vld [vmem:[%s1301 + $0x18] sm:$0xff]
      %v4416 = vld [vmem:[%s1301 + $0x20] sm:$0xff]
      %v4417 = vld [vmem:[%s1301 + $0x28] sm:$0xff]
      %v4418 = vld [vmem:[%s1301 + $0x30] sm:$0xff]
      %v4419 = vld [vmem:[%s1301 + $0x38] sm:$0xff]
      %v4420 = vmul.f32 %v4412, %v1381
      %v4421 = vmul.f32 %v4413, %v1381
      %v4422 = vmul.f32 %v4414, %v1383
      %v4423 = vmul.f32 %v4415, %v1383
      %v4424 = vmul.f32 %v4416, %v1385
      %v4425 = vmul.f32 %v4417, %v1385
      %v4426 = vmul.f32 %v4418, %v1387
      %v4427 = vmul.f32 %v4419, %v1387
      %v4428 = vlaneseq
      %v4429 = vshrl.u32 %v4428, 7
      %v4430 = vsub.s32 6, %v4429
      %v4431 = vrot.slane %v4164, %v4430
      %v4432 = vlaneseq
      %v4433 = vshrl.u32 %v4432, 7
      %v4434 = vsub.s32 6, %v4433
      %v4435 = vrot.slane %v4166, %v4434
      %v4436 = vmul.f32 %v4420, %v4431
      %v4437 = vmul.f32 %v4421, %v4435
      %v4438 = vmul.f32 %v4422, %v4431
      %v4439 = vmul.f32 %v4423, %v4435
      %v4440 = vmul.f32 %v4424, %v4431
      %v4441 = vmul.f32 %v4425, %v4435
      %v4442 = vmul.f32 %v4426, %v4431
      %v4443 = vmul.f32 %v4427, %v4435
      %s4444 = scalar_lea.vmem %s231, 384
      %4445 = vst [vmem:[%s4444] sm:$0xff] %v4436
      %4446 = vst [vmem:[%s4444 + $0x8] sm:$0xff] %v4437
      %4447 = vst [vmem:[%s4444 + $0x10] sm:$0xff] %v4438
      %4448 = vst [vmem:[%s4444 + $0x18] sm:$0xff] %v4439
      %4449 = vst [vmem:[%s4444 + $0x20] sm:$0xff] %v4440
      %4450 = vst [vmem:[%s4444 + $0x28] sm:$0xff] %v4441
      %4451 = vst [vmem:[%s4444 + $0x30] sm:$0xff] %v4442
      %4452 = vst [vmem:[%s4444 + $0x38] sm:$0xff] %v4443
      %v4453 = vld [vmem:[%s1476] sm:$0xff]
      %v4454 = vld [vmem:[%s1476 + $0x8] sm:$0xff]
      %v4455 = vld [vmem:[%s1476 + $0x10] sm:$0xff]
      %v4456 = vld [vmem:[%s1476 + $0x18] sm:$0xff]
      %v4457 = vld [vmem:[%s1476 + $0x20] sm:$0xff]
      %v4458 = vld [vmem:[%s1476 + $0x28] sm:$0xff]
      %v4459 = vld [vmem:[%s1476 + $0x30] sm:$0xff]
      %v4460 = vld [vmem:[%s1476 + $0x38] sm:$0xff]
      %v4461 = vmul.f32 %v4453, %v1556
      %v4462 = vmul.f32 %v4454, %v1556
      %v4463 = vmul.f32 %v4455, %v1558
      %v4464 = vmul.f32 %v4456, %v1558
      %v4465 = vmul.f32 %v4457, %v1560
      %v4466 = vmul.f32 %v4458, %v1560
      %v4467 = vmul.f32 %v4459, %v1562
      %v4468 = vmul.f32 %v4460, %v1562
      %v4469 = vlaneseq
      %v4470 = vshrl.u32 %v4469, 7
      %v4471 = vsub.s32 7, %v4470
      %v4472 = vrot.slane %v4164, %v4471
      %v4473 = vlaneseq
      %v4474 = vshrl.u32 %v4473, 7
      %v4475 = vsub.s32 7, %v4474
      %v4476 = vrot.slane %v4166, %v4475
      %v4477 = vmul.f32 %v4461, %v4472
      %v4478 = vmul.f32 %v4462, %v4476
      %v4479 = vmul.f32 %v4463, %v4472
      %v4480 = vmul.f32 %v4464, %v4476
      %v4481 = vmul.f32 %v4465, %v4472
      %v4482 = vmul.f32 %v4466, %v4476
      %v4483 = vmul.f32 %v4467, %v4472
      %v4484 = vmul.f32 %v4468, %v4476
      %s4485 = scalar_lea.vmem %s231, 448
      %4486 = vst [vmem:[%s4485] sm:$0xff] %v4477
      %4487 = vst [vmem:[%s4485 + $0x8] sm:$0xff] %v4478
      %4488 = vst [vmem:[%s4485 + $0x10] sm:$0xff] %v4479
      %4489 = vst [vmem:[%s4485 + $0x18] sm:$0xff] %v4480
      %4490 = vst [vmem:[%s4485 + $0x20] sm:$0xff] %v4481
      %4491 = vst [vmem:[%s4485 + $0x28] sm:$0xff] %v4482
      %4492 = vst [vmem:[%s4485 + $0x30] sm:$0xff] %v4483
      %4493 = vst [vmem:[%s4485 + $0x38] sm:$0xff] %v4484
      %s4494 = smul.u32 8, %s16
      %p4495 = scmp.lt.s32.totalorder %s4494, 15
      %s4496 = scalar_select %p4495, %s4494, 15
      %s4497 = smul.addr %s4496, 8
      %s4498 = smul.addr %s4497, 8
      %s4499 = scalar_lea.vmem %s5, %s4498
      // Predicated region
      $region41: #{cbam_pallas.1} parent=39 // pred_check
        %p4500 = pneg %p144
      $region42: #{cbam_pallas.1} parent=39 // pred_check_branch
        %4502 = sbr.rel (%p4500) target = $region44
      $region43: #{cbam_pallas.1} parent=39 // pred_region
        %s4503 = smul.u32 8, %s16
      $region44: #{cbam_pallas.1} parent=39 // pred_fallthru
        _
    $region40: #{cbam_pallas.1} parent=5 // pred_fallthru
      _
    %p4504 = scmp.le.s32.totalorder 2, %s11
    // Predicated region
    $region45: #{cbam_pallas.1} parent=5 // pred_check
      %p4505 = pneg %p4504
    $region46: #{cbam_pallas.1} parent=5 // pred_check_branch
      %4507 = sbr.rel (%p4505) target = $region48
    $region47: #{cbam_pallas.1} parent=5 // pred_region
      %s4508 = ssub.s32 %s11, 2
      // Predicated region
      $region49: #{cbam_pallas.1} parent=47 // pred_check
        %p4509 = pneg %p150
      $region50: #{cbam_pallas.1} parent=47 // pred_check_branch
        %4511 = sbr.rel (%p4509) target = $region52
      $region51: #{cbam_pallas.1} parent=47 // pred_region
        %s4512 = smul.u32 8, %s17
        %p4513 = scmp.lt.s32.totalorder %s4512, 15
        %s4514 = scalar_select %p4513, %s4512, 15
        %s4515 = smul.addr %s4514, 8
        %s4516 = smul.addr %s4515, 8
        %s4517 = scalar_lea.vmem %s5, %s4516
      $region52: #{cbam_pallas.1} parent=47 // pred_fallthru
        _
    $region48: #{cbam_pallas.1} parent=5 // pred_fallthru
      _
  $region6: #{cbam_pallas.1} parent=0 // loop_footer
    %s15 = sadd.s32 1, %s11
  $region7: #{cbam_pallas.1} parent=0 // loop_footer_branch
    %10 = sbr.rel target = $region3
  $region8: #{cbam_pallas.1} parent=0 // loop_exit
    _

</llo_original>
